<compile_context>
chip_gen: v5e
topology: v5e:2x2
jax: 0.10.0
libtpu: 0.0.40
codegen_flags: <defaults>
</compile_context>

<pallas_src>
import functools

import numpy as np

import jax
import jax.numpy as jnp
from jax.experimental import pallas as pl
from jax.experimental.pallas import tpu as pltpu


# ---------------------------------------------------------------------------
# Trace-time constant tables.  Reflection pad + 3x3 tap gather (+ stride-2
# subsample, + bilinear x2 upsample for the up-convs) expressed as small
# matrices acting on row-major-flattened spatial grids.  Every entry is a
# product of {0.25, 0.75, 1.0}, exactly representable in bf16.
# ---------------------------------------------------------------------------
def _reflect(t, n):
    if t < 0:
        return -t
    if t > n - 1:
        return 2 * (n - 1) - t
    return t


def _conv3x3_gather_t(h_in, w_in, stride):
    """S^T[tap, in_pix, out_pix] for ReflectionPad2d(1) + Conv2d(k=3, stride)."""
    h_out = (h_in + 2 - 3) // stride + 1
    w_out = (w_in + 2 - 3) // stride + 1
    s = np.zeros((9, h_in * w_in, h_out * w_out), np.float32)
    for di in range(3):
        for dj in range(3):
            t = di * 3 + dj
            for i in range(h_out):
                r = _reflect(stride * i + di - 1, h_in)
                for j in range(w_out):
                    c = _reflect(stride * j + dj - 1, w_in)
                    s[t, r * w_in + c, i * w_out + j] = 1.0
    return s


def _upsample2x_mat(h, w):
    """U[out_pix, in_pix]: nn.Upsample(scale_factor=2, mode='bilinear'),
    align_corners=False, on a row-major (h, w) grid."""
    def u1(n):
        u = np.zeros((2 * n, n), np.float32)
        for k in range(n):
            u[2 * k, k] += 0.75
            u[2 * k, max(k - 1, 0)] += 0.25
            u[2 * k + 1, k] += 0.75
            u[2 * k + 1, min(k + 1, n - 1)] += 0.25
        return u
    return np.kron(u1(h), u1(w))


@functools.lru_cache(maxsize=None)
def _gather_tables(h, w):
    """Per-conv (transposed) gather matrices for the 4 convs of the block."""
    h2, w2 = h // 2, w // 2
    h4, w4 = h2 // 2, w2 // 2
    s1 = _conv3x3_gather_t(h, w, 2)                 # (9, h*w,   h2*w2)
    s2 = _conv3x3_gather_t(h2, w2, 2)               # (9, h2*w2, h4*w4)
    # up-convs: fold the bilinear x2 upsample into the gather:  G^T = U^T @ S^T
    u3 = _upsample2x_mat(h4, w4)                    # (h2*w2, h4*w4)
    s3 = _conv3x3_gather_t(h2, w2, 1)               # (9, h2*w2, h2*w2)
    g3 = np.einsum("pq,tpr->tqr", u3, s3)           # (9, h4*w4, h2*w2)
    u4 = _upsample2x_mat(h2, w2)                    # (h*w, h2*w2)
    s4 = _conv3x3_gather_t(h, w, 1)                 # (9, h*w, h*w)
    g4 = np.einsum("pq,tpr->tqr", u4, s4)           # (9, h2*w2, h*w)
    return s1, s2, g3, g4


# ---------------------------------------------------------------------------
# Fused Pallas kernel: the entire UnetBlock_z_middle forward for one batch
# element, fully VMEM-resident.
# ---------------------------------------------------------------------------
def _unet_middle_kernel(x_ref,
                        w1_ref, b1_ref, s1_ref,
                        w2_ref, b2_ref, s2_ref,
                        w3_ref, b3_ref, g3_ref,
                        w4_ref, b4_ref, g4_ref,
                        o_ref):
    def conv(act, w_ref, b_ref, s_ref):
        # act: (Cin, Pin) f32;  s_ref: (9, Pin, Pout) bf16;  w_ref: (9, Cout, Cin) bf16
        a = act.astype(jnp.bfloat16)                     # cast just before the dot
        acc = None
        for t in range(9):                               # unrolled 3x3 tap loop
            g = jnp.dot(a, s_ref[t], preferred_element_type=jnp.float32)
            term = jnp.dot(w_ref[t], g.astype(jnp.bfloat16),
                           preferred_element_type=jnp.float32)
            acc = term if acc is None else acc + term
        return acc + b_ref[...]                          # (Cout, Pout) f32

    def lrelu(v):
        return jnp.where(v >= 0, v, 0.2 * v)

    x = x_ref[0]                                             # (I, H*W) f32
    # middle.down : LeakyReLU(0.2) -> reflect pad -> conv s=2       (H -> H/2)
    x1 = conv(lrelu(x), w1_ref, b1_ref, s1_ref)              # (C,  P/4)
    # inner.down  : LeakyReLU(0.2) -> reflect pad -> conv s=2       (H/2 -> H/4)
    y1 = conv(lrelu(x1), w2_ref, b2_ref, s2_ref)             # (C2, P/16)
    # inner.up    : ReLU -> bilinear x2 -> reflect pad -> conv s=1  (H/4 -> H/2)
    y2 = conv(jnp.maximum(y1, 0.0), w3_ref, b3_ref, g3_ref)  # (C,  P/4)
    # innermost output: cat([up(down(x1)), x1], channel)
    x2 = jnp.concatenate([y2, x1], axis=0)                   # (2C, P/4)
    # middle.up   : ReLU -> bilinear x2 -> reflect pad -> conv s=1  (H/2 -> H)
    up = conv(jnp.maximum(x2, 0.0), w4_ref, b4_ref, g4_ref)  # (O, P)
    # middle output: cat([up(x2), x], channel) — done in-kernel, lane-dense NCHW-flat.
    o_ref[0] = jnp.concatenate([up, x], axis=0)              # (O + I, P) f32


def unet_block_z_middle_forward(x_nchw, params):
    """x_nchw: (N, I, H, W) f32 -> (N, O + I, H, W) f32 (NCHW, like PyTorch)."""
    n, cin, h, w = x_nchw.shape
    assert h % 4 == 0 and w % 4 == 0, "spatial dims must be divisible by 4"
    p0, p1, p2 = h * w, (h // 2) * (w // 2), (h // 4) * (w // 4)

    def prep(name):
        wt, b = params[name]                               # OIHW / (Cout,)
        co, ci = wt.shape[0], wt.shape[1]
        wt = jnp.transpose(wt, (2, 3, 0, 1)).reshape(9, co, ci)   # (tap, Cout, Cin)
        return wt.astype(jnp.bfloat16), b.reshape(co, 1).astype(jnp.float32), co, ci

    w1, b1, c, _ = prep("down_mid")
    w2, b2, c2, _ = prep("down_inner")
    w3, b3, _, _ = prep("up_inner")
    w4, b4, o, _ = prep("up_mid")

    s1_np, s2_np, g3_np, g4_np = _gather_tables(h, w)
    s1 = jnp.asarray(s1_np, jnp.bfloat16)
    s2 = jnp.asarray(s2_np, jnp.bfloat16)
    g3 = jnp.asarray(g3_np, jnp.bfloat16)
    g4 = jnp.asarray(g4_np, jnp.bfloat16)

    x_flat = x_nchw.reshape(n, cin, p0).astype(jnp.float32)   # free metadata reshape

    flops = 2 * 9 * n * (cin * p0 * p1 + c * cin * p1 +
                         c * p1 * p2 + c2 * c * p2 +
                         c2 * p2 * p1 + c * c2 * p1 +
                         2 * c * p1 * p0 + o * 2 * c * p0)
    bytes_accessed = (x_flat.size * 4 + n * (o + cin) * p0 * 4 +
                      2 * (s1.size + s2.size + g3.size + g4.size +
                           w1.size + w2.size + w3.size + w4.size) +
                      4 * (b1.size + b2.size + b3.size + b4.size))

    const3 = lambda i: (0, 0, 0)
    const2 = lambda i: (0, 0)
    out_flat = pl.pallas_call(
        _unet_middle_kernel,
        out_shape=jax.ShapeDtypeStruct((n, o + cin, p0), jnp.float32),
        grid=(n,),
        in_specs=[
            pl.BlockSpec((1, cin, p0), lambda i: (i, 0, 0)),
            pl.BlockSpec(w1.shape, const3), pl.BlockSpec(b1.shape, const2),
            pl.BlockSpec(s1.shape, const3),
            pl.BlockSpec(w2.shape, const3), pl.BlockSpec(b2.shape, const2),
            pl.BlockSpec(s2.shape, const3),
            pl.BlockSpec(w3.shape, const3), pl.BlockSpec(b3.shape, const2),
            pl.BlockSpec(g3.shape, const3),
            pl.BlockSpec(w4.shape, const3), pl.BlockSpec(b4.shape, const2),
            pl.BlockSpec(g4.shape, const3),
        ],
        out_specs=pl.BlockSpec((1, o + cin, p0), lambda i: (i, 0, 0)),
        compiler_params=pltpu.CompilerParams(
            dimension_semantics=("parallel",),     # v7x: one batch element per TC
            vmem_limit_bytes=32 << 20,             # ~3 MiB used; safe on 64 MiB v7x
        ),
        cost_estimate=pl.CostEstimate(flops=flops, transcendentals=0,
                                      bytes_accessed=bytes_accessed),
    )(x_flat, w1, b1, s1, w2, b2, s2, w3, b3, g3, w4, b4, g4)

    return out_flat.reshape(n, o + cin, h, w)      # free metadata reshape (already NCHW)


# ---------------------------------------------------------------------------
# Synthetic parameters (PyTorch Conv2d OIHW layout) and a plain-XLA reference
# used as a numerical cross-check of the fused kernel.
# ---------------------------------------------------------------------------
def make_params(key, input_nc=4, outer_nc=32, inner_nc=32, inner_inner_nc=64):
    def conv_init(k, ci, co):
        k_w, k_b = jax.random.split(k)
        weight = jax.random.normal(k_w, (co, ci, 3, 3), jnp.float32) * 0.05
        bias = jax.random.normal(k_b, (co,), jnp.float32) * 0.05
        return weight, bias

    k1, k2, k3, k4 = jax.random.split(key, 4)
    return {
        "down_mid":   conv_init(k1, input_nc, inner_nc),        # Conv2d(I,  C,  3, s=2)
        "down_inner": conv_init(k2, inner_nc, inner_inner_nc),  # Conv2d(C,  C2, 3, s=2)
        "up_inner":   conv_init(k3, inner_inner_nc, inner_nc),  # Conv2d(C2, C,  3, s=1)
        "up_mid":     conv_init(k4, 2 * inner_nc, outer_nc),    # Conv2d(2C, O,  3, s=1)
    }


def _reference_forward(x_nchw, params):
    """Straightforward f32 XLA reference of the same forward (NHWC internally)."""
    def conv(hh, wb, stride):
        wt, b = wb
        hp = jnp.pad(hh, ((0, 0), (1, 1), (1, 1), (0, 0)), mode="reflect")
        y = jax.lax.conv_general_dilated(
            hp, jnp.transpose(wt, (2, 3, 1, 0)), (stride, stride), "VALID",
            dimension_numbers=("NHWC", "HWIO", "NHWC"))
        return y + b

    def lrelu(v):
        return jnp.where(v >= 0, v, 0.2 * v)

    def up2(v):
        nb, hh, ww, cc = v.shape
        top = jnp.concatenate([v[:, :1], v[:, :-1]], 1)
        bot = jnp.concatenate([v[:, 1:], v[:, -1:]], 1)
        rows = jnp.stack([0.75 * v + 0.25 * top, 0.75 * v + 0.25 * bot], 2)
        rows = rows.reshape(nb, 2 * hh, ww, cc)
        lf = jnp.concatenate([rows[:, :, :1], rows[:, :, :-1]], 2)
        rt = jnp.concatenate([rows[:, :, 1:], rows[:, :, -1:]], 2)
        cols = jnp.stack([0.75 * rows + 0.25 * lf, 0.75 * rows + 0.25 * rt], 3)
        return cols.reshape(nb, 2 * hh, 2 * ww, cc)

    x = jnp.transpose(x_nchw, (0, 2, 3, 1))
    x1 = conv(lrelu(x), params["down_mid"], 2)
    y1 = conv(lrelu(x1), params["down_inner"], 2)
    y2 = conv(up2(jnp.maximum(y1, 0.0)), params["up_inner"], 1)
    x2 = jnp.concatenate([y2, x1], -1)
    up = conv(up2(jnp.maximum(x2, 0.0)), params["up_mid"], 1)
    out = jnp.concatenate([up, x], -1)
    return jnp.transpose(out, (0, 3, 1, 2))


if __name__ == "__main__":
    key = jax.random.PRNGKey(0)
    kx, kp = jax.random.split(key)

    N, I, H, W = 2, 4, 16, 16          # batch, input channels, spatial
    C, C2, O = 32, 64, 32              # inner_nc, submodule inner_nc, outer_nc

    x = jax.random.normal(kx, (N, I, H, W), jnp.float32)
    params = make_params(kp, input_nc=I, outer_nc=O, inner_nc=C, inner_inner_nc=C2)

    fwd = jax.jit(unet_block_z_middle_forward)
    out = fwd(x, params)
    jax.block_until_ready(out)

    assert out.shape == (N, O + I, H, W), f"unexpected shape {out.shape}"
    assert bool(jnp.all(jnp.isfinite(out)))

    # Cross-check the fused bf16-MXU kernel against a plain f32 XLA reference.
    ref = _reference_forward(x, params)
    max_err = float(jnp.max(jnp.abs(out - ref)))
    assert max_err < 1e-1, f"kernel/reference mismatch: max_err={max_err}"

    print("KERNEL_OK")
</pallas_src>

<mosaic_0001>
module attributes {stable_mosaic.version = 11 : i64} {
  func.func @_unet_middle_kernel(%arg0: i32, %arg1: memref<1x4x256xf32, #tpu.memory_space<vmem>>, %arg2: memref<9x32x4xbf16, #tpu.memory_space<vmem>>, %arg3: memref<32x1xf32, #tpu.memory_space<vmem>>, %arg4: memref<9x256x64xbf16, #tpu.memory_space<vmem>>, %arg5: memref<9x64x32xbf16, #tpu.memory_space<vmem>>, %arg6: memref<64x1xf32, #tpu.memory_space<vmem>>, %arg7: memref<9x64x16xbf16, #tpu.memory_space<vmem>>, %arg8: memref<9x32x64xbf16, #tpu.memory_space<vmem>>, %arg9: memref<32x1xf32, #tpu.memory_space<vmem>>, %arg10: memref<9x16x64xbf16, #tpu.memory_space<vmem>>, %arg11: memref<9x32x64xbf16, #tpu.memory_space<vmem>>, %arg12: memref<32x1xf32, #tpu.memory_space<vmem>>, %arg13: memref<9x64x256xbf16, #tpu.memory_space<vmem>>, %arg14: memref<1x36x256xf32, #tpu.memory_space<vmem>>) attributes {dimension_semantics = [#tpu.dimension_semantics<parallel>], iteration_bounds = array<i64: 2>, scalar_prefetch = 0 : i64, scratch_operands = 0 : i64, tpu.core_type = #tpu.core_type<tc>, window_params = [{transform_indices = @transform_0, window_bounds = array<i64: 1, 4, 256>}, {pipeline_mode = #tpu.pipeline_mode<synchronous>, transform_indices = @transform_1, window_bounds = array<i64: 9, 32, 4>}, {pipeline_mode = #tpu.pipeline_mode<synchronous>, transform_indices = @transform_2, window_bounds = array<i64: 32, 1>}, {pipeline_mode = #tpu.pipeline_mode<synchronous>, transform_indices = @transform_3, window_bounds = array<i64: 9, 256, 64>}, {pipeline_mode = #tpu.pipeline_mode<synchronous>, transform_indices = @transform_4, window_bounds = array<i64: 9, 64, 32>}, {pipeline_mode = #tpu.pipeline_mode<synchronous>, transform_indices = @transform_5, window_bounds = array<i64: 64, 1>}, {pipeline_mode = #tpu.pipeline_mode<synchronous>, transform_indices = @transform_6, window_bounds = array<i64: 9, 64, 16>}, {pipeline_mode = #tpu.pipeline_mode<synchronous>, transform_indices = @transform_7, window_bounds = array<i64: 9, 32, 64>}, {pipeline_mode = #tpu.pipeline_mode<synchronous>, transform_indices = @transform_8, window_bounds = array<i64: 32, 1>}, {pipeline_mode = #tpu.pipeline_mode<synchronous>, transform_indices = @transform_9, window_bounds = array<i64: 9, 16, 64>}, {pipeline_mode = #tpu.pipeline_mode<synchronous>, transform_indices = @transform_10, window_bounds = array<i64: 9, 32, 64>}, {pipeline_mode = #tpu.pipeline_mode<synchronous>, transform_indices = @transform_11, window_bounds = array<i64: 32, 1>}, {pipeline_mode = #tpu.pipeline_mode<synchronous>, transform_indices = @transform_12, window_bounds = array<i64: 9, 64, 256>}, {transform_indices = @transform_13, window_bounds = array<i64: 1, 36, 256>}]} {
    %c0 = arith.constant 0 : index
    %c0_0 = arith.constant 0 : index
    %c0_1 = arith.constant 0 : index
    %0 = vector.load %arg1[%c0, %c0_0, %c0_1] : memref<1x4x256xf32, #tpu.memory_space<vmem>>, vector<1x4x256xf32>
    %1 = vector.shape_cast %0 : vector<1x4x256xf32> to vector<4x256xf32>
    %cst = arith.constant 0.000000e+00 : f32
    %2 = vector.broadcast %cst : f32 to vector<4x256xf32>
    %3 = arith.cmpf oge, %1, %2 : vector<4x256xf32>
    %cst_2 = arith.constant 2.000000e-01 : f32
    %4 = vector.broadcast %cst_2 : f32 to vector<4x256xf32>
    %5 = arith.mulf %4, %1 : vector<4x256xf32>
    %6 = arith.select %3, %1, %5 : vector<4x256xi1>, vector<4x256xf32>
    %7 = arith.truncf %6 : vector<4x256xf32> to vector<4x256xbf16>
    %c0_3 = arith.constant 0 : index
    %c0_4 = arith.constant 0 : index
    %c0_5 = arith.constant 0 : index
    %8 = vector.load %arg4[%c0_3, %c0_4, %c0_5] : memref<9x256x64xbf16, #tpu.memory_space<vmem>>, vector<1x256x64xbf16>
    %9 = vector.shape_cast %8 : vector<1x256x64xbf16> to vector<256x64xbf16>
    %cst_6 = arith.constant dense<0.000000e+00> : vector<4x64xf32>
    %10 = tpu.matmul %7, %9, %cst_6 {dimension_numbers = #tpu.dot_dimension_numbers<[1], [0], [0], [1], [0, 0, 1, 1], [], []>} : vector<4x256xbf16>, vector<256x64xbf16>, vector<4x64xf32> -> vector<4x64xf32>
    %c0_7 = arith.constant 0 : index
    %c0_8 = arith.constant 0 : index
    %c0_9 = arith.constant 0 : index
    %11 = vector.load %arg2[%c0_7, %c0_8, %c0_9] : memref<9x32x4xbf16, #tpu.memory_space<vmem>>, vector<1x32x4xbf16>
    %12 = vector.shape_cast %11 : vector<1x32x4xbf16> to vector<32x4xbf16>
    %13 = arith.truncf %10 : vector<4x64xf32> to vector<4x64xbf16>
    %cst_10 = arith.constant dense<0.000000e+00> : vector<32x64xf32>
    %14 = tpu.matmul %12, %13, %cst_10 {dimension_numbers = #tpu.dot_dimension_numbers<[1], [0], [0], [1], [0, 0, 1, 1], [], []>} : vector<32x4xbf16>, vector<4x64xbf16>, vector<32x64xf32> -> vector<32x64xf32>
    %c1 = arith.constant 1 : index
    %c0_11 = arith.constant 0 : index
    %c0_12 = arith.constant 0 : index
    %15 = vector.load %arg4[%c1, %c0_11, %c0_12] : memref<9x256x64xbf16, #tpu.memory_space<vmem>>, vector<1x256x64xbf16>
    %16 = vector.shape_cast %15 : vector<1x256x64xbf16> to vector<256x64xbf16>
    %cst_13 = arith.constant dense<0.000000e+00> : vector<4x64xf32>
    %17 = tpu.matmul %7, %16, %cst_13 {dimension_numbers = #tpu.dot_dimension_numbers<[1], [0], [0], [1], [0, 0, 1, 1], [], []>} : vector<4x256xbf16>, vector<256x64xbf16>, vector<4x64xf32> -> vector<4x64xf32>
    %c1_14 = arith.constant 1 : index
    %c0_15 = arith.constant 0 : index
    %c0_16 = arith.constant 0 : index
    %18 = vector.load %arg2[%c1_14, %c0_15, %c0_16] : memref<9x32x4xbf16, #tpu.memory_space<vmem>>, vector<1x32x4xbf16>
    %19 = vector.shape_cast %18 : vector<1x32x4xbf16> to vector<32x4xbf16>
    %20 = arith.truncf %17 : vector<4x64xf32> to vector<4x64xbf16>
    %cst_17 = arith.constant dense<0.000000e+00> : vector<32x64xf32>
    %21 = tpu.matmul %19, %20, %cst_17 {dimension_numbers = #tpu.dot_dimension_numbers<[1], [0], [0], [1], [0, 0, 1, 1], [], []>} : vector<32x4xbf16>, vector<4x64xbf16>, vector<32x64xf32> -> vector<32x64xf32>
    %22 = arith.addf %14, %21 : vector<32x64xf32>
    %c2 = arith.constant 2 : index
    %c0_18 = arith.constant 0 : index
    %c0_19 = arith.constant 0 : index
    %23 = vector.load %arg4[%c2, %c0_18, %c0_19] : memref<9x256x64xbf16, #tpu.memory_space<vmem>>, vector<1x256x64xbf16>
    %24 = vector.shape_cast %23 : vector<1x256x64xbf16> to vector<256x64xbf16>
    %cst_20 = arith.constant dense<0.000000e+00> : vector<4x64xf32>
    %25 = tpu.matmul %7, %24, %cst_20 {dimension_numbers = #tpu.dot_dimension_numbers<[1], [0], [0], [1], [0, 0, 1, 1], [], []>} : vector<4x256xbf16>, vector<256x64xbf16>, vector<4x64xf32> -> vector<4x64xf32>
    %c2_21 = arith.constant 2 : index
    %c0_22 = arith.constant 0 : index
    %c0_23 = arith.constant 0 : index
    %26 = vector.load %arg2[%c2_21, %c0_22, %c0_23] : memref<9x32x4xbf16, #tpu.memory_space<vmem>>, vector<1x32x4xbf16>
    %27 = vector.shape_cast %26 : vector<1x32x4xbf16> to vector<32x4xbf16>
    %28 = arith.truncf %25 : vector<4x64xf32> to vector<4x64xbf16>
    %cst_24 = arith.constant dense<0.000000e+00> : vector<32x64xf32>
    %29 = tpu.matmul %27, %28, %cst_24 {dimension_numbers = #tpu.dot_dimension_numbers<[1], [0], [0], [1], [0, 0, 1, 1], [], []>} : vector<32x4xbf16>, vector<4x64xbf16>, vector<32x64xf32> -> vector<32x64xf32>
    %30 = arith.addf %22, %29 : vector<32x64xf32>
    %c3 = arith.constant 3 : index
    %c0_25 = arith.constant 0 : index
    %c0_26 = arith.constant 0 : index
    %31 = vector.load %arg4[%c3, %c0_25, %c0_26] : memref<9x256x64xbf16, #tpu.memory_space<vmem>>, vector<1x256x64xbf16>
    %32 = vector.shape_cast %31 : vector<1x256x64xbf16> to vector<256x64xbf16>
    %cst_27 = arith.constant dense<0.000000e+00> : vector<4x64xf32>
    %33 = tpu.matmul %7, %32, %cst_27 {dimension_numbers = #tpu.dot_dimension_numbers<[1], [0], [0], [1], [0, 0, 1, 1], [], []>} : vector<4x256xbf16>, vector<256x64xbf16>, vector<4x64xf32> -> vector<4x64xf32>
    %c3_28 = arith.constant 3 : index
    %c0_29 = arith.constant 0 : index
    %c0_30 = arith.constant 0 : index
    %34 = vector.load %arg2[%c3_28, %c0_29, %c0_30] : memref<9x32x4xbf16, #tpu.memory_space<vmem>>, vector<1x32x4xbf16>
    %35 = vector.shape_cast %34 : vector<1x32x4xbf16> to vector<32x4xbf16>
    %36 = arith.truncf %33 : vector<4x64xf32> to vector<4x64xbf16>
    %cst_31 = arith.constant dense<0.000000e+00> : vector<32x64xf32>
    %37 = tpu.matmul %35, %36, %cst_31 {dimension_numbers = #tpu.dot_dimension_numbers<[1], [0], [0], [1], [0, 0, 1, 1], [], []>} : vector<32x4xbf16>, vector<4x64xbf16>, vector<32x64xf32> -> vector<32x64xf32>
    %38 = arith.addf %30, %37 : vector<32x64xf32>
    %c4 = arith.constant 4 : index
    %c0_32 = arith.constant 0 : index
    %c0_33 = arith.constant 0 : index
    %39 = vector.load %arg4[%c4, %c0_32, %c0_33] : memref<9x256x64xbf16, #tpu.memory_space<vmem>>, vector<1x256x64xbf16>
    %40 = vector.shape_cast %39 : vector<1x256x64xbf16> to vector<256x64xbf16>
    %cst_34 = arith.constant dense<0.000000e+00> : vector<4x64xf32>
    %41 = tpu.matmul %7, %40, %cst_34 {dimension_numbers = #tpu.dot_dimension_numbers<[1], [0], [0], [1], [0, 0, 1, 1], [], []>} : vector<4x256xbf16>, vector<256x64xbf16>, vector<4x64xf32> -> vector<4x64xf32>
    %c4_35 = arith.constant 4 : index
    %c0_36 = arith.constant 0 : index
    %c0_37 = arith.constant 0 : index
    %42 = vector.load %arg2[%c4_35, %c0_36, %c0_37] : memref<9x32x4xbf16, #tpu.memory_space<vmem>>, vector<1x32x4xbf16>
    %43 = vector.shape_cast %42 : vector<1x32x4xbf16> to vector<32x4xbf16>
    %44 = arith.truncf %41 : vector<4x64xf32> to vector<4x64xbf16>
    %cst_38 = arith.constant dense<0.000000e+00> : vector<32x64xf32>
    %45 = tpu.matmul %43, %44, %cst_38 {dimension_numbers = #tpu.dot_dimension_numbers<[1], [0], [0], [1], [0, 0, 1, 1], [], []>} : vector<32x4xbf16>, vector<4x64xbf16>, vector<32x64xf32> -> vector<32x64xf32>
    %46 = arith.addf %38, %45 : vector<32x64xf32>
    %c5 = arith.constant 5 : index
    %c0_39 = arith.constant 0 : index
    %c0_40 = arith.constant 0 : index
    %47 = vector.load %arg4[%c5, %c0_39, %c0_40] : memref<9x256x64xbf16, #tpu.memory_space<vmem>>, vector<1x256x64xbf16>
    %48 = vector.shape_cast %47 : vector<1x256x64xbf16> to vector<256x64xbf16>
    %cst_41 = arith.constant dense<0.000000e+00> : vector<4x64xf32>
    %49 = tpu.matmul %7, %48, %cst_41 {dimension_numbers = #tpu.dot_dimension_numbers<[1], [0], [0], [1], [0, 0, 1, 1], [], []>} : vector<4x256xbf16>, vector<256x64xbf16>, vector<4x64xf32> -> vector<4x64xf32>
    %c5_42 = arith.constant 5 : index
    %c0_43 = arith.constant 0 : index
    %c0_44 = arith.constant 0 : index
    %50 = vector.load %arg2[%c5_42, %c0_43, %c0_44] : memref<9x32x4xbf16, #tpu.memory_space<vmem>>, vector<1x32x4xbf16>
    %51 = vector.shape_cast %50 : vector<1x32x4xbf16> to vector<32x4xbf16>
    %52 = arith.truncf %49 : vector<4x64xf32> to vector<4x64xbf16>
    %cst_45 = arith.constant dense<0.000000e+00> : vector<32x64xf32>
    %53 = tpu.matmul %51, %52, %cst_45 {dimension_numbers = #tpu.dot_dimension_numbers<[1], [0], [0], [1], [0, 0, 1, 1], [], []>} : vector<32x4xbf16>, vector<4x64xbf16>, vector<32x64xf32> -> vector<32x64xf32>
    %54 = arith.addf %46, %53 : vector<32x64xf32>
    %c6 = arith.constant 6 : index
    %c0_46 = arith.constant 0 : index
    %c0_47 = arith.constant 0 : index
    %55 = vector.load %arg4[%c6, %c0_46, %c0_47] : memref<9x256x64xbf16, #tpu.memory_space<vmem>>, vector<1x256x64xbf16>
    %56 = vector.shape_cast %55 : vector<1x256x64xbf16> to vector<256x64xbf16>
    %cst_48 = arith.constant dense<0.000000e+00> : vector<4x64xf32>
    %57 = tpu.matmul %7, %56, %cst_48 {dimension_numbers = #tpu.dot_dimension_numbers<[1], [0], [0], [1], [0, 0, 1, 1], [], []>} : vector<4x256xbf16>, vector<256x64xbf16>, vector<4x64xf32> -> vector<4x64xf32>
    %c6_49 = arith.constant 6 : index
    %c0_50 = arith.constant 0 : index
    %c0_51 = arith.constant 0 : index
    %58 = vector.load %arg2[%c6_49, %c0_50, %c0_51] : memref<9x32x4xbf16, #tpu.memory_space<vmem>>, vector<1x32x4xbf16>
    %59 = vector.shape_cast %58 : vector<1x32x4xbf16> to vector<32x4xbf16>
    %60 = arith.truncf %57 : vector<4x64xf32> to vector<4x64xbf16>
    %cst_52 = arith.constant dense<0.000000e+00> : vector<32x64xf32>
    %61 = tpu.matmul %59, %60, %cst_52 {dimension_numbers = #tpu.dot_dimension_numbers<[1], [0], [0], [1], [0, 0, 1, 1], [], []>} : vector<32x4xbf16>, vector<4x64xbf16>, vector<32x64xf32> -> vector<32x64xf32>
    %62 = arith.addf %54, %61 : vector<32x64xf32>
    %c7 = arith.constant 7 : index
    %c0_53 = arith.constant 0 : index
    %c0_54 = arith.constant 0 : index
    %63 = vector.load %arg4[%c7, %c0_53, %c0_54] : memref<9x256x64xbf16, #tpu.memory_space<vmem>>, vector<1x256x64xbf16>
    %64 = vector.shape_cast %63 : vector<1x256x64xbf16> to vector<256x64xbf16>
    %cst_55 = arith.constant dense<0.000000e+00> : vector<4x64xf32>
    %65 = tpu.matmul %7, %64, %cst_55 {dimension_numbers = #tpu.dot_dimension_numbers<[1], [0], [0], [1], [0, 0, 1, 1], [], []>} : vector<4x256xbf16>, vector<256x64xbf16>, vector<4x64xf32> -> vector<4x64xf32>
    %c7_56 = arith.constant 7 : index
    %c0_57 = arith.constant 0 : index
    %c0_58 = arith.constant 0 : index
    %66 = vector.load %arg2[%c7_56, %c0_57, %c0_58] : memref<9x32x4xbf16, #tpu.memory_space<vmem>>, vector<1x32x4xbf16>
    %67 = vector.shape_cast %66 : vector<1x32x4xbf16> to vector<32x4xbf16>
    %68 = arith.truncf %65 : vector<4x64xf32> to vector<4x64xbf16>
    %cst_59 = arith.constant dense<0.000000e+00> : vector<32x64xf32>
    %69 = tpu.matmul %67, %68, %cst_59 {dimension_numbers = #tpu.dot_dimension_numbers<[1], [0], [0], [1], [0, 0, 1, 1], [], []>} : vector<32x4xbf16>, vector<4x64xbf16>, vector<32x64xf32> -> vector<32x64xf32>
    %70 = arith.addf %62, %69 : vector<32x64xf32>
    %c8 = arith.constant 8 : index
    %c0_60 = arith.constant 0 : index
    %c0_61 = arith.constant 0 : index
    %71 = vector.load %arg4[%c8, %c0_60, %c0_61] : memref<9x256x64xbf16, #tpu.memory_space<vmem>>, vector<1x256x64xbf16>
    %72 = vector.shape_cast %71 : vector<1x256x64xbf16> to vector<256x64xbf16>
    %cst_62 = arith.constant dense<0.000000e+00> : vector<4x64xf32>
    %73 = tpu.matmul %7, %72, %cst_62 {dimension_numbers = #tpu.dot_dimension_numbers<[1], [0], [0], [1], [0, 0, 1, 1], [], []>} : vector<4x256xbf16>, vector<256x64xbf16>, vector<4x64xf32> -> vector<4x64xf32>
    %c8_63 = arith.constant 8 : index
    %c0_64 = arith.constant 0 : index
    %c0_65 = arith.constant 0 : index
    %74 = vector.load %arg2[%c8_63, %c0_64, %c0_65] : memref<9x32x4xbf16, #tpu.memory_space<vmem>>, vector<1x32x4xbf16>
    %75 = vector.shape_cast %74 : vector<1x32x4xbf16> to vector<32x4xbf16>
    %76 = arith.truncf %73 : vector<4x64xf32> to vector<4x64xbf16>
    %cst_66 = arith.constant dense<0.000000e+00> : vector<32x64xf32>
    %77 = tpu.matmul %75, %76, %cst_66 {dimension_numbers = #tpu.dot_dimension_numbers<[1], [0], [0], [1], [0, 0, 1, 1], [], []>} : vector<32x4xbf16>, vector<4x64xbf16>, vector<32x64xf32> -> vector<32x64xf32>
    %78 = arith.addf %70, %77 : vector<32x64xf32>
    %c0_67 = arith.constant 0 : index
    %c0_68 = arith.constant 0 : index
    %79 = vector.load %arg3[%c0_67, %c0_68] : memref<32x1xf32, #tpu.memory_space<vmem>>, vector<32x1xf32>
    %80 = vector.broadcast %79 : vector<32x1xf32> to vector<32x64xf32>
    %81 = arith.addf %78, %80 : vector<32x64xf32>
    %cst_69 = arith.constant 0.000000e+00 : f32
    %82 = vector.broadcast %cst_69 : f32 to vector<32x64xf32>
    %83 = arith.cmpf oge, %81, %82 : vector<32x64xf32>
    %cst_70 = arith.constant 2.000000e-01 : f32
    %84 = vector.broadcast %cst_70 : f32 to vector<32x64xf32>
    %85 = arith.mulf %84, %81 : vector<32x64xf32>
    %86 = arith.select %83, %81, %85 : vector<32x64xi1>, vector<32x64xf32>
    %87 = arith.truncf %86 : vector<32x64xf32> to vector<32x64xbf16>
    %c0_71 = arith.constant 0 : index
    %c0_72 = arith.constant 0 : index
    %c0_73 = arith.constant 0 : index
    %88 = vector.load %arg7[%c0_71, %c0_72, %c0_73] : memref<9x64x16xbf16, #tpu.memory_space<vmem>>, vector<1x64x16xbf16>
    %89 = vector.shape_cast %88 : vector<1x64x16xbf16> to vector<64x16xbf16>
    %cst_74 = arith.constant dense<0.000000e+00> : vector<32x16xf32>
    %90 = tpu.matmul %87, %89, %cst_74 {dimension_numbers = #tpu.dot_dimension_numbers<[1], [0], [0], [1], [0, 0, 1, 1], [], []>} : vector<32x64xbf16>, vector<64x16xbf16>, vector<32x16xf32> -> vector<32x16xf32>
    %c0_75 = arith.constant 0 : index
    %c0_76 = arith.constant 0 : index
    %c0_77 = arith.constant 0 : index
    %91 = vector.load %arg5[%c0_75, %c0_76, %c0_77] : memref<9x64x32xbf16, #tpu.memory_space<vmem>>, vector<1x64x32xbf16>
    %92 = vector.shape_cast %91 : vector<1x64x32xbf16> to vector<64x32xbf16>
    %93 = arith.truncf %90 : vector<32x16xf32> to vector<32x16xbf16>
    %cst_78 = arith.constant dense<0.000000e+00> : vector<64x16xf32>
    %94 = tpu.matmul %92, %93, %cst_78 {dimension_numbers = #tpu.dot_dimension_numbers<[1], [0], [0], [1], [0, 0, 1, 1], [], []>} : vector<64x32xbf16>, vector<32x16xbf16>, vector<64x16xf32> -> vector<64x16xf32>
    %c1_79 = arith.constant 1 : index
    %c0_80 = arith.constant 0 : index
    %c0_81 = arith.constant 0 : index
    %95 = vector.load %arg7[%c1_79, %c0_80, %c0_81] : memref<9x64x16xbf16, #tpu.memory_space<vmem>>, vector<1x64x16xbf16>
    %96 = vector.shape_cast %95 : vector<1x64x16xbf16> to vector<64x16xbf16>
    %cst_82 = arith.constant dense<0.000000e+00> : vector<32x16xf32>
    %97 = tpu.matmul %87, %96, %cst_82 {dimension_numbers = #tpu.dot_dimension_numbers<[1], [0], [0], [1], [0, 0, 1, 1], [], []>} : vector<32x64xbf16>, vector<64x16xbf16>, vector<32x16xf32> -> vector<32x16xf32>
    %c1_83 = arith.constant 1 : index
    %c0_84 = arith.constant 0 : index
    %c0_85 = arith.constant 0 : index
    %98 = vector.load %arg5[%c1_83, %c0_84, %c0_85] : memref<9x64x32xbf16, #tpu.memory_space<vmem>>, vector<1x64x32xbf16>
    %99 = vector.shape_cast %98 : vector<1x64x32xbf16> to vector<64x32xbf16>
    %100 = arith.truncf %97 : vector<32x16xf32> to vector<32x16xbf16>
    %cst_86 = arith.constant dense<0.000000e+00> : vector<64x16xf32>
    %101 = tpu.matmul %99, %100, %cst_86 {dimension_numbers = #tpu.dot_dimension_numbers<[1], [0], [0], [1], [0, 0, 1, 1], [], []>} : vector<64x32xbf16>, vector<32x16xbf16>, vector<64x16xf32> -> vector<64x16xf32>
    %102 = arith.addf %94, %101 : vector<64x16xf32>
    %c2_87 = arith.constant 2 : index
    %c0_88 = arith.constant 0 : index
    %c0_89 = arith.constant 0 : index
    %103 = vector.load %arg7[%c2_87, %c0_88, %c0_89] : memref<9x64x16xbf16, #tpu.memory_space<vmem>>, vector<1x64x16xbf16>
    %104 = vector.shape_cast %103 : vector<1x64x16xbf16> to vector<64x16xbf16>
    %cst_90 = arith.constant dense<0.000000e+00> : vector<32x16xf32>
    %105 = tpu.matmul %87, %104, %cst_90 {dimension_numbers = #tpu.dot_dimension_numbers<[1], [0], [0], [1], [0, 0, 1, 1], [], []>} : vector<32x64xbf16>, vector<64x16xbf16>, vector<32x16xf32> -> vector<32x16xf32>
    %c2_91 = arith.constant 2 : index
    %c0_92 = arith.constant 0 : index
    %c0_93 = arith.constant 0 : index
    %106 = vector.load %arg5[%c2_91, %c0_92, %c0_93] : memref<9x64x32xbf16, #tpu.memory_space<vmem>>, vector<1x64x32xbf16>
    %107 = vector.shape_cast %106 : vector<1x64x32xbf16> to vector<64x32xbf16>
    %108 = arith.truncf %105 : vector<32x16xf32> to vector<32x16xbf16>
    %cst_94 = arith.constant dense<0.000000e+00> : vector<64x16xf32>
    %109 = tpu.matmul %107, %108, %cst_94 {dimension_numbers = #tpu.dot_dimension_numbers<[1], [0], [0], [1], [0, 0, 1, 1], [], []>} : vector<64x32xbf16>, vector<32x16xbf16>, vector<64x16xf32> -> vector<64x16xf32>
    %110 = arith.addf %102, %109 : vector<64x16xf32>
    %c3_95 = arith.constant 3 : index
    %c0_96 = arith.constant 0 : index
    %c0_97 = arith.constant 0 : index
    %111 = vector.load %arg7[%c3_95, %c0_96, %c0_97] : memref<9x64x16xbf16, #tpu.memory_space<vmem>>, vector<1x64x16xbf16>
    %112 = vector.shape_cast %111 : vector<1x64x16xbf16> to vector<64x16xbf16>
    %cst_98 = arith.constant dense<0.000000e+00> : vector<32x16xf32>
    %113 = tpu.matmul %87, %112, %cst_98 {dimension_numbers = #tpu.dot_dimension_numbers<[1], [0], [0], [1], [0, 0, 1, 1], [], []>} : vector<32x64xbf16>, vector<64x16xbf16>, vector<32x16xf32> -> vector<32x16xf32>
    %c3_99 = arith.constant 3 : index
    %c0_100 = arith.constant 0 : index
    %c0_101 = arith.constant 0 : index
    %114 = vector.load %arg5[%c3_99, %c0_100, %c0_101] : memref<9x64x32xbf16, #tpu.memory_space<vmem>>, vector<1x64x32xbf16>
    %115 = vector.shape_cast %114 : vector<1x64x32xbf16> to vector<64x32xbf16>
    %116 = arith.truncf %113 : vector<32x16xf32> to vector<32x16xbf16>
    %cst_102 = arith.constant dense<0.000000e+00> : vector<64x16xf32>
    %117 = tpu.matmul %115, %116, %cst_102 {dimension_numbers = #tpu.dot_dimension_numbers<[1], [0], [0], [1], [0, 0, 1, 1], [], []>} : vector<64x32xbf16>, vector<32x16xbf16>, vector<64x16xf32> -> vector<64x16xf32>
    %118 = arith.addf %110, %117 : vector<64x16xf32>
    %c4_103 = arith.constant 4 : index
    %c0_104 = arith.constant 0 : index
    %c0_105 = arith.constant 0 : index
    %119 = vector.load %arg7[%c4_103, %c0_104, %c0_105] : memref<9x64x16xbf16, #tpu.memory_space<vmem>>, vector<1x64x16xbf16>
    %120 = vector.shape_cast %119 : vector<1x64x16xbf16> to vector<64x16xbf16>
    %cst_106 = arith.constant dense<0.000000e+00> : vector<32x16xf32>
    %121 = tpu.matmul %87, %120, %cst_106 {dimension_numbers = #tpu.dot_dimension_numbers<[1], [0], [0], [1], [0, 0, 1, 1], [], []>} : vector<32x64xbf16>, vector<64x16xbf16>, vector<32x16xf32> -> vector<32x16xf32>
    %c4_107 = arith.constant 4 : index
    %c0_108 = arith.constant 0 : index
    %c0_109 = arith.constant 0 : index
    %122 = vector.load %arg5[%c4_107, %c0_108, %c0_109] : memref<9x64x32xbf16, #tpu.memory_space<vmem>>, vector<1x64x32xbf16>
    %123 = vector.shape_cast %122 : vector<1x64x32xbf16> to vector<64x32xbf16>
    %124 = arith.truncf %121 : vector<32x16xf32> to vector<32x16xbf16>
    %cst_110 = arith.constant dense<0.000000e+00> : vector<64x16xf32>
    %125 = tpu.matmul %123, %124, %cst_110 {dimension_numbers = #tpu.dot_dimension_numbers<[1], [0], [0], [1], [0, 0, 1, 1], [], []>} : vector<64x32xbf16>, vector<32x16xbf16>, vector<64x16xf32> -> vector<64x16xf32>
    %126 = arith.addf %118, %125 : vector<64x16xf32>
    %c5_111 = arith.constant 5 : index
    %c0_112 = arith.constant 0 : index
    %c0_113 = arith.constant 0 : index
    %127 = vector.load %arg7[%c5_111, %c0_112, %c0_113] : memref<9x64x16xbf16, #tpu.memory_space<vmem>>, vector<1x64x16xbf16>
    %128 = vector.shape_cast %127 : vector<1x64x16xbf16> to vector<64x16xbf16>
    %cst_114 = arith.constant dense<0.000000e+00> : vector<32x16xf32>
    %129 = tpu.matmul %87, %128, %cst_114 {dimension_numbers = #tpu.dot_dimension_numbers<[1], [0], [0], [1], [0, 0, 1, 1], [], []>} : vector<32x64xbf16>, vector<64x16xbf16>, vector<32x16xf32> -> vector<32x16xf32>
    %c5_115 = arith.constant 5 : index
    %c0_116 = arith.constant 0 : index
    %c0_117 = arith.constant 0 : index
    %130 = vector.load %arg5[%c5_115, %c0_116, %c0_117] : memref<9x64x32xbf16, #tpu.memory_space<vmem>>, vector<1x64x32xbf16>
    %131 = vector.shape_cast %130 : vector<1x64x32xbf16> to vector<64x32xbf16>
    %132 = arith.truncf %129 : vector<32x16xf32> to vector<32x16xbf16>
    %cst_118 = arith.constant dense<0.000000e+00> : vector<64x16xf32>
    %133 = tpu.matmul %131, %132, %cst_118 {dimension_numbers = #tpu.dot_dimension_numbers<[1], [0], [0], [1], [0, 0, 1, 1], [], []>} : vector<64x32xbf16>, vector<32x16xbf16>, vector<64x16xf32> -> vector<64x16xf32>
    %134 = arith.addf %126, %133 : vector<64x16xf32>
    %c6_119 = arith.constant 6 : index
    %c0_120 = arith.constant 0 : index
    %c0_121 = arith.constant 0 : index
    %135 = vector.load %arg7[%c6_119, %c0_120, %c0_121] : memref<9x64x16xbf16, #tpu.memory_space<vmem>>, vector<1x64x16xbf16>
    %136 = vector.shape_cast %135 : vector<1x64x16xbf16> to vector<64x16xbf16>
    %cst_122 = arith.constant dense<0.000000e+00> : vector<32x16xf32>
    %137 = tpu.matmul %87, %136, %cst_122 {dimension_numbers = #tpu.dot_dimension_numbers<[1], [0], [0], [1], [0, 0, 1, 1], [], []>} : vector<32x64xbf16>, vector<64x16xbf16>, vector<32x16xf32> -> vector<32x16xf32>
    %c6_123 = arith.constant 6 : index
    %c0_124 = arith.constant 0 : index
    %c0_125 = arith.constant 0 : index
    %138 = vector.load %arg5[%c6_123, %c0_124, %c0_125] : memref<9x64x32xbf16, #tpu.memory_space<vmem>>, vector<1x64x32xbf16>
    %139 = vector.shape_cast %138 : vector<1x64x32xbf16> to vector<64x32xbf16>
    %140 = arith.truncf %137 : vector<32x16xf32> to vector<32x16xbf16>
    %cst_126 = arith.constant dense<0.000000e+00> : vector<64x16xf32>
    %141 = tpu.matmul %139, %140, %cst_126 {dimension_numbers = #tpu.dot_dimension_numbers<[1], [0], [0], [1], [0, 0, 1, 1], [], []>} : vector<64x32xbf16>, vector<32x16xbf16>, vector<64x16xf32> -> vector<64x16xf32>
    %142 = arith.addf %134, %141 : vector<64x16xf32>
    %c7_127 = arith.constant 7 : index
    %c0_128 = arith.constant 0 : index
    %c0_129 = arith.constant 0 : index
    %143 = vector.load %arg7[%c7_127, %c0_128, %c0_129] : memref<9x64x16xbf16, #tpu.memory_space<vmem>>, vector<1x64x16xbf16>
    %144 = vector.shape_cast %143 : vector<1x64x16xbf16> to vector<64x16xbf16>
    %cst_130 = arith.constant dense<0.000000e+00> : vector<32x16xf32>
    %145 = tpu.matmul %87, %144, %cst_130 {dimension_numbers = #tpu.dot_dimension_numbers<[1], [0], [0], [1], [0, 0, 1, 1], [], []>} : vector<32x64xbf16>, vector<64x16xbf16>, vector<32x16xf32> -> vector<32x16xf32>
    %c7_131 = arith.constant 7 : index
    %c0_132 = arith.constant 0 : index
    %c0_133 = arith.constant 0 : index
    %146 = vector.load %arg5[%c7_131, %c0_132, %c0_133] : memref<9x64x32xbf16, #tpu.memory_space<vmem>>, vector<1x64x32xbf16>
    %147 = vector.shape_cast %146 : vector<1x64x32xbf16> to vector<64x32xbf16>
    %148 = arith.truncf %145 : vector<32x16xf32> to vector<32x16xbf16>
    %cst_134 = arith.constant dense<0.000000e+00> : vector<64x16xf32>
    %149 = tpu.matmul %147, %148, %cst_134 {dimension_numbers = #tpu.dot_dimension_numbers<[1], [0], [0], [1], [0, 0, 1, 1], [], []>} : vector<64x32xbf16>, vector<32x16xbf16>, vector<64x16xf32> -> vector<64x16xf32>
    %150 = arith.addf %142, %149 : vector<64x16xf32>
    %c8_135 = arith.constant 8 : index
    %c0_136 = arith.constant 0 : index
    %c0_137 = arith.constant 0 : index
    %151 = vector.load %arg7[%c8_135, %c0_136, %c0_137] : memref<9x64x16xbf16, #tpu.memory_space<vmem>>, vector<1x64x16xbf16>
    %152 = vector.shape_cast %151 : vector<1x64x16xbf16> to vector<64x16xbf16>
    %cst_138 = arith.constant dense<0.000000e+00> : vector<32x16xf32>
    %153 = tpu.matmul %87, %152, %cst_138 {dimension_numbers = #tpu.dot_dimension_numbers<[1], [0], [0], [1], [0, 0, 1, 1], [], []>} : vector<32x64xbf16>, vector<64x16xbf16>, vector<32x16xf32> -> vector<32x16xf32>
    %c8_139 = arith.constant 8 : index
    %c0_140 = arith.constant 0 : index
    %c0_141 = arith.constant 0 : index
    %154 = vector.load %arg5[%c8_139, %c0_140, %c0_141] : memref<9x64x32xbf16, #tpu.memory_space<vmem>>, vector<1x64x32xbf16>
    %155 = vector.shape_cast %154 : vector<1x64x32xbf16> to vector<64x32xbf16>
    %156 = arith.truncf %153 : vector<32x16xf32> to vector<32x16xbf16>
    %cst_142 = arith.constant dense<0.000000e+00> : vector<64x16xf32>
    %157 = tpu.matmul %155, %156, %cst_142 {dimension_numbers = #tpu.dot_dimension_numbers<[1], [0], [0], [1], [0, 0, 1, 1], [], []>} : vector<64x32xbf16>, vector<32x16xbf16>, vector<64x16xf32> -> vector<64x16xf32>
    %158 = arith.addf %150, %157 : vector<64x16xf32>
    %c0_143 = arith.constant 0 : index
    %c0_144 = arith.constant 0 : index
    %159 = vector.load %arg6[%c0_143, %c0_144] : memref<64x1xf32, #tpu.memory_space<vmem>>, vector<64x1xf32>
    %160 = vector.broadcast %159 : vector<64x1xf32> to vector<64x16xf32>
    %161 = arith.addf %158, %160 : vector<64x16xf32>
    %cst_145 = arith.constant 0.000000e+00 : f32
    %162 = vector.broadcast %cst_145 : f32 to vector<64x16xf32>
    %163 = arith.maximumf %161, %162 : vector<64x16xf32>
    %164 = arith.truncf %163 : vector<64x16xf32> to vector<64x16xbf16>
    %c0_146 = arith.constant 0 : index
    %c0_147 = arith.constant 0 : index
    %c0_148 = arith.constant 0 : index
    %165 = vector.load %arg10[%c0_146, %c0_147, %c0_148] : memref<9x16x64xbf16, #tpu.memory_space<vmem>>, vector<1x16x64xbf16>
    %166 = vector.shape_cast %165 : vector<1x16x64xbf16> to vector<16x64xbf16>
    %cst_149 = arith.constant dense<0.000000e+00> : vector<64x64xf32>
    %167 = tpu.matmul %164, %166, %cst_149 {dimension_numbers = #tpu.dot_dimension_numbers<[1], [0], [0], [1], [0, 0, 1, 1], [], []>} : vector<64x16xbf16>, vector<16x64xbf16>, vector<64x64xf32> -> vector<64x64xf32>
    %c0_150 = arith.constant 0 : index
    %c0_151 = arith.constant 0 : index
    %c0_152 = arith.constant 0 : index
    %168 = vector.load %arg8[%c0_150, %c0_151, %c0_152] : memref<9x32x64xbf16, #tpu.memory_space<vmem>>, vector<1x32x64xbf16>
    %169 = vector.shape_cast %168 : vector<1x32x64xbf16> to vector<32x64xbf16>
    %170 = arith.truncf %167 : vector<64x64xf32> to vector<64x64xbf16>
    %cst_153 = arith.constant dense<0.000000e+00> : vector<32x64xf32>
    %171 = tpu.matmul %169, %170, %cst_153 {dimension_numbers = #tpu.dot_dimension_numbers<[1], [0], [0], [1], [0, 0, 1, 1], [], []>} : vector<32x64xbf16>, vector<64x64xbf16>, vector<32x64xf32> -> vector<32x64xf32>
    %c1_154 = arith.constant 1 : index
    %c0_155 = arith.constant 0 : index
    %c0_156 = arith.constant 0 : index
    %172 = vector.load %arg10[%c1_154, %c0_155, %c0_156] : memref<9x16x64xbf16, #tpu.memory_space<vmem>>, vector<1x16x64xbf16>
    %173 = vector.shape_cast %172 : vector<1x16x64xbf16> to vector<16x64xbf16>
    %cst_157 = arith.constant dense<0.000000e+00> : vector<64x64xf32>
    %174 = tpu.matmul %164, %173, %cst_157 {dimension_numbers = #tpu.dot_dimension_numbers<[1], [0], [0], [1], [0, 0, 1, 1], [], []>} : vector<64x16xbf16>, vector<16x64xbf16>, vector<64x64xf32> -> vector<64x64xf32>
    %c1_158 = arith.constant 1 : index
    %c0_159 = arith.constant 0 : index
    %c0_160 = arith.constant 0 : index
    %175 = vector.load %arg8[%c1_158, %c0_159, %c0_160] : memref<9x32x64xbf16, #tpu.memory_space<vmem>>, vector<1x32x64xbf16>
    %176 = vector.shape_cast %175 : vector<1x32x64xbf16> to vector<32x64xbf16>
    %177 = arith.truncf %174 : vector<64x64xf32> to vector<64x64xbf16>
    %cst_161 = arith.constant dense<0.000000e+00> : vector<32x64xf32>
    %178 = tpu.matmul %176, %177, %cst_161 {dimension_numbers = #tpu.dot_dimension_numbers<[1], [0], [0], [1], [0, 0, 1, 1], [], []>} : vector<32x64xbf16>, vector<64x64xbf16>, vector<32x64xf32> -> vector<32x64xf32>
    %179 = arith.addf %171, %178 : vector<32x64xf32>
    %c2_162 = arith.constant 2 : index
    %c0_163 = arith.constant 0 : index
    %c0_164 = arith.constant 0 : index
    %180 = vector.load %arg10[%c2_162, %c0_163, %c0_164] : memref<9x16x64xbf16, #tpu.memory_space<vmem>>, vector<1x16x64xbf16>
    %181 = vector.shape_cast %180 : vector<1x16x64xbf16> to vector<16x64xbf16>
    %cst_165 = arith.constant dense<0.000000e+00> : vector<64x64xf32>
    %182 = tpu.matmul %164, %181, %cst_165 {dimension_numbers = #tpu.dot_dimension_numbers<[1], [0], [0], [1], [0, 0, 1, 1], [], []>} : vector<64x16xbf16>, vector<16x64xbf16>, vector<64x64xf32> -> vector<64x64xf32>
    %c2_166 = arith.constant 2 : index
    %c0_167 = arith.constant 0 : index
    %c0_168 = arith.constant 0 : index
    %183 = vector.load %arg8[%c2_166, %c0_167, %c0_168] : memref<9x32x64xbf16, #tpu.memory_space<vmem>>, vector<1x32x64xbf16>
    %184 = vector.shape_cast %183 : vector<1x32x64xbf16> to vector<32x64xbf16>
    %185 = arith.truncf %182 : vector<64x64xf32> to vector<64x64xbf16>
    %cst_169 = arith.constant dense<0.000000e+00> : vector<32x64xf32>
    %186 = tpu.matmul %184, %185, %cst_169 {dimension_numbers = #tpu.dot_dimension_numbers<[1], [0], [0], [1], [0, 0, 1, 1], [], []>} : vector<32x64xbf16>, vector<64x64xbf16>, vector<32x64xf32> -> vector<32x64xf32>
    %187 = arith.addf %179, %186 : vector<32x64xf32>
    %c3_170 = arith.constant 3 : index
    %c0_171 = arith.constant 0 : index
    %c0_172 = arith.constant 0 : index
    %188 = vector.load %arg10[%c3_170, %c0_171, %c0_172] : memref<9x16x64xbf16, #tpu.memory_space<vmem>>, vector<1x16x64xbf16>
    %189 = vector.shape_cast %188 : vector<1x16x64xbf16> to vector<16x64xbf16>
    %cst_173 = arith.constant dense<0.000000e+00> : vector<64x64xf32>
    %190 = tpu.matmul %164, %189, %cst_173 {dimension_numbers = #tpu.dot_dimension_numbers<[1], [0], [0], [1], [0, 0, 1, 1], [], []>} : vector<64x16xbf16>, vector<16x64xbf16>, vector<64x64xf32> -> vector<64x64xf32>
    %c3_174 = arith.constant 3 : index
    %c0_175 = arith.constant 0 : index
    %c0_176 = arith.constant 0 : index
    %191 = vector.load %arg8[%c3_174, %c0_175, %c0_176] : memref<9x32x64xbf16, #tpu.memory_space<vmem>>, vector<1x32x64xbf16>
    %192 = vector.shape_cast %191 : vector<1x32x64xbf16> to vector<32x64xbf16>
    %193 = arith.truncf %190 : vector<64x64xf32> to vector<64x64xbf16>
    %cst_177 = arith.constant dense<0.000000e+00> : vector<32x64xf32>
    %194 = tpu.matmul %192, %193, %cst_177 {dimension_numbers = #tpu.dot_dimension_numbers<[1], [0], [0], [1], [0, 0, 1, 1], [], []>} : vector<32x64xbf16>, vector<64x64xbf16>, vector<32x64xf32> -> vector<32x64xf32>
    %195 = arith.addf %187, %194 : vector<32x64xf32>
    %c4_178 = arith.constant 4 : index
    %c0_179 = arith.constant 0 : index
    %c0_180 = arith.constant 0 : index
    %196 = vector.load %arg10[%c4_178, %c0_179, %c0_180] : memref<9x16x64xbf16, #tpu.memory_space<vmem>>, vector<1x16x64xbf16>
    %197 = vector.shape_cast %196 : vector<1x16x64xbf16> to vector<16x64xbf16>
    %cst_181 = arith.constant dense<0.000000e+00> : vector<64x64xf32>
    %198 = tpu.matmul %164, %197, %cst_181 {dimension_numbers = #tpu.dot_dimension_numbers<[1], [0], [0], [1], [0, 0, 1, 1], [], []>} : vector<64x16xbf16>, vector<16x64xbf16>, vector<64x64xf32> -> vector<64x64xf32>
    %c4_182 = arith.constant 4 : index
    %c0_183 = arith.constant 0 : index
    %c0_184 = arith.constant 0 : index
    %199 = vector.load %arg8[%c4_182, %c0_183, %c0_184] : memref<9x32x64xbf16, #tpu.memory_space<vmem>>, vector<1x32x64xbf16>
    %200 = vector.shape_cast %199 : vector<1x32x64xbf16> to vector<32x64xbf16>
    %201 = arith.truncf %198 : vector<64x64xf32> to vector<64x64xbf16>
    %cst_185 = arith.constant dense<0.000000e+00> : vector<32x64xf32>
    %202 = tpu.matmul %200, %201, %cst_185 {dimension_numbers = #tpu.dot_dimension_numbers<[1], [0], [0], [1], [0, 0, 1, 1], [], []>} : vector<32x64xbf16>, vector<64x64xbf16>, vector<32x64xf32> -> vector<32x64xf32>
    %203 = arith.addf %195, %202 : vector<32x64xf32>
    %c5_186 = arith.constant 5 : index
    %c0_187 = arith.constant 0 : index
    %c0_188 = arith.constant 0 : index
    %204 = vector.load %arg10[%c5_186, %c0_187, %c0_188] : memref<9x16x64xbf16, #tpu.memory_space<vmem>>, vector<1x16x64xbf16>
    %205 = vector.shape_cast %204 : vector<1x16x64xbf16> to vector<16x64xbf16>
    %cst_189 = arith.constant dense<0.000000e+00> : vector<64x64xf32>
    %206 = tpu.matmul %164, %205, %cst_189 {dimension_numbers = #tpu.dot_dimension_numbers<[1], [0], [0], [1], [0, 0, 1, 1], [], []>} : vector<64x16xbf16>, vector<16x64xbf16>, vector<64x64xf32> -> vector<64x64xf32>
    %c5_190 = arith.constant 5 : index
    %c0_191 = arith.constant 0 : index
    %c0_192 = arith.constant 0 : index
    %207 = vector.load %arg8[%c5_190, %c0_191, %c0_192] : memref<9x32x64xbf16, #tpu.memory_space<vmem>>, vector<1x32x64xbf16>
    %208 = vector.shape_cast %207 : vector<1x32x64xbf16> to vector<32x64xbf16>
    %209 = arith.truncf %206 : vector<64x64xf32> to vector<64x64xbf16>
    %cst_193 = arith.constant dense<0.000000e+00> : vector<32x64xf32>
    %210 = tpu.matmul %208, %209, %cst_193 {dimension_numbers = #tpu.dot_dimension_numbers<[1], [0], [0], [1], [0, 0, 1, 1], [], []>} : vector<32x64xbf16>, vector<64x64xbf16>, vector<32x64xf32> -> vector<32x64xf32>
    %211 = arith.addf %203, %210 : vector<32x64xf32>
    %c6_194 = arith.constant 6 : index
    %c0_195 = arith.constant 0 : index
    %c0_196 = arith.constant 0 : index
    %212 = vector.load %arg10[%c6_194, %c0_195, %c0_196] : memref<9x16x64xbf16, #tpu.memory_space<vmem>>, vector<1x16x64xbf16>
    %213 = vector.shape_cast %212 : vector<1x16x64xbf16> to vector<16x64xbf16>
    %cst_197 = arith.constant dense<0.000000e+00> : vector<64x64xf32>
    %214 = tpu.matmul %164, %213, %cst_197 {dimension_numbers = #tpu.dot_dimension_numbers<[1], [0], [0], [1], [0, 0, 1, 1], [], []>} : vector<64x16xbf16>, vector<16x64xbf16>, vector<64x64xf32> -> vector<64x64xf32>
    %c6_198 = arith.constant 6 : index
    %c0_199 = arith.constant 0 : index
    %c0_200 = arith.constant 0 : index
    %215 = vector.load %arg8[%c6_198, %c0_199, %c0_200] : memref<9x32x64xbf16, #tpu.memory_space<vmem>>, vector<1x32x64xbf16>
    %216 = vector.shape_cast %215 : vector<1x32x64xbf16> to vector<32x64xbf16>
    %217 = arith.truncf %214 : vector<64x64xf32> to vector<64x64xbf16>
    %cst_201 = arith.constant dense<0.000000e+00> : vector<32x64xf32>
    %218 = tpu.matmul %216, %217, %cst_201 {dimension_numbers = #tpu.dot_dimension_numbers<[1], [0], [0], [1], [0, 0, 1, 1], [], []>} : vector<32x64xbf16>, vector<64x64xbf16>, vector<32x64xf32> -> vector<32x64xf32>
    %219 = arith.addf %211, %218 : vector<32x64xf32>
    %c7_202 = arith.constant 7 : index
    %c0_203 = arith.constant 0 : index
    %c0_204 = arith.constant 0 : index
    %220 = vector.load %arg10[%c7_202, %c0_203, %c0_204] : memref<9x16x64xbf16, #tpu.memory_space<vmem>>, vector<1x16x64xbf16>
    %221 = vector.shape_cast %220 : vector<1x16x64xbf16> to vector<16x64xbf16>
    %cst_205 = arith.constant dense<0.000000e+00> : vector<64x64xf32>
    %222 = tpu.matmul %164, %221, %cst_205 {dimension_numbers = #tpu.dot_dimension_numbers<[1], [0], [0], [1], [0, 0, 1, 1], [], []>} : vector<64x16xbf16>, vector<16x64xbf16>, vector<64x64xf32> -> vector<64x64xf32>
    %c7_206 = arith.constant 7 : index
    %c0_207 = arith.constant 0 : index
    %c0_208 = arith.constant 0 : index
    %223 = vector.load %arg8[%c7_206, %c0_207, %c0_208] : memref<9x32x64xbf16, #tpu.memory_space<vmem>>, vector<1x32x64xbf16>
    %224 = vector.shape_cast %223 : vector<1x32x64xbf16> to vector<32x64xbf16>
    %225 = arith.truncf %222 : vector<64x64xf32> to vector<64x64xbf16>
    %cst_209 = arith.constant dense<0.000000e+00> : vector<32x64xf32>
    %226 = tpu.matmul %224, %225, %cst_209 {dimension_numbers = #tpu.dot_dimension_numbers<[1], [0], [0], [1], [0, 0, 1, 1], [], []>} : vector<32x64xbf16>, vector<64x64xbf16>, vector<32x64xf32> -> vector<32x64xf32>
    %227 = arith.addf %219, %226 : vector<32x64xf32>
    %c8_210 = arith.constant 8 : index
    %c0_211 = arith.constant 0 : index
    %c0_212 = arith.constant 0 : index
    %228 = vector.load %arg10[%c8_210, %c0_211, %c0_212] : memref<9x16x64xbf16, #tpu.memory_space<vmem>>, vector<1x16x64xbf16>
    %229 = vector.shape_cast %228 : vector<1x16x64xbf16> to vector<16x64xbf16>
    %cst_213 = arith.constant dense<0.000000e+00> : vector<64x64xf32>
    %230 = tpu.matmul %164, %229, %cst_213 {dimension_numbers = #tpu.dot_dimension_numbers<[1], [0], [0], [1], [0, 0, 1, 1], [], []>} : vector<64x16xbf16>, vector<16x64xbf16>, vector<64x64xf32> -> vector<64x64xf32>
    %c8_214 = arith.constant 8 : index
    %c0_215 = arith.constant 0 : index
    %c0_216 = arith.constant 0 : index
    %231 = vector.load %arg8[%c8_214, %c0_215, %c0_216] : memref<9x32x64xbf16, #tpu.memory_space<vmem>>, vector<1x32x64xbf16>
    %232 = vector.shape_cast %231 : vector<1x32x64xbf16> to vector<32x64xbf16>
    %233 = arith.truncf %230 : vector<64x64xf32> to vector<64x64xbf16>
    %cst_217 = arith.constant dense<0.000000e+00> : vector<32x64xf32>
    %234 = tpu.matmul %232, %233, %cst_217 {dimension_numbers = #tpu.dot_dimension_numbers<[1], [0], [0], [1], [0, 0, 1, 1], [], []>} : vector<32x64xbf16>, vector<64x64xbf16>, vector<32x64xf32> -> vector<32x64xf32>
    %235 = arith.addf %227, %234 : vector<32x64xf32>
    %c0_218 = arith.constant 0 : index
    %c0_219 = arith.constant 0 : index
    %236 = vector.load %arg9[%c0_218, %c0_219] : memref<32x1xf32, #tpu.memory_space<vmem>>, vector<32x1xf32>
    %237 = vector.broadcast %236 : vector<32x1xf32> to vector<32x64xf32>
    %238 = arith.addf %235, %237 : vector<32x64xf32>
    %239 = tpu.concatenate %238, %81 in 0 : vector<32x64xf32>, vector<32x64xf32> -> vector<64x64xf32>
    %cst_220 = arith.constant 0.000000e+00 : f32
    %240 = vector.broadcast %cst_220 : f32 to vector<64x64xf32>
    %241 = arith.maximumf %239, %240 : vector<64x64xf32>
    %242 = arith.truncf %241 : vector<64x64xf32> to vector<64x64xbf16>
    %c0_221 = arith.constant 0 : index
    %c0_222 = arith.constant 0 : index
    %c0_223 = arith.constant 0 : index
    %243 = vector.load %arg13[%c0_221, %c0_222, %c0_223] : memref<9x64x256xbf16, #tpu.memory_space<vmem>>, vector<1x64x256xbf16>
    %244 = vector.shape_cast %243 : vector<1x64x256xbf16> to vector<64x256xbf16>
    %cst_224 = arith.constant dense<0.000000e+00> : vector<64x256xf32>
    %245 = tpu.matmul %242, %244, %cst_224 {dimension_numbers = #tpu.dot_dimension_numbers<[1], [0], [0], [1], [0, 0, 1, 1], [], []>} : vector<64x64xbf16>, vector<64x256xbf16>, vector<64x256xf32> -> vector<64x256xf32>
    %c0_225 = arith.constant 0 : index
    %c0_226 = arith.constant 0 : index
    %c0_227 = arith.constant 0 : index
    %246 = vector.load %arg11[%c0_225, %c0_226, %c0_227] : memref<9x32x64xbf16, #tpu.memory_space<vmem>>, vector<1x32x64xbf16>
    %247 = vector.shape_cast %246 : vector<1x32x64xbf16> to vector<32x64xbf16>
    %248 = arith.truncf %245 : vector<64x256xf32> to vector<64x256xbf16>
    %cst_228 = arith.constant dense<0.000000e+00> : vector<32x256xf32>
    %249 = tpu.matmul %247, %248, %cst_228 {dimension_numbers = #tpu.dot_dimension_numbers<[1], [0], [0], [1], [0, 0, 1, 1], [], []>} : vector<32x64xbf16>, vector<64x256xbf16>, vector<32x256xf32> -> vector<32x256xf32>
    %c1_229 = arith.constant 1 : index
    %c0_230 = arith.constant 0 : index
    %c0_231 = arith.constant 0 : index
    %250 = vector.load %arg13[%c1_229, %c0_230, %c0_231] : memref<9x64x256xbf16, #tpu.memory_space<vmem>>, vector<1x64x256xbf16>
    %251 = vector.shape_cast %250 : vector<1x64x256xbf16> to vector<64x256xbf16>
    %cst_232 = arith.constant dense<0.000000e+00> : vector<64x256xf32>
    %252 = tpu.matmul %242, %251, %cst_232 {dimension_numbers = #tpu.dot_dimension_numbers<[1], [0], [0], [1], [0, 0, 1, 1], [], []>} : vector<64x64xbf16>, vector<64x256xbf16>, vector<64x256xf32> -> vector<64x256xf32>
    %c1_233 = arith.constant 1 : index
    %c0_234 = arith.constant 0 : index
    %c0_235 = arith.constant 0 : index
    %253 = vector.load %arg11[%c1_233, %c0_234, %c0_235] : memref<9x32x64xbf16, #tpu.memory_space<vmem>>, vector<1x32x64xbf16>
    %254 = vector.shape_cast %253 : vector<1x32x64xbf16> to vector<32x64xbf16>
    %255 = arith.truncf %252 : vector<64x256xf32> to vector<64x256xbf16>
    %cst_236 = arith.constant dense<0.000000e+00> : vector<32x256xf32>
    %256 = tpu.matmul %254, %255, %cst_236 {dimension_numbers = #tpu.dot_dimension_numbers<[1], [0], [0], [1], [0, 0, 1, 1], [], []>} : vector<32x64xbf16>, vector<64x256xbf16>, vector<32x256xf32> -> vector<32x256xf32>
    %257 = arith.addf %249, %256 : vector<32x256xf32>
    %c2_237 = arith.constant 2 : index
    %c0_238 = arith.constant 0 : index
    %c0_239 = arith.constant 0 : index
    %258 = vector.load %arg13[%c2_237, %c0_238, %c0_239] : memref<9x64x256xbf16, #tpu.memory_space<vmem>>, vector<1x64x256xbf16>
    %259 = vector.shape_cast %258 : vector<1x64x256xbf16> to vector<64x256xbf16>
    %cst_240 = arith.constant dense<0.000000e+00> : vector<64x256xf32>
    %260 = tpu.matmul %242, %259, %cst_240 {dimension_numbers = #tpu.dot_dimension_numbers<[1], [0], [0], [1], [0, 0, 1, 1], [], []>} : vector<64x64xbf16>, vector<64x256xbf16>, vector<64x256xf32> -> vector<64x256xf32>
    %c2_241 = arith.constant 2 : index
    %c0_242 = arith.constant 0 : index
    %c0_243 = arith.constant 0 : index
    %261 = vector.load %arg11[%c2_241, %c0_242, %c0_243] : memref<9x32x64xbf16, #tpu.memory_space<vmem>>, vector<1x32x64xbf16>
    %262 = vector.shape_cast %261 : vector<1x32x64xbf16> to vector<32x64xbf16>
    %263 = arith.truncf %260 : vector<64x256xf32> to vector<64x256xbf16>
    %cst_244 = arith.constant dense<0.000000e+00> : vector<32x256xf32>
    %264 = tpu.matmul %262, %263, %cst_244 {dimension_numbers = #tpu.dot_dimension_numbers<[1], [0], [0], [1], [0, 0, 1, 1], [], []>} : vector<32x64xbf16>, vector<64x256xbf16>, vector<32x256xf32> -> vector<32x256xf32>
    %265 = arith.addf %257, %264 : vector<32x256xf32>
    %c3_245 = arith.constant 3 : index
    %c0_246 = arith.constant 0 : index
    %c0_247 = arith.constant 0 : index
    %266 = vector.load %arg13[%c3_245, %c0_246, %c0_247] : memref<9x64x256xbf16, #tpu.memory_space<vmem>>, vector<1x64x256xbf16>
    %267 = vector.shape_cast %266 : vector<1x64x256xbf16> to vector<64x256xbf16>
    %cst_248 = arith.constant dense<0.000000e+00> : vector<64x256xf32>
    %268 = tpu.matmul %242, %267, %cst_248 {dimension_numbers = #tpu.dot_dimension_numbers<[1], [0], [0], [1], [0, 0, 1, 1], [], []>} : vector<64x64xbf16>, vector<64x256xbf16>, vector<64x256xf32> -> vector<64x256xf32>
    %c3_249 = arith.constant 3 : index
    %c0_250 = arith.constant 0 : index
    %c0_251 = arith.constant 0 : index
    %269 = vector.load %arg11[%c3_249, %c0_250, %c0_251] : memref<9x32x64xbf16, #tpu.memory_space<vmem>>, vector<1x32x64xbf16>
    %270 = vector.shape_cast %269 : vector<1x32x64xbf16> to vector<32x64xbf16>
    %271 = arith.truncf %268 : vector<64x256xf32> to vector<64x256xbf16>
    %cst_252 = arith.constant dense<0.000000e+00> : vector<32x256xf32>
    %272 = tpu.matmul %270, %271, %cst_252 {dimension_numbers = #tpu.dot_dimension_numbers<[1], [0], [0], [1], [0, 0, 1, 1], [], []>} : vector<32x64xbf16>, vector<64x256xbf16>, vector<32x256xf32> -> vector<32x256xf32>
    %273 = arith.addf %265, %272 : vector<32x256xf32>
    %c4_253 = arith.constant 4 : index
    %c0_254 = arith.constant 0 : index
    %c0_255 = arith.constant 0 : index
    %274 = vector.load %arg13[%c4_253, %c0_254, %c0_255] : memref<9x64x256xbf16, #tpu.memory_space<vmem>>, vector<1x64x256xbf16>
    %275 = vector.shape_cast %274 : vector<1x64x256xbf16> to vector<64x256xbf16>
    %cst_256 = arith.constant dense<0.000000e+00> : vector<64x256xf32>
    %276 = tpu.matmul %242, %275, %cst_256 {dimension_numbers = #tpu.dot_dimension_numbers<[1], [0], [0], [1], [0, 0, 1, 1], [], []>} : vector<64x64xbf16>, vector<64x256xbf16>, vector<64x256xf32> -> vector<64x256xf32>
    %c4_257 = arith.constant 4 : index
    %c0_258 = arith.constant 0 : index
    %c0_259 = arith.constant 0 : index
    %277 = vector.load %arg11[%c4_257, %c0_258, %c0_259] : memref<9x32x64xbf16, #tpu.memory_space<vmem>>, vector<1x32x64xbf16>
    %278 = vector.shape_cast %277 : vector<1x32x64xbf16> to vector<32x64xbf16>
    %279 = arith.truncf %276 : vector<64x256xf32> to vector<64x256xbf16>
    %cst_260 = arith.constant dense<0.000000e+00> : vector<32x256xf32>
    %280 = tpu.matmul %278, %279, %cst_260 {dimension_numbers = #tpu.dot_dimension_numbers<[1], [0], [0], [1], [0, 0, 1, 1], [], []>} : vector<32x64xbf16>, vector<64x256xbf16>, vector<32x256xf32> -> vector<32x256xf32>
    %281 = arith.addf %273, %280 : vector<32x256xf32>
    %c5_261 = arith.constant 5 : index
    %c0_262 = arith.constant 0 : index
    %c0_263 = arith.constant 0 : index
    %282 = vector.load %arg13[%c5_261, %c0_262, %c0_263] : memref<9x64x256xbf16, #tpu.memory_space<vmem>>, vector<1x64x256xbf16>
    %283 = vector.shape_cast %282 : vector<1x64x256xbf16> to vector<64x256xbf16>
    %cst_264 = arith.constant dense<0.000000e+00> : vector<64x256xf32>
    %284 = tpu.matmul %242, %283, %cst_264 {dimension_numbers = #tpu.dot_dimension_numbers<[1], [0], [0], [1], [0, 0, 1, 1], [], []>} : vector<64x64xbf16>, vector<64x256xbf16>, vector<64x256xf32> -> vector<64x256xf32>
    %c5_265 = arith.constant 5 : index
    %c0_266 = arith.constant 0 : index
    %c0_267 = arith.constant 0 : index
    %285 = vector.load %arg11[%c5_265, %c0_266, %c0_267] : memref<9x32x64xbf16, #tpu.memory_space<vmem>>, vector<1x32x64xbf16>
    %286 = vector.shape_cast %285 : vector<1x32x64xbf16> to vector<32x64xbf16>
    %287 = arith.truncf %284 : vector<64x256xf32> to vector<64x256xbf16>
    %cst_268 = arith.constant dense<0.000000e+00> : vector<32x256xf32>
    %288 = tpu.matmul %286, %287, %cst_268 {dimension_numbers = #tpu.dot_dimension_numbers<[1], [0], [0], [1], [0, 0, 1, 1], [], []>} : vector<32x64xbf16>, vector<64x256xbf16>, vector<32x256xf32> -> vector<32x256xf32>
    %289 = arith.addf %281, %288 : vector<32x256xf32>
    %c6_269 = arith.constant 6 : index
    %c0_270 = arith.constant 0 : index
    %c0_271 = arith.constant 0 : index
    %290 = vector.load %arg13[%c6_269, %c0_270, %c0_271] : memref<9x64x256xbf16, #tpu.memory_space<vmem>>, vector<1x64x256xbf16>
    %291 = vector.shape_cast %290 : vector<1x64x256xbf16> to vector<64x256xbf16>
    %cst_272 = arith.constant dense<0.000000e+00> : vector<64x256xf32>
    %292 = tpu.matmul %242, %291, %cst_272 {dimension_numbers = #tpu.dot_dimension_numbers<[1], [0], [0], [1], [0, 0, 1, 1], [], []>} : vector<64x64xbf16>, vector<64x256xbf16>, vector<64x256xf32> -> vector<64x256xf32>
    %c6_273 = arith.constant 6 : index
    %c0_274 = arith.constant 0 : index
    %c0_275 = arith.constant 0 : index
    %293 = vector.load %arg11[%c6_273, %c0_274, %c0_275] : memref<9x32x64xbf16, #tpu.memory_space<vmem>>, vector<1x32x64xbf16>
    %294 = vector.shape_cast %293 : vector<1x32x64xbf16> to vector<32x64xbf16>
    %295 = arith.truncf %292 : vector<64x256xf32> to vector<64x256xbf16>
    %cst_276 = arith.constant dense<0.000000e+00> : vector<32x256xf32>
    %296 = tpu.matmul %294, %295, %cst_276 {dimension_numbers = #tpu.dot_dimension_numbers<[1], [0], [0], [1], [0, 0, 1, 1], [], []>} : vector<32x64xbf16>, vector<64x256xbf16>, vector<32x256xf32> -> vector<32x256xf32>
    %297 = arith.addf %289, %296 : vector<32x256xf32>
    %c7_277 = arith.constant 7 : index
    %c0_278 = arith.constant 0 : index
    %c0_279 = arith.constant 0 : index
    %298 = vector.load %arg13[%c7_277, %c0_278, %c0_279] : memref<9x64x256xbf16, #tpu.memory_space<vmem>>, vector<1x64x256xbf16>
    %299 = vector.shape_cast %298 : vector<1x64x256xbf16> to vector<64x256xbf16>
    %cst_280 = arith.constant dense<0.000000e+00> : vector<64x256xf32>
    %300 = tpu.matmul %242, %299, %cst_280 {dimension_numbers = #tpu.dot_dimension_numbers<[1], [0], [0], [1], [0, 0, 1, 1], [], []>} : vector<64x64xbf16>, vector<64x256xbf16>, vector<64x256xf32> -> vector<64x256xf32>
    %c7_281 = arith.constant 7 : index
    %c0_282 = arith.constant 0 : index
    %c0_283 = arith.constant 0 : index
    %301 = vector.load %arg11[%c7_281, %c0_282, %c0_283] : memref<9x32x64xbf16, #tpu.memory_space<vmem>>, vector<1x32x64xbf16>
    %302 = vector.shape_cast %301 : vector<1x32x64xbf16> to vector<32x64xbf16>
    %303 = arith.truncf %300 : vector<64x256xf32> to vector<64x256xbf16>
    %cst_284 = arith.constant dense<0.000000e+00> : vector<32x256xf32>
    %304 = tpu.matmul %302, %303, %cst_284 {dimension_numbers = #tpu.dot_dimension_numbers<[1], [0], [0], [1], [0, 0, 1, 1], [], []>} : vector<32x64xbf16>, vector<64x256xbf16>, vector<32x256xf32> -> vector<32x256xf32>
    %305 = arith.addf %297, %304 : vector<32x256xf32>
    %c8_285 = arith.constant 8 : index
    %c0_286 = arith.constant 0 : index
    %c0_287 = arith.constant 0 : index
    %306 = vector.load %arg13[%c8_285, %c0_286, %c0_287] : memref<9x64x256xbf16, #tpu.memory_space<vmem>>, vector<1x64x256xbf16>
    %307 = vector.shape_cast %306 : vector<1x64x256xbf16> to vector<64x256xbf16>
    %cst_288 = arith.constant dense<0.000000e+00> : vector<64x256xf32>
    %308 = tpu.matmul %242, %307, %cst_288 {dimension_numbers = #tpu.dot_dimension_numbers<[1], [0], [0], [1], [0, 0, 1, 1], [], []>} : vector<64x64xbf16>, vector<64x256xbf16>, vector<64x256xf32> -> vector<64x256xf32>
    %c8_289 = arith.constant 8 : index
    %c0_290 = arith.constant 0 : index
    %c0_291 = arith.constant 0 : index
    %309 = vector.load %arg11[%c8_289, %c0_290, %c0_291] : memref<9x32x64xbf16, #tpu.memory_space<vmem>>, vector<1x32x64xbf16>
    %310 = vector.shape_cast %309 : vector<1x32x64xbf16> to vector<32x64xbf16>
    %311 = arith.truncf %308 : vector<64x256xf32> to vector<64x256xbf16>
    %cst_292 = arith.constant dense<0.000000e+00> : vector<32x256xf32>
    %312 = tpu.matmul %310, %311, %cst_292 {dimension_numbers = #tpu.dot_dimension_numbers<[1], [0], [0], [1], [0, 0, 1, 1], [], []>} : vector<32x64xbf16>, vector<64x256xbf16>, vector<32x256xf32> -> vector<32x256xf32>
    %313 = arith.addf %305, %312 : vector<32x256xf32>
    %c0_293 = arith.constant 0 : index
    %c0_294 = arith.constant 0 : index
    %314 = vector.load %arg12[%c0_293, %c0_294] : memref<32x1xf32, #tpu.memory_space<vmem>>, vector<32x1xf32>
    %315 = vector.broadcast %314 : vector<32x1xf32> to vector<32x256xf32>
    %316 = arith.addf %313, %315 : vector<32x256xf32>
    %317 = tpu.concatenate %316, %1 in 0 : vector<32x256xf32>, vector<4x256xf32> -> vector<36x256xf32>
    %c0_295 = arith.constant 0 : index
    %c0_296 = arith.constant 0 : index
    %c0_297 = arith.constant 0 : index
    %318 = vector.load %arg14[%c0_295, %c0_296, %c0_297] : memref<1x36x256xf32, #tpu.memory_space<vmem>>, vector<1x36x256xf32>
    %319 = vector.shape_cast %318 : vector<1x36x256xf32> to vector<36x256xf32>
    %320 = vector.shape_cast %317 : vector<36x256xf32> to vector<1x36x256xf32>
    tpu.vector_store %arg14[%c0_295, %c0_296, %c0_297], %320 {strides = array<i32>} : memref<1x36x256xf32, #tpu.memory_space<vmem>>, vector<1x36x256xf32>,
    return
  }
  func.func @transform_0(%arg0: i32) -> (i32, i32, i32) {
    %c0_i32 = arith.constant 0 : i32
    %c0_i32_0 = arith.constant 0 : i32
    %c0_i32_1 = arith.constant 0 : i32
    return %arg0, %c0_i32, %c0_i32_0 : i32, i32, i32
  }
  func.func @transform_1(%arg0: i32) -> (i32, i32, i32) {
    %c0_i32 = arith.constant 0 : i32
    %c0_i32_0 = arith.constant 0 : i32
    %c0_i32_1 = arith.constant 0 : i32
    %c0_i32_2 = arith.constant 0 : i32
    return %c0_i32, %c0_i32_0, %c0_i32_1 : i32, i32, i32
  }
  func.func @transform_2(%arg0: i32) -> (i32, i32) {
    %c0_i32 = arith.constant 0 : i32
    %c0_i32_0 = arith.constant 0 : i32
    %c0_i32_1 = arith.constant 0 : i32
    return %c0_i32, %c0_i32_0 : i32, i32
  }
  func.func @transform_3(%arg0: i32) -> (i32, i32, i32) {
    %c0_i32 = arith.constant 0 : i32
    %c0_i32_0 = arith.constant 0 : i32
    %c0_i32_1 = arith.constant 0 : i32
    %c0_i32_2 = arith.constant 0 : i32
    return %c0_i32, %c0_i32_0, %c0_i32_1 : i32, i32, i32
  }
  func.func @transform_4(%arg0: i32) -> (i32, i32, i32) {
    %c0_i32 = arith.constant 0 : i32
    %c0_i32_0 = arith.constant 0 : i32
    %c0_i32_1 = arith.constant 0 : i32
    %c0_i32_2 = arith.constant 0 : i32
    return %c0_i32, %c0_i32_0, %c0_i32_1 : i32, i32, i32
  }
  func.func @transform_5(%arg0: i32) -> (i32, i32) {
    %c0_i32 = arith.constant 0 : i32
    %c0_i32_0 = arith.constant 0 : i32
    %c0_i32_1 = arith.constant 0 : i32
    return %c0_i32, %c0_i32_0 : i32, i32
  }
  func.func @transform_6(%arg0: i32) -> (i32, i32, i32) {
    %c0_i32 = arith.constant 0 : i32
    %c0_i32_0 = arith.constant 0 : i32
    %c0_i32_1 = arith.constant 0 : i32
    %c0_i32_2 = arith.constant 0 : i32
    return %c0_i32, %c0_i32_0, %c0_i32_1 : i32, i32, i32
  }
  func.func @transform_7(%arg0: i32) -> (i32, i32, i32) {
    %c0_i32 = arith.constant 0 : i32
    %c0_i32_0 = arith.constant 0 : i32
    %c0_i32_1 = arith.constant 0 : i32
    %c0_i32_2 = arith.constant 0 : i32
    return %c0_i32, %c0_i32_0, %c0_i32_1 : i32, i32, i32
  }
  func.func @transform_8(%arg0: i32) -> (i32, i32) {
    %c0_i32 = arith.constant 0 : i32
    %c0_i32_0 = arith.constant 0 : i32
    %c0_i32_1 = arith.constant 0 : i32
    return %c0_i32, %c0_i32_0 : i32, i32
  }
  func.func @transform_9(%arg0: i32) -> (i32, i32, i32) {
    %c0_i32 = arith.constant 0 : i32
    %c0_i32_0 = arith.constant 0 : i32
    %c0_i32_1 = arith.constant 0 : i32
    %c0_i32_2 = arith.constant 0 : i32
    return %c0_i32, %c0_i32_0, %c0_i32_1 : i32, i32, i32
  }
  func.func @transform_10(%arg0: i32) -> (i32, i32, i32) {
    %c0_i32 = arith.constant 0 : i32
    %c0_i32_0 = arith.constant 0 : i32
    %c0_i32_1 = arith.constant 0 : i32
    %c0_i32_2 = arith.constant 0 : i32
    return %c0_i32, %c0_i32_0, %c0_i32_1 : i32, i32, i32
  }
  func.func @transform_11(%arg0: i32) -> (i32, i32) {
    %c0_i32 = arith.constant 0 : i32
    %c0_i32_0 = arith.constant 0 : i32
    %c0_i32_1 = arith.constant 0 : i32
    return %c0_i32, %c0_i32_0 : i32, i32
  }
  func.func @transform_12(%arg0: i32) -> (i32, i32, i32) {
    %c0_i32 = arith.constant 0 : i32
    %c0_i32_0 = arith.constant 0 : i32
    %c0_i32_1 = arith.constant 0 : i32
    %c0_i32_2 = arith.constant 0 : i32
    return %c0_i32, %c0_i32_0, %c0_i32_1 : i32, i32, i32
  }
  func.func @transform_13(%arg0: i32) -> (i32, i32, i32) {
    %c0_i32 = arith.constant 0 : i32
    %c0_i32_0 = arith.constant 0 : i32
    %c0_i32_1 = arith.constant 0 : i32
    return %arg0, %c0_i32, %c0_i32_0 : i32, i32, i32
  }
}

</mosaic_0001>

<llo_original>
// kernel: unet_block_z_middle_forward.1
$region0: #{unet_block_z_middle_forward.1}
  #allocation0 [shape = 'u32[]', space=smem, size = 0x4, offset = 0x4, fixed_abs, tag = 'smem constant byte address 0x4 - core index']
  #allocation1 [shape = 'u32[72,128]{1,0:T(1,128)}', space=vmem, size = 0x9000, scoped, tag = 'internal scratch']
  %s0 = inlined_call_operand.vmem [shape: f32[2,4,256], index: 0, kind: input, shape index: {}]
  %s1 = inlined_call_operand.vmem [shape: bf16[9,32,4], index: 1, kind: input, shape index: {}]
  %s2 = inlined_call_operand.vmem [shape: f32[32,1], index: 2, kind: input, shape index: {}]
  %s3 = inlined_call_operand.vmem [shape: bf16[9,256,64], index: 3, kind: input, shape index: {}]
  %s4 = inlined_call_operand.vmem [shape: bf16[9,64,32], index: 4, kind: input, shape index: {}]
  %s5 = inlined_call_operand.vmem [shape: f32[64,1], index: 5, kind: input, shape index: {}]
  %s6 = inlined_call_operand.vmem [shape: bf16[9,64,16], index: 6, kind: input, shape index: {}]
  %s7 = inlined_call_operand.vmem [shape: bf16[9,32,64], index: 7, kind: input, shape index: {}]
  %s8 = inlined_call_operand.vmem [shape: f32[32,1], index: 8, kind: input, shape index: {}]
  %s9 = inlined_call_operand.vmem [shape: bf16[9,16,64], index: 9, kind: input, shape index: {}]
  %s10 = inlined_call_operand.vmem [shape: bf16[9,32,64], index: 10, kind: input, shape index: {}]
  %s11 = inlined_call_operand.vmem [shape: f32[32,1], index: 11, kind: input, shape index: {}]
  %s12 = inlined_call_operand.vmem [shape: bf16[9,64,256], index: 12, kind: input, shape index: {}]
  %s13 = inlined_call_operand.vmem [shape: f32[2,36,256], index: 13, kind: output, shape index: {}]
  %s14 = sld [smem:[#allocation0]]
  $region85: #{unet_block_z_middle_forward.1} parent=0
    _
  %s16 = ssub.s32 1, %s14
  %s17 = scalar_select 0, %s16, %s14
  loop: start=0, step=1, limit=4
  $region2: #{unet_block_z_middle_forward.1} parent=0 // loop_pre_header
    _
  $region3: #{unet_block_z_middle_forward.1} parent=0 // loop_header
    %s19 = sphi 0, %s23
    %p20 = scmp.ge.s32.totalorder %s19, 4
    %s29 = sphi 0, %s31
    %s32 = sphi 0, %s29
    %s33 = sphi 0, %s32
    %s49 = sphi 0, %s33
    %s53 = sphi 0, %s53
    %s55 = sphi 0, %s53
    %s56 = sphi 0, %s55
    %s70 = sphi 0, %s56
    %s74 = sphi 0, %s74
    %s76 = sphi 0, %s74
    %s77 = sphi 0, %s76
    %s91 = sphi 0, %s77
    %s95 = sphi 0, %s95
    %s97 = sphi 0, %s95
    %s98 = sphi 0, %s97
    %s112 = sphi 0, %s98
    %s116 = sphi 0, %s116
    %s118 = sphi 0, %s116
    %s119 = sphi 0, %s118
    %s133 = sphi 0, %s119
    %s137 = sphi 0, %s137
    %s139 = sphi 0, %s137
    %s140 = sphi 0, %s139
    %s154 = sphi 0, %s140
    %s158 = sphi 0, %s158
    %s160 = sphi 0, %s158
    %s161 = sphi 0, %s160
    %s175 = sphi 0, %s161
    %s179 = sphi 0, %s179
    %s181 = sphi 0, %s179
    %s182 = sphi 0, %s181
    %s196 = sphi 0, %s182
    %s200 = sphi 0, %s200
    %s202 = sphi 0, %s200
    %s203 = sphi 0, %s202
    %s217 = sphi 0, %s203
    %s221 = sphi 0, %s221
    %s223 = sphi 0, %s221
    %s224 = sphi 0, %s223
    %s238 = sphi 0, %s224
    %s242 = sphi 0, %s242
    %s244 = sphi 0, %s242
    %s245 = sphi 0, %s244
    %s259 = sphi 0, %s245
    %s263 = sphi 0, %s263
    %s265 = sphi 0, %s263
    %s266 = sphi 0, %s265
    %s280 = sphi 0, %s266
    %s284 = sphi 0, %s284
    %s286 = sphi 0, %s284
    %s287 = sphi 0, %s286
    %s301 = sphi 0, %s287
    %s307 = sphi 0, %s309
    %s310 = sphi 0, %s307
    %s311 = sphi 0, %s310
    %s327 = sphi 0, %s311
  $region4: #{unet_block_z_middle_forward.1} parent=0 // loop_header_branch
    %22 = sbr.rel (%p20) target = $region8
  $region5: #{unet_block_z_middle_forward.1} parent=0 // loop_body
    %s24 = ssub.s32 %s19, 1
    %s25 = ssub.s32 %s19, 2
    %s26 = sadd.s32 %s19, 1
    %s27 = ssub.s32 %s19, %s26
    %p28 = scmp.eq.s32.totalorder %s27, 0
    %s30 = sadd.s32 %s29, 1
    %s31 = scalar_select %p28, %s29, %s30
    %p34 = pneg %p28
    %p35 = scmp.eq.s32.totalorder %s19, 1
    %p36 = por %p34, %p35
    %p37 = scmp.ne.s32.totalorder %s29, %s32
    %p38 = scmp.eq.s32.totalorder %s19, 0
    %p39 = por %p37, %p38
    %p40 = scmp.ne.s32.totalorder %s29, %s32
    %p41 = scmp.eq.s32.totalorder %s24, 1
    %p42 = por %p40, %p41
    %p43 = scmp.ne.s32.totalorder %s32, %s33
    %p44 = scmp.eq.s32.totalorder %s24, 0
    %p45 = por %p43, %p44
    %p46 = scmp.ne.s32.totalorder %s32, %s33
    %p47 = scmp.eq.s32.totalorder %s25, 1
    %p48 = por %p46, %p47
    %p50 = scmp.ne.s32.totalorder %s33, %s49
    %p51 = scmp.eq.s32.totalorder %s25, 0
    %p52 = por %p50, %p51
    %s54 = sadd.s32 %s53, 1
    %p57 = scmp.eq.s32.totalorder %s19, 1
    %p58 = scmp.ne.s32.totalorder %s53, %s55
    %p59 = scmp.eq.s32.totalorder %s19, 0
    %p60 = por %p58, %p59
    %p61 = scmp.ne.s32.totalorder %s53, %s55
    %p62 = scmp.eq.s32.totalorder %s24, 1
    %p63 = por %p61, %p62
    %p64 = scmp.ne.s32.totalorder %s55, %s56
    %p65 = scmp.eq.s32.totalorder %s24, 0
    %p66 = por %p64, %p65
    %p67 = scmp.ne.s32.totalorder %s55, %s56
    %p68 = scmp.eq.s32.totalorder %s25, 1
    %p69 = por %p67, %p68
    %p71 = scmp.ne.s32.totalorder %s56, %s70
    %p72 = scmp.eq.s32.totalorder %s25, 0
    %p73 = por %p71, %p72
    %s75 = sadd.s32 %s74, 1
    %p78 = scmp.eq.s32.totalorder %s19, 1
    %p79 = scmp.ne.s32.totalorder %s74, %s76
    %p80 = scmp.eq.s32.totalorder %s19, 0
    %p81 = por %p79, %p80
    %p82 = scmp.ne.s32.totalorder %s74, %s76
    %p83 = scmp.eq.s32.totalorder %s24, 1
    %p84 = por %p82, %p83
    %p85 = scmp.ne.s32.totalorder %s76, %s77
    %p86 = scmp.eq.s32.totalorder %s24, 0
    %p87 = por %p85, %p86
    %p88 = scmp.ne.s32.totalorder %s76, %s77
    %p89 = scmp.eq.s32.totalorder %s25, 1
    %p90 = por %p88, %p89
    %p92 = scmp.ne.s32.totalorder %s77, %s91
    %p93 = scmp.eq.s32.totalorder %s25, 0
    %p94 = por %p92, %p93
    %s96 = sadd.s32 %s95, 1
    %p99 = scmp.eq.s32.totalorder %s19, 1
    %p100 = scmp.ne.s32.totalorder %s95, %s97
    %p101 = scmp.eq.s32.totalorder %s19, 0
    %p102 = por %p100, %p101
    %p103 = scmp.ne.s32.totalorder %s95, %s97
    %p104 = scmp.eq.s32.totalorder %s24, 1
    %p105 = por %p103, %p104
    %p106 = scmp.ne.s32.totalorder %s97, %s98
    %p107 = scmp.eq.s32.totalorder %s24, 0
    %p108 = por %p106, %p107
    %p109 = scmp.ne.s32.totalorder %s97, %s98
    %p110 = scmp.eq.s32.totalorder %s25, 1
    %p111 = por %p109, %p110
    %p113 = scmp.ne.s32.totalorder %s98, %s112
    %p114 = scmp.eq.s32.totalorder %s25, 0
    %p115 = por %p113, %p114
    %s117 = sadd.s32 %s116, 1
    %p120 = scmp.eq.s32.totalorder %s19, 1
    %p121 = scmp.ne.s32.totalorder %s116, %s118
    %p122 = scmp.eq.s32.totalorder %s19, 0
    %p123 = por %p121, %p122
    %p124 = scmp.ne.s32.totalorder %s116, %s118
    %p125 = scmp.eq.s32.totalorder %s24, 1
    %p126 = por %p124, %p125
    %p127 = scmp.ne.s32.totalorder %s118, %s119
    %p128 = scmp.eq.s32.totalorder %s24, 0
    %p129 = por %p127, %p128
    %p130 = scmp.ne.s32.totalorder %s118, %s119
    %p131 = scmp.eq.s32.totalorder %s25, 1
    %p132 = por %p130, %p131
    %p134 = scmp.ne.s32.totalorder %s119, %s133
    %p135 = scmp.eq.s32.totalorder %s25, 0
    %p136 = por %p134, %p135
    %s138 = sadd.s32 %s137, 1
    %p141 = scmp.eq.s32.totalorder %s19, 1
    %p142 = scmp.ne.s32.totalorder %s137, %s139
    %p143 = scmp.eq.s32.totalorder %s19, 0
    %p144 = por %p142, %p143
    %p145 = scmp.ne.s32.totalorder %s137, %s139
    %p146 = scmp.eq.s32.totalorder %s24, 1
    %p147 = por %p145, %p146
    %p148 = scmp.ne.s32.totalorder %s139, %s140
    %p149 = scmp.eq.s32.totalorder %s24, 0
    %p150 = por %p148, %p149
    %p151 = scmp.ne.s32.totalorder %s139, %s140
    %p152 = scmp.eq.s32.totalorder %s25, 1
    %p153 = por %p151, %p152
    %p155 = scmp.ne.s32.totalorder %s140, %s154
    %p156 = scmp.eq.s32.totalorder %s25, 0
    %p157 = por %p155, %p156
    %s159 = sadd.s32 %s158, 1
    %p162 = scmp.eq.s32.totalorder %s19, 1
    %p163 = scmp.ne.s32.totalorder %s158, %s160
    %p164 = scmp.eq.s32.totalorder %s19, 0
    %p165 = por %p163, %p164
    %p166 = scmp.ne.s32.totalorder %s158, %s160
    %p167 = scmp.eq.s32.totalorder %s24, 1
    %p168 = por %p166, %p167
    %p169 = scmp.ne.s32.totalorder %s160, %s161
    %p170 = scmp.eq.s32.totalorder %s24, 0
    %p171 = por %p169, %p170
    %p172 = scmp.ne.s32.totalorder %s160, %s161
    %p173 = scmp.eq.s32.totalorder %s25, 1
    %p174 = por %p172, %p173
    %p176 = scmp.ne.s32.totalorder %s161, %s175
    %p177 = scmp.eq.s32.totalorder %s25, 0
    %p178 = por %p176, %p177
    %s180 = sadd.s32 %s179, 1
    %p183 = scmp.eq.s32.totalorder %s19, 1
    %p184 = scmp.ne.s32.totalorder %s179, %s181
    %p185 = scmp.eq.s32.totalorder %s19, 0
    %p186 = por %p184, %p185
    %p187 = scmp.ne.s32.totalorder %s179, %s181
    %p188 = scmp.eq.s32.totalorder %s24, 1
    %p189 = por %p187, %p188
    %p190 = scmp.ne.s32.totalorder %s181, %s182
    %p191 = scmp.eq.s32.totalorder %s24, 0
    %p192 = por %p190, %p191
    %p193 = scmp.ne.s32.totalorder %s181, %s182
    %p194 = scmp.eq.s32.totalorder %s25, 1
    %p195 = por %p193, %p194
    %p197 = scmp.ne.s32.totalorder %s182, %s196
    %p198 = scmp.eq.s32.totalorder %s25, 0
    %p199 = por %p197, %p198
    %s201 = sadd.s32 %s200, 1
    %p204 = scmp.eq.s32.totalorder %s19, 1
    %p205 = scmp.ne.s32.totalorder %s200, %s202
    %p206 = scmp.eq.s32.totalorder %s19, 0
    %p207 = por %p205, %p206
    %p208 = scmp.ne.s32.totalorder %s200, %s202
    %p209 = scmp.eq.s32.totalorder %s24, 1
    %p210 = por %p208, %p209
    %p211 = scmp.ne.s32.totalorder %s202, %s203
    %p212 = scmp.eq.s32.totalorder %s24, 0
    %p213 = por %p211, %p212
    %p214 = scmp.ne.s32.totalorder %s202, %s203
    %p215 = scmp.eq.s32.totalorder %s25, 1
    %p216 = por %p214, %p215
    %p218 = scmp.ne.s32.totalorder %s203, %s217
    %p219 = scmp.eq.s32.totalorder %s25, 0
    %p220 = por %p218, %p219
    %s222 = sadd.s32 %s221, 1
    %p225 = scmp.eq.s32.totalorder %s19, 1
    %p226 = scmp.ne.s32.totalorder %s221, %s223
    %p227 = scmp.eq.s32.totalorder %s19, 0
    %p228 = por %p226, %p227
    %p229 = scmp.ne.s32.totalorder %s221, %s223
    %p230 = scmp.eq.s32.totalorder %s24, 1
    %p231 = por %p229, %p230
    %p232 = scmp.ne.s32.totalorder %s223, %s224
    %p233 = scmp.eq.s32.totalorder %s24, 0
    %p234 = por %p232, %p233
    %p235 = scmp.ne.s32.totalorder %s223, %s224
    %p236 = scmp.eq.s32.totalorder %s25, 1
    %p237 = por %p235, %p236
    %p239 = scmp.ne.s32.totalorder %s224, %s238
    %p240 = scmp.eq.s32.totalorder %s25, 0
    %p241 = por %p239, %p240
    %s243 = sadd.s32 %s242, 1
    %p246 = scmp.eq.s32.totalorder %s19, 1
    %p247 = scmp.ne.s32.totalorder %s242, %s244
    %p248 = scmp.eq.s32.totalorder %s19, 0
    %p249 = por %p247, %p248
    %p250 = scmp.ne.s32.totalorder %s242, %s244
    %p251 = scmp.eq.s32.totalorder %s24, 1
    %p252 = por %p250, %p251
    %p253 = scmp.ne.s32.totalorder %s244, %s245
    %p254 = scmp.eq.s32.totalorder %s24, 0
    %p255 = por %p253, %p254
    %p256 = scmp.ne.s32.totalorder %s244, %s245
    %p257 = scmp.eq.s32.totalorder %s25, 1
    %p258 = por %p256, %p257
    %p260 = scmp.ne.s32.totalorder %s245, %s259
    %p261 = scmp.eq.s32.totalorder %s25, 0
    %p262 = por %p260, %p261
    %s264 = sadd.s32 %s263, 1
    %p267 = scmp.eq.s32.totalorder %s19, 1
    %p268 = scmp.ne.s32.totalorder %s263, %s265
    %p269 = scmp.eq.s32.totalorder %s19, 0
    %p270 = por %p268, %p269
    %p271 = scmp.ne.s32.totalorder %s263, %s265
    %p272 = scmp.eq.s32.totalorder %s24, 1
    %p273 = por %p271, %p272
    %p274 = scmp.ne.s32.totalorder %s265, %s266
    %p275 = scmp.eq.s32.totalorder %s24, 0
    %p276 = por %p274, %p275
    %p277 = scmp.ne.s32.totalorder %s265, %s266
    %p278 = scmp.eq.s32.totalorder %s25, 1
    %p279 = por %p277, %p278
    %p281 = scmp.ne.s32.totalorder %s266, %s280
    %p282 = scmp.eq.s32.totalorder %s25, 0
    %p283 = por %p281, %p282
    %s285 = sadd.s32 %s284, 1
    %p288 = scmp.eq.s32.totalorder %s19, 1
    %p289 = scmp.ne.s32.totalorder %s284, %s286
    %p290 = scmp.eq.s32.totalorder %s19, 0
    %p291 = por %p289, %p290
    %p292 = scmp.ne.s32.totalorder %s284, %s286
    %p293 = scmp.eq.s32.totalorder %s24, 1
    %p294 = por %p292, %p293
    %p295 = scmp.ne.s32.totalorder %s286, %s287
    %p296 = scmp.eq.s32.totalorder %s24, 0
    %p297 = por %p295, %p296
    %p298 = scmp.ne.s32.totalorder %s286, %s287
    %p299 = scmp.eq.s32.totalorder %s25, 1
    %p300 = por %p298, %p299
    %p302 = scmp.ne.s32.totalorder %s287, %s301
    %p303 = scmp.eq.s32.totalorder %s25, 0
    %p304 = por %p302, %p303
    %s305 = ssub.s32 %s19, %s26
    %p306 = scmp.eq.s32.totalorder %s305, 0
    %s308 = sadd.s32 %s307, 1
    %s309 = scalar_select %p306, %s307, %s308
    %p312 = pneg %p306
    %p313 = scmp.eq.s32.totalorder %s19, 1
    %p314 = por %p312, %p313
    %p315 = scmp.ne.s32.totalorder %s307, %s310
    %p316 = scmp.eq.s32.totalorder %s19, 0
    %p317 = por %p315, %p316
    %p318 = scmp.ne.s32.totalorder %s307, %s310
    %p319 = scmp.eq.s32.totalorder %s24, 1
    %p320 = por %p318, %p319
    %p321 = scmp.ne.s32.totalorder %s310, %s311
    %p322 = scmp.eq.s32.totalorder %s24, 0
    %p323 = por %p321, %p322
    %p324 = scmp.ne.s32.totalorder %s310, %s311
    %p325 = scmp.eq.s32.totalorder %s25, 1
    %p326 = por %p324, %p325
    %p328 = scmp.ne.s32.totalorder %s311, %s327
    %p329 = scmp.eq.s32.totalorder %s25, 0
    %p330 = por %p328, %p329
    %p331 = scmp.le.s32.totalorder 1, %s19
    %p332 = scmp.lt.s32.totalorder %s19, 3
    %p333 = pnand %p331, %p332
    %p334 = pneg %p333
    // Predicated region
    $region9: #{unet_block_z_middle_forward.1} parent=5 // pred_check
      _
    $region10: #{unet_block_z_middle_forward.1} parent=5 // pred_check_branch
      %336 = sbr.rel (%p333) target = $region12
    $region11: #{unet_block_z_middle_forward.1} parent=5 // pred_region
      %s337 = ssub.s32 %s19, 1
      // Predicated region
      $region13: #{unet_block_z_middle_forward.1} parent=11 // pred_check
        %p338 = pneg %p66
      $region14: #{unet_block_z_middle_forward.1} parent=11 // pred_check_branch
        %340 = sbr.rel (%p338) target = $region16
      $region15: #{unet_block_z_middle_forward.1} parent=11 // pred_region
        _
      $region16: #{unet_block_z_middle_forward.1} parent=11 // pred_fallthru
        _
      // Predicated region
      $region17: #{unet_block_z_middle_forward.1} parent=11 // pred_check
        %p341 = pneg %p87
      $region18: #{unet_block_z_middle_forward.1} parent=11 // pred_check_branch
        %343 = sbr.rel (%p341) target = $region20
      $region19: #{unet_block_z_middle_forward.1} parent=11 // pred_region
        _
      $region20: #{unet_block_z_middle_forward.1} parent=11 // pred_fallthru
        _
      // Predicated region
      $region21: #{unet_block_z_middle_forward.1} parent=11 // pred_check
        %p344 = pneg %p108
      $region22: #{unet_block_z_middle_forward.1} parent=11 // pred_check_branch
        %346 = sbr.rel (%p344) target = $region24
      $region23: #{unet_block_z_middle_forward.1} parent=11 // pred_region
        _
      $region24: #{unet_block_z_middle_forward.1} parent=11 // pred_fallthru
        _
      // Predicated region
      $region25: #{unet_block_z_middle_forward.1} parent=11 // pred_check
        %p347 = pneg %p129
      $region26: #{unet_block_z_middle_forward.1} parent=11 // pred_check_branch
        %349 = sbr.rel (%p347) target = $region28
      $region27: #{unet_block_z_middle_forward.1} parent=11 // pred_region
        _
      $region28: #{unet_block_z_middle_forward.1} parent=11 // pred_fallthru
        _
      // Predicated region
      $region29: #{unet_block_z_middle_forward.1} parent=11 // pred_check
        %p350 = pneg %p150
      $region30: #{unet_block_z_middle_forward.1} parent=11 // pred_check_branch
        %352 = sbr.rel (%p350) target = $region32
      $region31: #{unet_block_z_middle_forward.1} parent=11 // pred_region
        _
      $region32: #{unet_block_z_middle_forward.1} parent=11 // pred_fallthru
        _
      // Predicated region
      $region33: #{unet_block_z_middle_forward.1} parent=11 // pred_check
        %p353 = pneg %p171
      $region34: #{unet_block_z_middle_forward.1} parent=11 // pred_check_branch
        %355 = sbr.rel (%p353) target = $region36
      $region35: #{unet_block_z_middle_forward.1} parent=11 // pred_region
        _
      $region36: #{unet_block_z_middle_forward.1} parent=11 // pred_fallthru
        _
      // Predicated region
      $region37: #{unet_block_z_middle_forward.1} parent=11 // pred_check
        %p356 = pneg %p192
      $region38: #{unet_block_z_middle_forward.1} parent=11 // pred_check_branch
        %358 = sbr.rel (%p356) target = $region40
      $region39: #{unet_block_z_middle_forward.1} parent=11 // pred_region
        _
      $region40: #{unet_block_z_middle_forward.1} parent=11 // pred_fallthru
        _
      // Predicated region
      $region41: #{unet_block_z_middle_forward.1} parent=11 // pred_check
        %p359 = pneg %p213
      $region42: #{unet_block_z_middle_forward.1} parent=11 // pred_check_branch
        %361 = sbr.rel (%p359) target = $region44
      $region43: #{unet_block_z_middle_forward.1} parent=11 // pred_region
        _
      $region44: #{unet_block_z_middle_forward.1} parent=11 // pred_fallthru
        _
      // Predicated region
      $region45: #{unet_block_z_middle_forward.1} parent=11 // pred_check
        %p362 = pneg %p234
      $region46: #{unet_block_z_middle_forward.1} parent=11 // pred_check_branch
        %364 = sbr.rel (%p362) target = $region48
      $region47: #{unet_block_z_middle_forward.1} parent=11 // pred_region
        _
      $region48: #{unet_block_z_middle_forward.1} parent=11 // pred_fallthru
        _
      // Predicated region
      $region49: #{unet_block_z_middle_forward.1} parent=11 // pred_check
        %p365 = pneg %p255
      $region50: #{unet_block_z_middle_forward.1} parent=11 // pred_check_branch
        %367 = sbr.rel (%p365) target = $region52
      $region51: #{unet_block_z_middle_forward.1} parent=11 // pred_region
        _
      $region52: #{unet_block_z_middle_forward.1} parent=11 // pred_fallthru
        _
      // Predicated region
      $region53: #{unet_block_z_middle_forward.1} parent=11 // pred_check
        %p368 = pneg %p276
      $region54: #{unet_block_z_middle_forward.1} parent=11 // pred_check_branch
        %370 = sbr.rel (%p368) target = $region56
      $region55: #{unet_block_z_middle_forward.1} parent=11 // pred_region
        _
      $region56: #{unet_block_z_middle_forward.1} parent=11 // pred_fallthru
        _
      // Predicated region
      $region57: #{unet_block_z_middle_forward.1} parent=11 // pred_check
        %p371 = pneg %p297
      $region58: #{unet_block_z_middle_forward.1} parent=11 // pred_check_branch
        %373 = sbr.rel (%p371) target = $region60
      $region59: #{unet_block_z_middle_forward.1} parent=11 // pred_region
        _
      $region60: #{unet_block_z_middle_forward.1} parent=11 // pred_fallthru
        _
    $region12: #{unet_block_z_middle_forward.1} parent=5 // pred_fallthru
      _
    %p374 = scmp.lt.s32.totalorder %s19, 2
    // Predicated region
    $region61: #{unet_block_z_middle_forward.1} parent=5 // pred_check
      %p375 = pneg %p374
    $region62: #{unet_block_z_middle_forward.1} parent=5 // pred_check_branch
      %377 = sbr.rel (%p375) target = $region64
    $region63: #{unet_block_z_middle_forward.1} parent=5 // pred_region
      // Predicated region
      $region65: #{unet_block_z_middle_forward.1} parent=63 // pred_check
        %p378 = pneg %p39
      $region66: #{unet_block_z_middle_forward.1} parent=63 // pred_check_branch
        %380 = sbr.rel (%p378) target = $region68
      $region67: #{unet_block_z_middle_forward.1} parent=63 // pred_region
        %p381 = scmp.lt.s32.totalorder %s19, 1
        %s382 = scalar_select %p381, %s19, 1
        %s383 = smul.addr %s382, 2
        %s384 = smul.addr %s383, 4
        %s385 = scalar_lea.vmem %s0, %s384
      $region68: #{unet_block_z_middle_forward.1} parent=63 // pred_fallthru
        _
    $region64: #{unet_block_z_middle_forward.1} parent=5 // pred_fallthru
      _
    %p386 = scmp.le.s32.totalorder 1, %s19
    %p387 = scmp.lt.s32.totalorder %s19, 3
    %p388 = pnand %p386, %p387
    %p389 = pneg %p388
    // Predicated region
    $region69: #{unet_block_z_middle_forward.1} parent=5 // pred_check
      _
    $region70: #{unet_block_z_middle_forward.1} parent=5 // pred_check_branch
      %391 = sbr.rel (%p388) target = $region72
    $region71: #{unet_block_z_middle_forward.1} parent=5 // pred_region
      %s392 = ssub.s32 %s19, 1
      %p393 = scmp.lt.s32.totalorder %s24, 1
      %s394 = scalar_select %p393, %s24, 1
      %s395 = smul.addr %s394, 2
      %s396 = smul.addr %s395, 4
      %s397 = scalar_lea.vmem %s0, %s396
      %p398 = pneg %p45
      %p399 = pneg %p42
      %p400 = pneg %p66
      %p401 = pneg %p63
      %p402 = pneg %p87
      %p403 = pneg %p84
      %p404 = pneg %p108
      %p405 = pneg %p105
      %p406 = pneg %p129
      %p407 = pneg %p126
      %p408 = pneg %p150
      %p409 = pneg %p147
      %p410 = pneg %p171
      %p411 = pneg %p168
      %p412 = pneg %p192
      %p413 = pneg %p189
      %p414 = pneg %p213
      %p415 = pneg %p210
      %p416 = pneg %p234
      %p417 = pneg %p231
      %p418 = pneg %p255
      %p419 = pneg %p252
      %p420 = pneg %p276
      %p421 = pneg %p273
      %p422 = pneg %p297
      %p423 = pneg %p294
      %p424 = pneg %p323
      %p425 = pneg %p320
      %p426 = scmp.lt.s32.totalorder %s24, 1
      %s427 = scalar_select %p426, %s24, 1
      %s428 = smul.addr %s427, 10
      %s429 = smul.addr %s428, 8
      %s430 = scalar_lea.vmem %s13, %s429
      %p431 = scmp.lt.s32.totalorder %s24, 1
      %s432 = scalar_select %p431, %s24, 1
      %s433 = smul.addr %s432, 2
      %s434 = smul.addr %s433, 4
      %s435 = scalar_lea.vmem %s0, %s434
      %p436 = scmp.lt.s32.totalorder %s24, 1
      %s437 = scalar_select %p436, %s24, 1
      %s438 = smul.addr %s437, 10
      %s439 = smul.addr %s438, 8
      %s440 = scalar_lea.vmem %s13, %s439
      %v442 = vld [vmem:[%s435] sm:$0xff]
      %vm443 = vcmp.ge.f32.partialorder %v442, 0.0
      %v444 = vmul.f32 %v442, 0.2
      %v445 = vsel %vm443, %v442, %v444
      %447 = vst [vmem:[#allocation1] ss:$2 sm:$0xff] %v445
      %v448 = vld.sshfl [vmem:[#allocation1] sm:$0xff pattern:$0x75316420]
      %v449 = vld.sshfl [vmem:[#allocation1 + $0x8] sm:$0xff pattern:$0x75316420]
      %v452 = vpack.c.bf16 %v448, %v448
      %v453 = vpack.c.bf16 %v449, %v449
      %v454 = vld [vmem:[%s3] sm:$0xf]
      %v455 = vld [vmem:[%s3 + $0x4] sm:$0xf]
      %v456 = vld [vmem:[%s3 + $0x8] sm:$0xf]
      %v457 = vld [vmem:[%s3 + $0xc] sm:$0xf]
      %v458 = vld [vmem:[%s3 + $0x10] sm:$0xf]
      %v459 = vld [vmem:[%s3 + $0x14] sm:$0xf]
      %v460 = vld [vmem:[%s3 + $0x18] sm:$0xf]
      %v461 = vld [vmem:[%s3 + $0x1c] sm:$0xf]
      %v462 = vld [vmem:[%s3 + $0x20] sm:$0xf]
      %v463 = vld [vmem:[%s3 + $0x24] sm:$0xf]
      %v464 = vld [vmem:[%s3 + $0x28] sm:$0xf]
      %v465 = vld [vmem:[%s3 + $0x2c] sm:$0xf]
      %v466 = vld [vmem:[%s3 + $0x30] sm:$0xf]
      %v467 = vld [vmem:[%s3 + $0x34] sm:$0xf]
      %v468 = vld [vmem:[%s3 + $0x38] sm:$0xf]
      %v469 = vld [vmem:[%s3 + $0x3c] sm:$0xf]
      %v470 = vld [vmem:[%s3 + $0x40] sm:$0xf]
      %v471 = vld [vmem:[%s3 + $0x44] sm:$0xf]
      %v472 = vld [vmem:[%s3 + $0x48] sm:$0xf]
      %v473 = vld [vmem:[%s3 + $0x4c] sm:$0xf]
      %v474 = vld [vmem:[%s3 + $0x50] sm:$0xf]
      %v475 = vld [vmem:[%s3 + $0x54] sm:$0xf]
      %v476 = vld [vmem:[%s3 + $0x58] sm:$0xf]
      %v477 = vld [vmem:[%s3 + $0x5c] sm:$0xf]
      %v478 = vld [vmem:[%s3 + $0x60] sm:$0xf]
      %v479 = vld [vmem:[%s3 + $0x64] sm:$0xf]
      %v480 = vld [vmem:[%s3 + $0x68] sm:$0xf]
      %v481 = vld [vmem:[%s3 + $0x6c] sm:$0xf]
      %v482 = vld [vmem:[%s3 + $0x70] sm:$0xf]
      %v483 = vld [vmem:[%s3 + $0x74] sm:$0xf]
      %v484 = vld [vmem:[%s3 + $0x78] sm:$0xf]
      %v485 = vld [vmem:[%s3 + $0x7c] sm:$0xf]
      %v518 = vunpack.c.l.b16 %v454
      %v519 = vunpack.c.l.b16 %v455
      %v520 = vunpack.c.l.b16 %v456
      %v521 = vunpack.c.l.b16 %v457
      %v522 = vunpack.c.l.b16 %v458
      %v523 = vunpack.c.l.b16 %v459
      %v524 = vunpack.c.l.b16 %v460
      %v525 = vunpack.c.l.b16 %v461
      %v526 = vunpack.c.l.b16 %v462
      %v527 = vunpack.c.l.b16 %v463
      %v528 = vunpack.c.l.b16 %v464
      %v529 = vunpack.c.l.b16 %v465
      %v530 = vunpack.c.l.b16 %v466
      %v531 = vunpack.c.l.b16 %v467
      %v532 = vunpack.c.l.b16 %v468
      %v533 = vunpack.c.l.b16 %v469
      %v534 = vunpack.c.l.b16 %v470
      %v535 = vunpack.c.l.b16 %v471
      %v536 = vunpack.c.l.b16 %v472
      %v537 = vunpack.c.l.b16 %v473
      %v538 = vunpack.c.l.b16 %v474
      %v539 = vunpack.c.l.b16 %v475
      %v540 = vunpack.c.l.b16 %v476
      %v541 = vunpack.c.l.b16 %v477
      %v542 = vunpack.c.l.b16 %v478
      %v543 = vunpack.c.l.b16 %v479
      %v544 = vunpack.c.l.b16 %v480
      %v545 = vunpack.c.l.b16 %v481
      %v546 = vunpack.c.l.b16 %v482
      %v547 = vunpack.c.l.b16 %v483
      %v548 = vunpack.c.l.b16 %v484
      %v549 = vunpack.c.l.b16 %v485
      %v550 = vpack.c.b16 %v519, %v518
      %v551 = vpack.c.b16 %v521, %v520
      %v552 = vpack.c.b16 %v523, %v522
      %v553 = vpack.c.b16 %v525, %v524
      %v554 = vpack.c.b16 %v527, %v526
      %v555 = vpack.c.b16 %v529, %v528
      %v556 = vpack.c.b16 %v531, %v530
      %v557 = vpack.c.b16 %v533, %v532
      %v558 = vpack.c.b16 %v535, %v534
      %v559 = vpack.c.b16 %v537, %v536
      %v560 = vpack.c.b16 %v539, %v538
      %v561 = vpack.c.b16 %v541, %v540
      %v562 = vpack.c.b16 %v543, %v542
      %v563 = vpack.c.b16 %v545, %v544
      %v564 = vpack.c.b16 %v547, %v546
      %v565 = vpack.c.b16 %v549, %v548
      %582 = vmatpush.bf16.msra.mxu0 %v557
      %583 = vmatpush.bf16.msra.mxu0 %v556
      %584 = vmatpush.bf16.msra.mxu0 %v555
      %585 = vmatpush.bf16.msra.mxu0 %v554
      %586 = vmatpush.bf16.msra.mxu0 %v553
      %587 = vmatpush.bf16.msra.mxu0 %v552
      %588 = vmatpush.bf16.msra.mxu0 %v551
      %589 = vmatpush.bf16.msra.mxu0 %v550
      %590 = vmatmul.bf16.gmra.mxu0 %v452
      %v591 = vpop.f32.mrf.mxu0
      %v592 = vadd.f32 0.0, %v591
      %v593 = vpop.f32.mrf.mxu0
      %594 = vdwg.mxu0
      %595 = vmatpush.bf16.msra.mxu0 %v565
      %596 = vmatpush.bf16.msra.mxu0 %v564
      %597 = vmatpush.bf16.msra.mxu0 %v563
      %598 = vmatpush.bf16.msra.mxu0 %v562
      %599 = vmatpush.bf16.msra.mxu0 %v561
      %600 = vmatpush.bf16.msra.mxu0 %v560
      %601 = vmatpush.bf16.msra.mxu0 %v559
      %602 = vmatpush.bf16.msra.mxu0 %v558
      %603 = vmatmul.bf16.gmra.mxu0 %v453
      %v604 = vpop.f32.mrf.mxu0
      %v605 = vadd.f32 %v592, %v604
      %v606 = vpop.f32.mrf.mxu0
      %607 = vdwg.mxu0
      %v608 = vld [vmem:[%s1] sm:$0xf]
      %v609 = vld [vmem:[%s1 + $0x4] sm:$0xf]
      %v610 = vld [vmem:[%s1 + $0x8] sm:$0xf]
      %v611 = vld [vmem:[%s1 + $0xc] sm:$0xf]
      %v612 = vpack.c.bf16 %v605, %v605
      %s613 = scalar_lea.vmem %s3, 128
      %v614 = vld [vmem:[%s613] sm:$0xf]
      %v615 = vld [vmem:[%s613 + $0x4] sm:$0xf]
      %v616 = vld [vmem:[%s613 + $0x8] sm:$0xf]
      %v617 = vld [vmem:[%s613 + $0xc] sm:$0xf]
      %v618 = vld [vmem:[%s613 + $0x10] sm:$0xf]
      %v619 = vld [vmem:[%s613 + $0x14] sm:$0xf]
      %v620 = vld [vmem:[%s613 + $0x18] sm:$0xf]
      %v621 = vld [vmem:[%s613 + $0x1c] sm:$0xf]
      %v622 = vld [vmem:[%s613 + $0x20] sm:$0xf]
      %v623 = vld [vmem:[%s613 + $0x24] sm:$0xf]
      %v624 = vld [vmem:[%s613 + $0x28] sm:$0xf]
      %v625 = vld [vmem:[%s613 + $0x2c] sm:$0xf]
      %v626 = vld [vmem:[%s613 + $0x30] sm:$0xf]
      %v627 = vld [vmem:[%s613 + $0x34] sm:$0xf]
      %v628 = vld [vmem:[%s613 + $0x38] sm:$0xf]
      %v629 = vld [vmem:[%s613 + $0x3c] sm:$0xf]
      %v630 = vld [vmem:[%s613 + $0x40] sm:$0xf]
      %v631 = vld [vmem:[%s613 + $0x44] sm:$0xf]
      %v632 = vld [vmem:[%s613 + $0x48] sm:$0xf]
      %v633 = vld [vmem:[%s613 + $0x4c] sm:$0xf]
      %v634 = vld [vmem:[%s613 + $0x50] sm:$0xf]
      %v635 = vld [vmem:[%s613 + $0x54] sm:$0xf]
      %v636 = vld [vmem:[%s613 + $0x58] sm:$0xf]
      %v637 = vld [vmem:[%s613 + $0x5c] sm:$0xf]
      %v638 = vld [vmem:[%s613 + $0x60] sm:$0xf]
      %v639 = vld [vmem:[%s613 + $0x64] sm:$0xf]
      %v640 = vld [vmem:[%s613 + $0x68] sm:$0xf]
      %v641 = vld [vmem:[%s613 + $0x6c] sm:$0xf]
      %v642 = vld [vmem:[%s613 + $0x70] sm:$0xf]
      %v643 = vld [vmem:[%s613 + $0x74] sm:$0xf]
      %v644 = vld [vmem:[%s613 + $0x78] sm:$0xf]
      %v645 = vld [vmem:[%s613 + $0x7c] sm:$0xf]
      %v678 = vunpack.c.l.b16 %v614
      %v679 = vunpack.c.l.b16 %v615
      %v680 = vunpack.c.l.b16 %v616
      %v681 = vunpack.c.l.b16 %v617
      %v682 = vunpack.c.l.b16 %v618
      %v683 = vunpack.c.l.b16 %v619
      %v684 = vunpack.c.l.b16 %v620
      %v685 = vunpack.c.l.b16 %v621
      %v686 = vunpack.c.l.b16 %v622
      %v687 = vunpack.c.l.b16 %v623
      %v688 = vunpack.c.l.b16 %v624
      %v689 = vunpack.c.l.b16 %v625
      %v690 = vunpack.c.l.b16 %v626
      %v691 = vunpack.c.l.b16 %v627
      %v692 = vunpack.c.l.b16 %v628
      %v693 = vunpack.c.l.b16 %v629
      %v694 = vunpack.c.l.b16 %v630
      %v695 = vunpack.c.l.b16 %v631
      %v696 = vunpack.c.l.b16 %v632
      %v697 = vunpack.c.l.b16 %v633
      %v698 = vunpack.c.l.b16 %v634
      %v699 = vunpack.c.l.b16 %v635
      %v700 = vunpack.c.l.b16 %v636
      %v701 = vunpack.c.l.b16 %v637
      %v702 = vunpack.c.l.b16 %v638
      %v703 = vunpack.c.l.b16 %v639
      %v704 = vunpack.c.l.b16 %v640
      %v705 = vunpack.c.l.b16 %v641
      %v706 = vunpack.c.l.b16 %v642
      %v707 = vunpack.c.l.b16 %v643
      %v708 = vunpack.c.l.b16 %v644
      %v709 = vunpack.c.l.b16 %v645
      %v710 = vpack.c.b16 %v679, %v678
      %v711 = vpack.c.b16 %v681, %v680
      %v712 = vpack.c.b16 %v683, %v682
      %v713 = vpack.c.b16 %v685, %v684
      %v714 = vpack.c.b16 %v687, %v686
      %v715 = vpack.c.b16 %v689, %v688
      %v716 = vpack.c.b16 %v691, %v690
      %v717 = vpack.c.b16 %v693, %v692
      %v718 = vpack.c.b16 %v695, %v694
      %v719 = vpack.c.b16 %v697, %v696
      %v720 = vpack.c.b16 %v699, %v698
      %v721 = vpack.c.b16 %v701, %v700
      %v722 = vpack.c.b16 %v703, %v702
      %v723 = vpack.c.b16 %v705, %v704
      %v724 = vpack.c.b16 %v707, %v706
      %v725 = vpack.c.b16 %v709, %v708
      %742 = vmatpush.bf16.msra.mxu0 %v717
      %743 = vmatpush.bf16.msra.mxu0 %v716
      %744 = vmatpush.bf16.msra.mxu0 %v715
      %745 = vmatpush.bf16.msra.mxu0 %v714
      %746 = vmatpush.bf16.msra.mxu0 %v713
      %747 = vmatpush.bf16.msra.mxu0 %v712
      %748 = vmatpush.bf16.msra.mxu0 %v711
      %749 = vmatpush.bf16.msra.mxu0 %v710
      %750 = vmatmul.bf16.gmra.mxu0 %v452
      %v751 = vpop.f32.mrf.mxu0
      %v752 = vadd.f32 0.0, %v751
      %v753 = vpop.f32.mrf.mxu0
      %754 = vdwg.mxu0
      %755 = vmatpush.bf16.msra.mxu0 %v725
      %756 = vmatpush.bf16.msra.mxu0 %v724
      %757 = vmatpush.bf16.msra.mxu0 %v723
      %758 = vmatpush.bf16.msra.mxu0 %v722
      %759 = vmatpush.bf16.msra.mxu0 %v721
      %760 = vmatpush.bf16.msra.mxu0 %v720
      %761 = vmatpush.bf16.msra.mxu0 %v719
      %762 = vmatpush.bf16.msra.mxu0 %v718
      %763 = vmatmul.bf16.gmra.mxu0 %v453
      %v764 = vpop.f32.mrf.mxu0
      %v765 = vadd.f32 %v752, %v764
      %v766 = vpop.f32.mrf.mxu0
      %767 = vdwg.mxu0
      %s768 = scalar_lea.vmem %s1, 16
      %v769 = vld [vmem:[%s768] sm:$0xf]
      %v770 = vld [vmem:[%s768 + $0x4] sm:$0xf]
      %v771 = vld [vmem:[%s768 + $0x8] sm:$0xf]
      %v772 = vld [vmem:[%s768 + $0xc] sm:$0xf]
      %v773 = vpack.c.bf16 %v765, %v765
      %v778 = vunpack.c.l.b16 %v769
      %v779 = vunpack.c.l.b16 %v770
      %v780 = vunpack.c.l.b16 %v771
      %v781 = vunpack.c.l.b16 %v772
      %v782 = vpack.c.b16 %v779, %v778
      %v783 = vpack.c.b16 %v781, %v780
      %vm784 = vcmask 31744
      %v786 = vsel %vm784, %v782, 0
      %v789 = vsel %vm784, %v783, 0
      %vm791 = vcmask 1041408
      %v793 = vsel %vm791, %v773, 0
      %795 = vmatpush.bf16.msra.mxu0 0
      %796 = vmatpush.bf16.msra.mxu0 0
      %797 = vmatpush.bf16.msra.mxu0 0
      %798 = vmatpush.bf16.msra.mxu0 0
      %799 = vmatpush.bf16.msra.mxu0 0
      %800 = vmatpush.bf16.msra.mxu0 0
      %801 = vmatpush.bf16.msra.mxu0 0
      %802 = vmatpush.bf16.msra.mxu0 %v793
      %803 = vmatmul.bf16.gmra.mxu0 %v786
      %v804 = vpop.f32.mrf.mxu0
      %v805 = vadd.f32 0.0, %v804
      %v806 = vpop.f32.mrf.mxu0
      %v807 = vadd.f32 0.0, %v806
      %808 = vmatmul.bf16.gmra.mxu0 %v789
      %v809 = vpop.f32.mrf.mxu0
      %v810 = vadd.f32 0.0, %v809
      %v811 = vpop.f32.mrf.mxu0
      %v812 = vadd.f32 0.0, %v811
      %813 = vdwg.mxu0
      %v818 = vunpack.c.l.b16 %v608
      %v819 = vunpack.c.l.b16 %v609
      %v820 = vunpack.c.l.b16 %v610
      %v821 = vunpack.c.l.b16 %v611
      %v822 = vpack.c.b16 %v819, %v818
      %v823 = vpack.c.b16 %v821, %v820
      %v825 = vsel %vm784, %v822, 0
      %v828 = vsel %vm784, %v823, 0
      %v831 = vsel %vm791, %v612, 0
      %833 = vmatpush.bf16.msra.mxu0 0
      %834 = vmatpush.bf16.msra.mxu0 0
      %835 = vmatpush.bf16.msra.mxu0 0
      %836 = vmatpush.bf16.msra.mxu0 0
      %837 = vmatpush.bf16.msra.mxu0 0
      %838 = vmatpush.bf16.msra.mxu0 0
      %839 = vmatpush.bf16.msra.mxu0 0
      %840 = vmatpush.bf16.msra.mxu0 %v831
      %841 = vmatmul.bf16.gmra.mxu0 %v825
      %v842 = vpop.f32.mrf.mxu0
      %v843 = vadd.f32 %v805, %v842
      %v844 = vpop.f32.mrf.mxu0
      %v845 = vadd.f32 %v807, %v844
      %846 = vmatmul.bf16.gmra.mxu0 %v828
      %v847 = vpop.f32.mrf.mxu0
      %v848 = vadd.f32 %v810, %v847
      %v849 = vpop.f32.mrf.mxu0
      %v850 = vadd.f32 %v812, %v849
      %851 = vdwg.mxu0
      %s852 = scalar_lea.vmem %s3, 256
      %v853 = vld [vmem:[%s852] sm:$0xf]
      %v854 = vld [vmem:[%s852 + $0x4] sm:$0xf]
      %v855 = vld [vmem:[%s852 + $0x8] sm:$0xf]
      %v856 = vld [vmem:[%s852 + $0xc] sm:$0xf]
      %v857 = vld [vmem:[%s852 + $0x10] sm:$0xf]
      %v858 = vld [vmem:[%s852 + $0x14] sm:$0xf]
      %v859 = vld [vmem:[%s852 + $0x18] sm:$0xf]
      %v860 = vld [vmem:[%s852 + $0x1c] sm:$0xf]
      %v861 = vld [vmem:[%s852 + $0x20] sm:$0xf]
      %v862 = vld [vmem:[%s852 + $0x24] sm:$0xf]
      %v863 = vld [vmem:[%s852 + $0x28] sm:$0xf]
      %v864 = vld [vmem:[%s852 + $0x2c] sm:$0xf]
      %v865 = vld [vmem:[%s852 + $0x30] sm:$0xf]
      %v866 = vld [vmem:[%s852 + $0x34] sm:$0xf]
      %v867 = vld [vmem:[%s852 + $0x38] sm:$0xf]
      %v868 = vld [vmem:[%s852 + $0x3c] sm:$0xf]
      %v869 = vld [vmem:[%s852 + $0x40] sm:$0xf]
      %v870 = vld [vmem:[%s852 + $0x44] sm:$0xf]
      %v871 = vld [vmem:[%s852 + $0x48] sm:$0xf]
      %v872 = vld [vmem:[%s852 + $0x4c] sm:$0xf]
      %v873 = vld [vmem:[%s852 + $0x50] sm:$0xf]
      %v874 = vld [vmem:[%s852 + $0x54] sm:$0xf]
      %v875 = vld [vmem:[%s852 + $0x58] sm:$0xf]
      %v876 = vld [vmem:[%s852 + $0x5c] sm:$0xf]
      %v877 = vld [vmem:[%s852 + $0x60] sm:$0xf]
      %v878 = vld [vmem:[%s852 + $0x64] sm:$0xf]
      %v879 = vld [vmem:[%s852 + $0x68] sm:$0xf]
      %v880 = vld [vmem:[%s852 + $0x6c] sm:$0xf]
      %v881 = vld [vmem:[%s852 + $0x70] sm:$0xf]
      %v882 = vld [vmem:[%s852 + $0x74] sm:$0xf]
      %v883 = vld [vmem:[%s852 + $0x78] sm:$0xf]
      %v884 = vld [vmem:[%s852 + $0x7c] sm:$0xf]
      %v917 = vunpack.c.l.b16 %v853
      %v918 = vunpack.c.l.b16 %v854
      %v919 = vunpack.c.l.b16 %v855
      %v920 = vunpack.c.l.b16 %v856
      %v921 = vunpack.c.l.b16 %v857
      %v922 = vunpack.c.l.b16 %v858
      %v923 = vunpack.c.l.b16 %v859
      %v924 = vunpack.c.l.b16 %v860
      %v925 = vunpack.c.l.b16 %v861
      %v926 = vunpack.c.l.b16 %v862
      %v927 = vunpack.c.l.b16 %v863
      %v928 = vunpack.c.l.b16 %v864
      %v929 = vunpack.c.l.b16 %v865
      %v930 = vunpack.c.l.b16 %v866
      %v931 = vunpack.c.l.b16 %v867
      %v932 = vunpack.c.l.b16 %v868
      %v933 = vunpack.c.l.b16 %v869
      %v934 = vunpack.c.l.b16 %v870
      %v935 = vunpack.c.l.b16 %v871
      %v936 = vunpack.c.l.b16 %v872
      %v937 = vunpack.c.l.b16 %v873
      %v938 = vunpack.c.l.b16 %v874
      %v939 = vunpack.c.l.b16 %v875
      %v940 = vunpack.c.l.b16 %v876
      %v941 = vunpack.c.l.b16 %v877
      %v942 = vunpack.c.l.b16 %v878
      %v943 = vunpack.c.l.b16 %v879
      %v944 = vunpack.c.l.b16 %v880
      %v945 = vunpack.c.l.b16 %v881
      %v946 = vunpack.c.l.b16 %v882
      %v947 = vunpack.c.l.b16 %v883
      %v948 = vunpack.c.l.b16 %v884
      %v949 = vpack.c.b16 %v918, %v917
      %v950 = vpack.c.b16 %v920, %v919
      %v951 = vpack.c.b16 %v922, %v921
      %v952 = vpack.c.b16 %v924, %v923
      %v953 = vpack.c.b16 %v926, %v925
      %v954 = vpack.c.b16 %v928, %v927
      %v955 = vpack.c.b16 %v930, %v929
      %v956 = vpack.c.b16 %v932, %v931
      %v957 = vpack.c.b16 %v934, %v933
      %v958 = vpack.c.b16 %v936, %v935
      %v959 = vpack.c.b16 %v938, %v937
      %v960 = vpack.c.b16 %v940, %v939
      %v961 = vpack.c.b16 %v942, %v941
      %v962 = vpack.c.b16 %v944, %v943
      %v963 = vpack.c.b16 %v946, %v945
      %v964 = vpack.c.b16 %v948, %v947
      %981 = vmatpush.bf16.msra.mxu0 %v956
      %982 = vmatpush.bf16.msra.mxu0 %v955
      %983 = vmatpush.bf16.msra.mxu0 %v954
      %984 = vmatpush.bf16.msra.mxu0 %v953
      %985 = vmatpush.bf16.msra.mxu0 %v952
      %986 = vmatpush.bf16.msra.mxu0 %v951
      %987 = vmatpush.bf16.msra.mxu0 %v950
      %988 = vmatpush.bf16.msra.mxu0 %v949
      %989 = vmatmul.bf16.gmra.mxu0 %v452
      %v990 = vpop.f32.mrf.mxu0
      %v991 = vadd.f32 0.0, %v990
      %v992 = vpop.f32.mrf.mxu0
      %993 = vdwg.mxu0
      %994 = vmatpush.bf16.msra.mxu0 %v964
      %995 = vmatpush.bf16.msra.mxu0 %v963
      %996 = vmatpush.bf16.msra.mxu0 %v962
      %997 = vmatpush.bf16.msra.mxu0 %v961
      %998 = vmatpush.bf16.msra.mxu0 %v960
      %999 = vmatpush.bf16.msra.mxu0 %v959
      %1000 = vmatpush.bf16.msra.mxu0 %v958
      %1001 = vmatpush.bf16.msra.mxu0 %v957
      %1002 = vmatmul.bf16.gmra.mxu0 %v453
      %v1003 = vpop.f32.mrf.mxu0
      %v1004 = vadd.f32 %v991, %v1003
      %v1005 = vpop.f32.mrf.mxu0
      %1006 = vdwg.mxu0
      %s1007 = scalar_lea.vmem %s1, 32
      %v1008 = vld [vmem:[%s1007] sm:$0xf]
      %v1009 = vld [vmem:[%s1007 + $0x4] sm:$0xf]
      %v1010 = vld [vmem:[%s1007 + $0x8] sm:$0xf]
      %v1011 = vld [vmem:[%s1007 + $0xc] sm:$0xf]
      %v1012 = vpack.c.bf16 %v1004, %v1004
      %v1017 = vunpack.c.l.b16 %v1008
      %v1018 = vunpack.c.l.b16 %v1009
      %v1019 = vunpack.c.l.b16 %v1010
      %v1020 = vunpack.c.l.b16 %v1011
      %v1021 = vpack.c.b16 %v1018, %v1017
      %v1022 = vpack.c.b16 %v1020, %v1019
      %v1024 = vsel %vm784, %v1021, 0
      %v1027 = vsel %vm784, %v1022, 0
      %v1030 = vsel %vm791, %v1012, 0
      %1032 = vmatpush.bf16.msra.mxu0 0
      %1033 = vmatpush.bf16.msra.mxu0 0
      %1034 = vmatpush.bf16.msra.mxu0 0
      %1035 = vmatpush.bf16.msra.mxu0 0
      %1036 = vmatpush.bf16.msra.mxu0 0
      %1037 = vmatpush.bf16.msra.mxu0 0
      %1038 = vmatpush.bf16.msra.mxu0 0
      %1039 = vmatpush.bf16.msra.mxu0 %v1030
      %1040 = vmatmul.bf16.gmra.mxu0 %v1024
      %v1041 = vpop.f32.mrf.mxu0
      %v1042 = vadd.f32 0.0, %v1041
      %v1043 = vpop.f32.mrf.mxu0
      %v1044 = vadd.f32 0.0, %v1043
      %1045 = vmatmul.bf16.gmra.mxu0 %v1027
      %v1046 = vpop.f32.mrf.mxu0
      %v1047 = vadd.f32 0.0, %v1046
      %v1048 = vpop.f32.mrf.mxu0
      %v1049 = vadd.f32 0.0, %v1048
      %1050 = vdwg.mxu0
      %v1051 = vadd.f32 %v843, %v1042
      %v1052 = vadd.f32 %v845, %v1044
      %v1053 = vadd.f32 %v848, %v1047
      %v1054 = vadd.f32 %v850, %v1049
      %s1055 = scalar_lea.vmem %s3, 384
      %v1056 = vld [vmem:[%s1055] sm:$0xf]
      %v1057 = vld [vmem:[%s1055 + $0x4] sm:$0xf]
      %v1058 = vld [vmem:[%s1055 + $0x8] sm:$0xf]
      %v1059 = vld [vmem:[%s1055 + $0xc] sm:$0xf]
      %v1060 = vld [vmem:[%s1055 + $0x10] sm:$0xf]
      %v1061 = vld [vmem:[%s1055 + $0x14] sm:$0xf]
      %v1062 = vld [vmem:[%s1055 + $0x18] sm:$0xf]
      %v1063 = vld [vmem:[%s1055 + $0x1c] sm:$0xf]
      %v1064 = vld [vmem:[%s1055 + $0x20] sm:$0xf]
      %v1065 = vld [vmem:[%s1055 + $0x24] sm:$0xf]
      %v1066 = vld [vmem:[%s1055 + $0x28] sm:$0xf]
      %v1067 = vld [vmem:[%s1055 + $0x2c] sm:$0xf]
      %v1068 = vld [vmem:[%s1055 + $0x30] sm:$0xf]
      %v1069 = vld [vmem:[%s1055 + $0x34] sm:$0xf]
      %v1070 = vld [vmem:[%s1055 + $0x38] sm:$0xf]
      %v1071 = vld [vmem:[%s1055 + $0x3c] sm:$0xf]
      %v1072 = vld [vmem:[%s1055 + $0x40] sm:$0xf]
      %v1073 = vld [vmem:[%s1055 + $0x44] sm:$0xf]
      %v1074 = vld [vmem:[%s1055 + $0x48] sm:$0xf]
      %v1075 = vld [vmem:[%s1055 + $0x4c] sm:$0xf]
      %v1076 = vld [vmem:[%s1055 + $0x50] sm:$0xf]
      %v1077 = vld [vmem:[%s1055 + $0x54] sm:$0xf]
      %v1078 = vld [vmem:[%s1055 + $0x58] sm:$0xf]
      %v1079 = vld [vmem:[%s1055 + $0x5c] sm:$0xf]
      %v1080 = vld [vmem:[%s1055 + $0x60] sm:$0xf]
      %v1081 = vld [vmem:[%s1055 + $0x64] sm:$0xf]
      %v1082 = vld [vmem:[%s1055 + $0x68] sm:$0xf]
      %v1083 = vld [vmem:[%s1055 + $0x6c] sm:$0xf]
      %v1084 = vld [vmem:[%s1055 + $0x70] sm:$0xf]
      %v1085 = vld [vmem:[%s1055 + $0x74] sm:$0xf]
      %v1086 = vld [vmem:[%s1055 + $0x78] sm:$0xf]
      %v1087 = vld [vmem:[%s1055 + $0x7c] sm:$0xf]
      %v1120 = vunpack.c.l.b16 %v1056
      %v1121 = vunpack.c.l.b16 %v1057
      %v1122 = vunpack.c.l.b16 %v1058
      %v1123 = vunpack.c.l.b16 %v1059
      %v1124 = vunpack.c.l.b16 %v1060
      %v1125 = vunpack.c.l.b16 %v1061
      %v1126 = vunpack.c.l.b16 %v1062
      %v1127 = vunpack.c.l.b16 %v1063
      %v1128 = vunpack.c.l.b16 %v1064
      %v1129 = vunpack.c.l.b16 %v1065
      %v1130 = vunpack.c.l.b16 %v1066
      %v1131 = vunpack.c.l.b16 %v1067
      %v1132 = vunpack.c.l.b16 %v1068
      %v1133 = vunpack.c.l.b16 %v1069
      %v1134 = vunpack.c.l.b16 %v1070
      %v1135 = vunpack.c.l.b16 %v1071
      %v1136 = vunpack.c.l.b16 %v1072
      %v1137 = vunpack.c.l.b16 %v1073
      %v1138 = vunpack.c.l.b16 %v1074
      %v1139 = vunpack.c.l.b16 %v1075
      %v1140 = vunpack.c.l.b16 %v1076
      %v1141 = vunpack.c.l.b16 %v1077
      %v1142 = vunpack.c.l.b16 %v1078
      %v1143 = vunpack.c.l.b16 %v1079
      %v1144 = vunpack.c.l.b16 %v1080
      %v1145 = vunpack.c.l.b16 %v1081
      %v1146 = vunpack.c.l.b16 %v1082
      %v1147 = vunpack.c.l.b16 %v1083
      %v1148 = vunpack.c.l.b16 %v1084
      %v1149 = vunpack.c.l.b16 %v1085
      %v1150 = vunpack.c.l.b16 %v1086
      %v1151 = vunpack.c.l.b16 %v1087
      %v1152 = vpack.c.b16 %v1121, %v1120
      %v1153 = vpack.c.b16 %v1123, %v1122
      %v1154 = vpack.c.b16 %v1125, %v1124
      %v1155 = vpack.c.b16 %v1127, %v1126
      %v1156 = vpack.c.b16 %v1129, %v1128
      %v1157 = vpack.c.b16 %v1131, %v1130
      %v1158 = vpack.c.b16 %v1133, %v1132
      %v1159 = vpack.c.b16 %v1135, %v1134
      %v1160 = vpack.c.b16 %v1137, %v1136
      %v1161 = vpack.c.b16 %v1139, %v1138
      %v1162 = vpack.c.b16 %v1141, %v1140
      %v1163 = vpack.c.b16 %v1143, %v1142
      %v1164 = vpack.c.b16 %v1145, %v1144
      %v1165 = vpack.c.b16 %v1147, %v1146
      %v1166 = vpack.c.b16 %v1149, %v1148
      %v1167 = vpack.c.b16 %v1151, %v1150
      %1184 = vmatpush.bf16.msra.mxu0 %v1159
      %1185 = vmatpush.bf16.msra.mxu0 %v1158
      %1186 = vmatpush.bf16.msra.mxu0 %v1157
      %1187 = vmatpush.bf16.msra.mxu0 %v1156
      %1188 = vmatpush.bf16.msra.mxu0 %v1155
      %1189 = vmatpush.bf16.msra.mxu0 %v1154
      %1190 = vmatpush.bf16.msra.mxu0 %v1153
      %1191 = vmatpush.bf16.msra.mxu0 %v1152
      %1192 = vmatmul.bf16.gmra.mxu0 %v452
      %v1193 = vpop.f32.mrf.mxu0
      %v1194 = vadd.f32 0.0, %v1193
      %v1195 = vpop.f32.mrf.mxu0
      %1196 = vdwg.mxu0
      %1197 = vmatpush.bf16.msra.mxu0 %v1167
      %1198 = vmatpush.bf16.msra.mxu0 %v1166
      %1199 = vmatpush.bf16.msra.mxu0 %v1165
      %1200 = vmatpush.bf16.msra.mxu0 %v1164
      %1201 = vmatpush.bf16.msra.mxu0 %v1163
      %1202 = vmatpush.bf16.msra.mxu0 %v1162
      %1203 = vmatpush.bf16.msra.mxu0 %v1161
      %1204 = vmatpush.bf16.msra.mxu0 %v1160
      %1205 = vmatmul.bf16.gmra.mxu0 %v453
      %v1206 = vpop.f32.mrf.mxu0
      %v1207 = vadd.f32 %v1194, %v1206
      %v1208 = vpop.f32.mrf.mxu0
      %1209 = vdwg.mxu0
      %s1210 = scalar_lea.vmem %s1, 48
      %v1211 = vld [vmem:[%s1210] sm:$0xf]
      %v1212 = vld [vmem:[%s1210 + $0x4] sm:$0xf]
      %v1213 = vld [vmem:[%s1210 + $0x8] sm:$0xf]
      %v1214 = vld [vmem:[%s1210 + $0xc] sm:$0xf]
      %v1215 = vpack.c.bf16 %v1207, %v1207
      %v1220 = vunpack.c.l.b16 %v1211
      %v1221 = vunpack.c.l.b16 %v1212
      %v1222 = vunpack.c.l.b16 %v1213
      %v1223 = vunpack.c.l.b16 %v1214
      %v1224 = vpack.c.b16 %v1221, %v1220
      %v1225 = vpack.c.b16 %v1223, %v1222
      %v1227 = vsel %vm784, %v1224, 0
      %v1230 = vsel %vm784, %v1225, 0
      %v1233 = vsel %vm791, %v1215, 0
      %1235 = vmatpush.bf16.msra.mxu0 0
      %1236 = vmatpush.bf16.msra.mxu0 0
      %1237 = vmatpush.bf16.msra.mxu0 0
      %1238 = vmatpush.bf16.msra.mxu0 0
      %1239 = vmatpush.bf16.msra.mxu0 0
      %1240 = vmatpush.bf16.msra.mxu0 0
      %1241 = vmatpush.bf16.msra.mxu0 0
      %1242 = vmatpush.bf16.msra.mxu0 %v1233
      %1243 = vmatmul.bf16.gmra.mxu0 %v1227
      %v1244 = vpop.f32.mrf.mxu0
      %v1245 = vadd.f32 0.0, %v1244
      %v1246 = vpop.f32.mrf.mxu0
      %v1247 = vadd.f32 0.0, %v1246
      %1248 = vmatmul.bf16.gmra.mxu0 %v1230
      %v1249 = vpop.f32.mrf.mxu0
      %v1250 = vadd.f32 0.0, %v1249
      %v1251 = vpop.f32.mrf.mxu0
      %v1252 = vadd.f32 0.0, %v1251
      %1253 = vdwg.mxu0
      %v1254 = vadd.f32 %v1051, %v1245
      %v1255 = vadd.f32 %v1052, %v1247
      %v1256 = vadd.f32 %v1053, %v1250
      %v1257 = vadd.f32 %v1054, %v1252
      %s1258 = scalar_lea.vmem %s3, 512
      %v1259 = vld [vmem:[%s1258] sm:$0xf]
      %v1260 = vld [vmem:[%s1258 + $0x4] sm:$0xf]
      %v1261 = vld [vmem:[%s1258 + $0x8] sm:$0xf]
      %v1262 = vld [vmem:[%s1258 + $0xc] sm:$0xf]
      %v1263 = vld [vmem:[%s1258 + $0x10] sm:$0xf]
      %v1264 = vld [vmem:[%s1258 + $0x14] sm:$0xf]
      %v1265 = vld [vmem:[%s1258 + $0x18] sm:$0xf]
      %v1266 = vld [vmem:[%s1258 + $0x1c] sm:$0xf]
      %v1267 = vld [vmem:[%s1258 + $0x20] sm:$0xf]
      %v1268 = vld [vmem:[%s1258 + $0x24] sm:$0xf]
      %v1269 = vld [vmem:[%s1258 + $0x28] sm:$0xf]
      %v1270 = vld [vmem:[%s1258 + $0x2c] sm:$0xf]
      %v1271 = vld [vmem:[%s1258 + $0x30] sm:$0xf]
      %v1272 = vld [vmem:[%s1258 + $0x34] sm:$0xf]
      %v1273 = vld [vmem:[%s1258 + $0x38] sm:$0xf]
      %v1274 = vld [vmem:[%s1258 + $0x3c] sm:$0xf]
      %v1275 = vld [vmem:[%s1258 + $0x40] sm:$0xf]
      %v1276 = vld [vmem:[%s1258 + $0x44] sm:$0xf]
      %v1277 = vld [vmem:[%s1258 + $0x48] sm:$0xf]
      %v1278 = vld [vmem:[%s1258 + $0x4c] sm:$0xf]
      %v1279 = vld [vmem:[%s1258 + $0x50] sm:$0xf]
      %v1280 = vld [vmem:[%s1258 + $0x54] sm:$0xf]
      %v1281 = vld [vmem:[%s1258 + $0x58] sm:$0xf]
      %v1282 = vld [vmem:[%s1258 + $0x5c] sm:$0xf]
      %v1283 = vld [vmem:[%s1258 + $0x60] sm:$0xf]
      %v1284 = vld [vmem:[%s1258 + $0x64] sm:$0xf]
      %v1285 = vld [vmem:[%s1258 + $0x68] sm:$0xf]
      %v1286 = vld [vmem:[%s1258 + $0x6c] sm:$0xf]
      %v1287 = vld [vmem:[%s1258 + $0x70] sm:$0xf]
      %v1288 = vld [vmem:[%s1258 + $0x74] sm:$0xf]
      %v1289 = vld [vmem:[%s1258 + $0x78] sm:$0xf]
      %v1290 = vld [vmem:[%s1258 + $0x7c] sm:$0xf]
      %v1323 = vunpack.c.l.b16 %v1259
      %v1324 = vunpack.c.l.b16 %v1260
      %v1325 = vunpack.c.l.b16 %v1261
      %v1326 = vunpack.c.l.b16 %v1262
      %v1327 = vunpack.c.l.b16 %v1263
      %v1328 = vunpack.c.l.b16 %v1264
      %v1329 = vunpack.c.l.b16 %v1265
      %v1330 = vunpack.c.l.b16 %v1266
      %v1331 = vunpack.c.l.b16 %v1267
      %v1332 = vunpack.c.l.b16 %v1268
      %v1333 = vunpack.c.l.b16 %v1269
      %v1334 = vunpack.c.l.b16 %v1270
      %v1335 = vunpack.c.l.b16 %v1271
      %v1336 = vunpack.c.l.b16 %v1272
      %v1337 = vunpack.c.l.b16 %v1273
      %v1338 = vunpack.c.l.b16 %v1274
      %v1339 = vunpack.c.l.b16 %v1275
      %v1340 = vunpack.c.l.b16 %v1276
      %v1341 = vunpack.c.l.b16 %v1277
      %v1342 = vunpack.c.l.b16 %v1278
      %v1343 = vunpack.c.l.b16 %v1279
      %v1344 = vunpack.c.l.b16 %v1280
      %v1345 = vunpack.c.l.b16 %v1281
      %v1346 = vunpack.c.l.b16 %v1282
      %v1347 = vunpack.c.l.b16 %v1283
      %v1348 = vunpack.c.l.b16 %v1284
      %v1349 = vunpack.c.l.b16 %v1285
      %v1350 = vunpack.c.l.b16 %v1286
      %v1351 = vunpack.c.l.b16 %v1287
      %v1352 = vunpack.c.l.b16 %v1288
      %v1353 = vunpack.c.l.b16 %v1289
      %v1354 = vunpack.c.l.b16 %v1290
      %v1355 = vpack.c.b16 %v1324, %v1323
      %v1356 = vpack.c.b16 %v1326, %v1325
      %v1357 = vpack.c.b16 %v1328, %v1327
      %v1358 = vpack.c.b16 %v1330, %v1329
      %v1359 = vpack.c.b16 %v1332, %v1331
      %v1360 = vpack.c.b16 %v1334, %v1333
      %v1361 = vpack.c.b16 %v1336, %v1335
      %v1362 = vpack.c.b16 %v1338, %v1337
      %v1363 = vpack.c.b16 %v1340, %v1339
      %v1364 = vpack.c.b16 %v1342, %v1341
      %v1365 = vpack.c.b16 %v1344, %v1343
      %v1366 = vpack.c.b16 %v1346, %v1345
      %v1367 = vpack.c.b16 %v1348, %v1347
      %v1368 = vpack.c.b16 %v1350, %v1349
      %v1369 = vpack.c.b16 %v1352, %v1351
      %v1370 = vpack.c.b16 %v1354, %v1353
      %1387 = vmatpush.bf16.msra.mxu0 %v1362
      %1388 = vmatpush.bf16.msra.mxu0 %v1361
      %1389 = vmatpush.bf16.msra.mxu0 %v1360
      %1390 = vmatpush.bf16.msra.mxu0 %v1359
      %1391 = vmatpush.bf16.msra.mxu0 %v1358
      %1392 = vmatpush.bf16.msra.mxu0 %v1357
      %1393 = vmatpush.bf16.msra.mxu0 %v1356
      %1394 = vmatpush.bf16.msra.mxu0 %v1355
      %1395 = vmatmul.bf16.gmra.mxu0 %v452
      %v1396 = vpop.f32.mrf.mxu0
      %v1397 = vadd.f32 0.0, %v1396
      %v1398 = vpop.f32.mrf.mxu0
      %1399 = vdwg.mxu0
      %1400 = vmatpush.bf16.msra.mxu0 %v1370
      %1401 = vmatpush.bf16.msra.mxu0 %v1369
      %1402 = vmatpush.bf16.msra.mxu0 %v1368
      %1403 = vmatpush.bf16.msra.mxu0 %v1367
      %1404 = vmatpush.bf16.msra.mxu0 %v1366
      %1405 = vmatpush.bf16.msra.mxu0 %v1365
      %1406 = vmatpush.bf16.msra.mxu0 %v1364
      %1407 = vmatpush.bf16.msra.mxu0 %v1363
      %1408 = vmatmul.bf16.gmra.mxu0 %v453
      %v1409 = vpop.f32.mrf.mxu0
      %v1410 = vadd.f32 %v1397, %v1409
      %v1411 = vpop.f32.mrf.mxu0
      %1412 = vdwg.mxu0
      %s1413 = scalar_lea.vmem %s1, 64
      %v1414 = vld [vmem:[%s1413] sm:$0xf]
      %v1415 = vld [vmem:[%s1413 + $0x4] sm:$0xf]
      %v1416 = vld [vmem:[%s1413 + $0x8] sm:$0xf]
      %v1417 = vld [vmem:[%s1413 + $0xc] sm:$0xf]
      %v1418 = vpack.c.bf16 %v1410, %v1410
      %v1423 = vunpack.c.l.b16 %v1414
      %v1424 = vunpack.c.l.b16 %v1415
      %v1425 = vunpack.c.l.b16 %v1416
      %v1426 = vunpack.c.l.b16 %v1417
      %v1427 = vpack.c.b16 %v1424, %v1423
      %v1428 = vpack.c.b16 %v1426, %v1425
      %v1430 = vsel %vm784, %v1427, 0
      %v1433 = vsel %vm784, %v1428, 0
      %v1436 = vsel %vm791, %v1418, 0
      %1438 = vmatpush.bf16.msra.mxu0 0
      %1439 = vmatpush.bf16.msra.mxu0 0
      %1440 = vmatpush.bf16.msra.mxu0 0
      %1441 = vmatpush.bf16.msra.mxu0 0
      %1442 = vmatpush.bf16.msra.mxu0 0
      %1443 = vmatpush.bf16.msra.mxu0 0
      %1444 = vmatpush.bf16.msra.mxu0 0
      %1445 = vmatpush.bf16.msra.mxu0 %v1436
      %1446 = vmatmul.bf16.gmra.mxu0 %v1430
      %v1447 = vpop.f32.mrf.mxu0
      %v1448 = vadd.f32 0.0, %v1447
      %v1449 = vpop.f32.mrf.mxu0
      %v1450 = vadd.f32 0.0, %v1449
      %1451 = vmatmul.bf16.gmra.mxu0 %v1433
      %v1452 = vpop.f32.mrf.mxu0
      %v1453 = vadd.f32 0.0, %v1452
      %v1454 = vpop.f32.mrf.mxu0
      %v1455 = vadd.f32 0.0, %v1454
      %1456 = vdwg.mxu0
      %v1457 = vadd.f32 %v1254, %v1448
      %v1458 = vadd.f32 %v1255, %v1450
      %v1459 = vadd.f32 %v1256, %v1453
      %v1460 = vadd.f32 %v1257, %v1455
      %s1461 = scalar_lea.vmem %s3, 640
      %v1462 = vld [vmem:[%s1461] sm:$0xf]
      %v1463 = vld [vmem:[%s1461 + $0x4] sm:$0xf]
      %v1464 = vld [vmem:[%s1461 + $0x8] sm:$0xf]
      %v1465 = vld [vmem:[%s1461 + $0xc] sm:$0xf]
      %v1466 = vld [vmem:[%s1461 + $0x10] sm:$0xf]
      %v1467 = vld [vmem:[%s1461 + $0x14] sm:$0xf]
      %v1468 = vld [vmem:[%s1461 + $0x18] sm:$0xf]
      %v1469 = vld [vmem:[%s1461 + $0x1c] sm:$0xf]
      %v1470 = vld [vmem:[%s1461 + $0x20] sm:$0xf]
      %v1471 = vld [vmem:[%s1461 + $0x24] sm:$0xf]
      %v1472 = vld [vmem:[%s1461 + $0x28] sm:$0xf]
      %v1473 = vld [vmem:[%s1461 + $0x2c] sm:$0xf]
      %v1474 = vld [vmem:[%s1461 + $0x30] sm:$0xf]
      %v1475 = vld [vmem:[%s1461 + $0x34] sm:$0xf]
      %v1476 = vld [vmem:[%s1461 + $0x38] sm:$0xf]
      %v1477 = vld [vmem:[%s1461 + $0x3c] sm:$0xf]
      %v1478 = vld [vmem:[%s1461 + $0x40] sm:$0xf]
      %v1479 = vld [vmem:[%s1461 + $0x44] sm:$0xf]
      %v1480 = vld [vmem:[%s1461 + $0x48] sm:$0xf]
      %v1481 = vld [vmem:[%s1461 + $0x4c] sm:$0xf]
      %v1482 = vld [vmem:[%s1461 + $0x50] sm:$0xf]
      %v1483 = vld [vmem:[%s1461 + $0x54] sm:$0xf]
      %v1484 = vld [vmem:[%s1461 + $0x58] sm:$0xf]
      %v1485 = vld [vmem:[%s1461 + $0x5c] sm:$0xf]
      %v1486 = vld [vmem:[%s1461 + $0x60] sm:$0xf]
      %v1487 = vld [vmem:[%s1461 + $0x64] sm:$0xf]
      %v1488 = vld [vmem:[%s1461 + $0x68] sm:$0xf]
      %v1489 = vld [vmem:[%s1461 + $0x6c] sm:$0xf]
      %v1490 = vld [vmem:[%s1461 + $0x70] sm:$0xf]
      %v1491 = vld [vmem:[%s1461 + $0x74] sm:$0xf]
      %v1492 = vld [vmem:[%s1461 + $0x78] sm:$0xf]
      %v1493 = vld [vmem:[%s1461 + $0x7c] sm:$0xf]
      %v1526 = vunpack.c.l.b16 %v1462
      %v1527 = vunpack.c.l.b16 %v1463
      %v1528 = vunpack.c.l.b16 %v1464
      %v1529 = vunpack.c.l.b16 %v1465
      %v1530 = vunpack.c.l.b16 %v1466
      %v1531 = vunpack.c.l.b16 %v1467
      %v1532 = vunpack.c.l.b16 %v1468
      %v1533 = vunpack.c.l.b16 %v1469
      %v1534 = vunpack.c.l.b16 %v1470
      %v1535 = vunpack.c.l.b16 %v1471
      %v1536 = vunpack.c.l.b16 %v1472
      %v1537 = vunpack.c.l.b16 %v1473
      %v1538 = vunpack.c.l.b16 %v1474
      %v1539 = vunpack.c.l.b16 %v1475
      %v1540 = vunpack.c.l.b16 %v1476
      %v1541 = vunpack.c.l.b16 %v1477
      %v1542 = vunpack.c.l.b16 %v1478
      %v1543 = vunpack.c.l.b16 %v1479
      %v1544 = vunpack.c.l.b16 %v1480
      %v1545 = vunpack.c.l.b16 %v1481
      %v1546 = vunpack.c.l.b16 %v1482
      %v1547 = vunpack.c.l.b16 %v1483
      %v1548 = vunpack.c.l.b16 %v1484
      %v1549 = vunpack.c.l.b16 %v1485
      %v1550 = vunpack.c.l.b16 %v1486
      %v1551 = vunpack.c.l.b16 %v1487
      %v1552 = vunpack.c.l.b16 %v1488
      %v1553 = vunpack.c.l.b16 %v1489
      %v1554 = vunpack.c.l.b16 %v1490
      %v1555 = vunpack.c.l.b16 %v1491
      %v1556 = vunpack.c.l.b16 %v1492
      %v1557 = vunpack.c.l.b16 %v1493
      %v1558 = vpack.c.b16 %v1527, %v1526
      %v1559 = vpack.c.b16 %v1529, %v1528
      %v1560 = vpack.c.b16 %v1531, %v1530
      %v1561 = vpack.c.b16 %v1533, %v1532
      %v1562 = vpack.c.b16 %v1535, %v1534
      %v1563 = vpack.c.b16 %v1537, %v1536
      %v1564 = vpack.c.b16 %v1539, %v1538
      %v1565 = vpack.c.b16 %v1541, %v1540
      %v1566 = vpack.c.b16 %v1543, %v1542
      %v1567 = vpack.c.b16 %v1545, %v1544
      %v1568 = vpack.c.b16 %v1547, %v1546
      %v1569 = vpack.c.b16 %v1549, %v1548
      %v1570 = vpack.c.b16 %v1551, %v1550
      %v1571 = vpack.c.b16 %v1553, %v1552
      %v1572 = vpack.c.b16 %v1555, %v1554
      %v1573 = vpack.c.b16 %v1557, %v1556
      %1590 = vmatpush.bf16.msra.mxu0 %v1565
      %1591 = vmatpush.bf16.msra.mxu0 %v1564
      %1592 = vmatpush.bf16.msra.mxu0 %v1563
      %1593 = vmatpush.bf16.msra.mxu0 %v1562
      %1594 = vmatpush.bf16.msra.mxu0 %v1561
      %1595 = vmatpush.bf16.msra.mxu0 %v1560
      %1596 = vmatpush.bf16.msra.mxu0 %v1559
      %1597 = vmatpush.bf16.msra.mxu0 %v1558
      %1598 = vmatmul.bf16.gmra.mxu0 %v452
      %v1599 = vpop.f32.mrf.mxu0
      %v1600 = vadd.f32 0.0, %v1599
      %v1601 = vpop.f32.mrf.mxu0
      %1602 = vdwg.mxu0
      %1603 = vmatpush.bf16.msra.mxu0 %v1573
      %1604 = vmatpush.bf16.msra.mxu0 %v1572
      %1605 = vmatpush.bf16.msra.mxu0 %v1571
      %1606 = vmatpush.bf16.msra.mxu0 %v1570
      %1607 = vmatpush.bf16.msra.mxu0 %v1569
      %1608 = vmatpush.bf16.msra.mxu0 %v1568
      %1609 = vmatpush.bf16.msra.mxu0 %v1567
      %1610 = vmatpush.bf16.msra.mxu0 %v1566
      %1611 = vmatmul.bf16.gmra.mxu0 %v453
      %v1612 = vpop.f32.mrf.mxu0
      %v1613 = vadd.f32 %v1600, %v1612
      %v1614 = vpop.f32.mrf.mxu0
      %1615 = vdwg.mxu0
      %s1616 = scalar_lea.vmem %s1, 80
      %v1617 = vld [vmem:[%s1616] sm:$0xf]
      %v1618 = vld [vmem:[%s1616 + $0x4] sm:$0xf]
      %v1619 = vld [vmem:[%s1616 + $0x8] sm:$0xf]
      %v1620 = vld [vmem:[%s1616 + $0xc] sm:$0xf]
      %v1621 = vpack.c.bf16 %v1613, %v1613
      %v1626 = vunpack.c.l.b16 %v1617
      %v1627 = vunpack.c.l.b16 %v1618
      %v1628 = vunpack.c.l.b16 %v1619
      %v1629 = vunpack.c.l.b16 %v1620
      %v1630 = vpack.c.b16 %v1627, %v1626
      %v1631 = vpack.c.b16 %v1629, %v1628
      %v1633 = vsel %vm784, %v1630, 0
      %v1636 = vsel %vm784, %v1631, 0
      %v1639 = vsel %vm791, %v1621, 0
      %1641 = vmatpush.bf16.msra.mxu0 0
      %1642 = vmatpush.bf16.msra.mxu0 0
      %1643 = vmatpush.bf16.msra.mxu0 0
      %1644 = vmatpush.bf16.msra.mxu0 0
      %1645 = vmatpush.bf16.msra.mxu0 0
      %1646 = vmatpush.bf16.msra.mxu0 0
      %1647 = vmatpush.bf16.msra.mxu0 0
      %1648 = vmatpush.bf16.msra.mxu0 %v1639
      %1649 = vmatmul.bf16.gmra.mxu0 %v1633
      %v1650 = vpop.f32.mrf.mxu0
      %v1651 = vadd.f32 0.0, %v1650
      %v1652 = vpop.f32.mrf.mxu0
      %v1653 = vadd.f32 0.0, %v1652
      %1654 = vmatmul.bf16.gmra.mxu0 %v1636
      %v1655 = vpop.f32.mrf.mxu0
      %v1656 = vadd.f32 0.0, %v1655
      %v1657 = vpop.f32.mrf.mxu0
      %v1658 = vadd.f32 0.0, %v1657
      %1659 = vdwg.mxu0
      %v1660 = vadd.f32 %v1457, %v1651
      %v1661 = vadd.f32 %v1458, %v1653
      %v1662 = vadd.f32 %v1459, %v1656
      %v1663 = vadd.f32 %v1460, %v1658
      %s1664 = scalar_lea.vmem %s3, 768
      %v1665 = vld [vmem:[%s1664] sm:$0xf]
      %v1666 = vld [vmem:[%s1664 + $0x4] sm:$0xf]
      %v1667 = vld [vmem:[%s1664 + $0x8] sm:$0xf]
      %v1668 = vld [vmem:[%s1664 + $0xc] sm:$0xf]
      %v1669 = vld [vmem:[%s1664 + $0x10] sm:$0xf]
      %v1670 = vld [vmem:[%s1664 + $0x14] sm:$0xf]
      %v1671 = vld [vmem:[%s1664 + $0x18] sm:$0xf]
      %v1672 = vld [vmem:[%s1664 + $0x1c] sm:$0xf]
      %v1673 = vld [vmem:[%s1664 + $0x20] sm:$0xf]
      %v1674 = vld [vmem:[%s1664 + $0x24] sm:$0xf]
      %v1675 = vld [vmem:[%s1664 + $0x28] sm:$0xf]
      %v1676 = vld [vmem:[%s1664 + $0x2c] sm:$0xf]
      %v1677 = vld [vmem:[%s1664 + $0x30] sm:$0xf]
      %v1678 = vld [vmem:[%s1664 + $0x34] sm:$0xf]
      %v1679 = vld [vmem:[%s1664 + $0x38] sm:$0xf]
      %v1680 = vld [vmem:[%s1664 + $0x3c] sm:$0xf]
      %v1681 = vld [vmem:[%s1664 + $0x40] sm:$0xf]
      %v1682 = vld [vmem:[%s1664 + $0x44] sm:$0xf]
      %v1683 = vld [vmem:[%s1664 + $0x48] sm:$0xf]
      %v1684 = vld [vmem:[%s1664 + $0x4c] sm:$0xf]
      %v1685 = vld [vmem:[%s1664 + $0x50] sm:$0xf]
      %v1686 = vld [vmem:[%s1664 + $0x54] sm:$0xf]
      %v1687 = vld [vmem:[%s1664 + $0x58] sm:$0xf]
      %v1688 = vld [vmem:[%s1664 + $0x5c] sm:$0xf]
      %v1689 = vld [vmem:[%s1664 + $0x60] sm:$0xf]
      %v1690 = vld [vmem:[%s1664 + $0x64] sm:$0xf]
      %v1691 = vld [vmem:[%s1664 + $0x68] sm:$0xf]
      %v1692 = vld [vmem:[%s1664 + $0x6c] sm:$0xf]
      %v1693 = vld [vmem:[%s1664 + $0x70] sm:$0xf]
      %v1694 = vld [vmem:[%s1664 + $0x74] sm:$0xf]
      %v1695 = vld [vmem:[%s1664 + $0x78] sm:$0xf]
      %v1696 = vld [vmem:[%s1664 + $0x7c] sm:$0xf]
      %v1729 = vunpack.c.l.b16 %v1665
      %v1730 = vunpack.c.l.b16 %v1666
      %v1731 = vunpack.c.l.b16 %v1667
      %v1732 = vunpack.c.l.b16 %v1668
      %v1733 = vunpack.c.l.b16 %v1669
      %v1734 = vunpack.c.l.b16 %v1670
      %v1735 = vunpack.c.l.b16 %v1671
      %v1736 = vunpack.c.l.b16 %v1672
      %v1737 = vunpack.c.l.b16 %v1673
      %v1738 = vunpack.c.l.b16 %v1674
      %v1739 = vunpack.c.l.b16 %v1675
      %v1740 = vunpack.c.l.b16 %v1676
      %v1741 = vunpack.c.l.b16 %v1677
      %v1742 = vunpack.c.l.b16 %v1678
      %v1743 = vunpack.c.l.b16 %v1679
      %v1744 = vunpack.c.l.b16 %v1680
      %v1745 = vunpack.c.l.b16 %v1681
      %v1746 = vunpack.c.l.b16 %v1682
      %v1747 = vunpack.c.l.b16 %v1683
      %v1748 = vunpack.c.l.b16 %v1684
      %v1749 = vunpack.c.l.b16 %v1685
      %v1750 = vunpack.c.l.b16 %v1686
      %v1751 = vunpack.c.l.b16 %v1687
      %v1752 = vunpack.c.l.b16 %v1688
      %v1753 = vunpack.c.l.b16 %v1689
      %v1754 = vunpack.c.l.b16 %v1690
      %v1755 = vunpack.c.l.b16 %v1691
      %v1756 = vunpack.c.l.b16 %v1692
      %v1757 = vunpack.c.l.b16 %v1693
      %v1758 = vunpack.c.l.b16 %v1694
      %v1759 = vunpack.c.l.b16 %v1695
      %v1760 = vunpack.c.l.b16 %v1696
      %v1761 = vpack.c.b16 %v1730, %v1729
      %v1762 = vpack.c.b16 %v1732, %v1731
      %v1763 = vpack.c.b16 %v1734, %v1733
      %v1764 = vpack.c.b16 %v1736, %v1735
      %v1765 = vpack.c.b16 %v1738, %v1737
      %v1766 = vpack.c.b16 %v1740, %v1739
      %v1767 = vpack.c.b16 %v1742, %v1741
      %v1768 = vpack.c.b16 %v1744, %v1743
      %v1769 = vpack.c.b16 %v1746, %v1745
      %v1770 = vpack.c.b16 %v1748, %v1747
      %v1771 = vpack.c.b16 %v1750, %v1749
      %v1772 = vpack.c.b16 %v1752, %v1751
      %v1773 = vpack.c.b16 %v1754, %v1753
      %v1774 = vpack.c.b16 %v1756, %v1755
      %v1775 = vpack.c.b16 %v1758, %v1757
      %v1776 = vpack.c.b16 %v1760, %v1759
      %1793 = vmatpush.bf16.msra.mxu0 %v1768
      %1794 = vmatpush.bf16.msra.mxu0 %v1767
      %1795 = vmatpush.bf16.msra.mxu0 %v1766
      %1796 = vmatpush.bf16.msra.mxu0 %v1765
      %1797 = vmatpush.bf16.msra.mxu0 %v1764
      %1798 = vmatpush.bf16.msra.mxu0 %v1763
      %1799 = vmatpush.bf16.msra.mxu0 %v1762
      %1800 = vmatpush.bf16.msra.mxu0 %v1761
      %1801 = vmatmul.bf16.gmra.mxu0 %v452
      %v1802 = vpop.f32.mrf.mxu0
      %v1803 = vadd.f32 0.0, %v1802
      %v1804 = vpop.f32.mrf.mxu0
      %1805 = vdwg.mxu0
      %1806 = vmatpush.bf16.msra.mxu0 %v1776
      %1807 = vmatpush.bf16.msra.mxu0 %v1775
      %1808 = vmatpush.bf16.msra.mxu0 %v1774
      %1809 = vmatpush.bf16.msra.mxu0 %v1773
      %1810 = vmatpush.bf16.msra.mxu0 %v1772
      %1811 = vmatpush.bf16.msra.mxu0 %v1771
      %1812 = vmatpush.bf16.msra.mxu0 %v1770
      %1813 = vmatpush.bf16.msra.mxu0 %v1769
      %1814 = vmatmul.bf16.gmra.mxu0 %v453
      %v1815 = vpop.f32.mrf.mxu0
      %v1816 = vadd.f32 %v1803, %v1815
      %v1817 = vpop.f32.mrf.mxu0
      %1818 = vdwg.mxu0
      %s1819 = scalar_lea.vmem %s1, 96
      %v1820 = vld [vmem:[%s1819] sm:$0xf]
      %v1821 = vld [vmem:[%s1819 + $0x4] sm:$0xf]
      %v1822 = vld [vmem:[%s1819 + $0x8] sm:$0xf]
      %v1823 = vld [vmem:[%s1819 + $0xc] sm:$0xf]
      %v1824 = vpack.c.bf16 %v1816, %v1816
      %v1829 = vunpack.c.l.b16 %v1820
      %v1830 = vunpack.c.l.b16 %v1821
      %v1831 = vunpack.c.l.b16 %v1822
      %v1832 = vunpack.c.l.b16 %v1823
      %v1833 = vpack.c.b16 %v1830, %v1829
      %v1834 = vpack.c.b16 %v1832, %v1831
      %v1836 = vsel %vm784, %v1833, 0
      %v1839 = vsel %vm784, %v1834, 0
      %v1842 = vsel %vm791, %v1824, 0
      %1844 = vmatpush.bf16.msra.mxu0 0
      %1845 = vmatpush.bf16.msra.mxu0 0
      %1846 = vmatpush.bf16.msra.mxu0 0
      %1847 = vmatpush.bf16.msra.mxu0 0
      %1848 = vmatpush.bf16.msra.mxu0 0
      %1849 = vmatpush.bf16.msra.mxu0 0
      %1850 = vmatpush.bf16.msra.mxu0 0
      %1851 = vmatpush.bf16.msra.mxu0 %v1842
      %1852 = vmatmul.bf16.gmra.mxu0 %v1836
      %v1853 = vpop.f32.mrf.mxu0
      %v1854 = vadd.f32 0.0, %v1853
      %v1855 = vpop.f32.mrf.mxu0
      %v1856 = vadd.f32 0.0, %v1855
      %1857 = vmatmul.bf16.gmra.mxu0 %v1839
      %v1858 = vpop.f32.mrf.mxu0
      %v1859 = vadd.f32 0.0, %v1858
      %v1860 = vpop.f32.mrf.mxu0
      %v1861 = vadd.f32 0.0, %v1860
      %1862 = vdwg.mxu0
      %v1863 = vadd.f32 %v1660, %v1854
      %v1864 = vadd.f32 %v1661, %v1856
      %v1865 = vadd.f32 %v1662, %v1859
      %v1866 = vadd.f32 %v1663, %v1861
      %s1867 = scalar_lea.vmem %s3, 896
      %v1868 = vld [vmem:[%s1867] sm:$0xf]
      %v1869 = vld [vmem:[%s1867 + $0x4] sm:$0xf]
      %v1870 = vld [vmem:[%s1867 + $0x8] sm:$0xf]
      %v1871 = vld [vmem:[%s1867 + $0xc] sm:$0xf]
      %v1872 = vld [vmem:[%s1867 + $0x10] sm:$0xf]
      %v1873 = vld [vmem:[%s1867 + $0x14] sm:$0xf]
      %v1874 = vld [vmem:[%s1867 + $0x18] sm:$0xf]
      %v1875 = vld [vmem:[%s1867 + $0x1c] sm:$0xf]
      %v1876 = vld [vmem:[%s1867 + $0x20] sm:$0xf]
      %v1877 = vld [vmem:[%s1867 + $0x24] sm:$0xf]
      %v1878 = vld [vmem:[%s1867 + $0x28] sm:$0xf]
      %v1879 = vld [vmem:[%s1867 + $0x2c] sm:$0xf]
      %v1880 = vld [vmem:[%s1867 + $0x30] sm:$0xf]
      %v1881 = vld [vmem:[%s1867 + $0x34] sm:$0xf]
      %v1882 = vld [vmem:[%s1867 + $0x38] sm:$0xf]
      %v1883 = vld [vmem:[%s1867 + $0x3c] sm:$0xf]
      %v1884 = vld [vmem:[%s1867 + $0x40] sm:$0xf]
      %v1885 = vld [vmem:[%s1867 + $0x44] sm:$0xf]
      %v1886 = vld [vmem:[%s1867 + $0x48] sm:$0xf]
      %v1887 = vld [vmem:[%s1867 + $0x4c] sm:$0xf]
      %v1888 = vld [vmem:[%s1867 + $0x50] sm:$0xf]
      %v1889 = vld [vmem:[%s1867 + $0x54] sm:$0xf]
      %v1890 = vld [vmem:[%s1867 + $0x58] sm:$0xf]
      %v1891 = vld [vmem:[%s1867 + $0x5c] sm:$0xf]
      %v1892 = vld [vmem:[%s1867 + $0x60] sm:$0xf]
      %v1893 = vld [vmem:[%s1867 + $0x64] sm:$0xf]
      %v1894 = vld [vmem:[%s1867 + $0x68] sm:$0xf]
      %v1895 = vld [vmem:[%s1867 + $0x6c] sm:$0xf]
      %v1896 = vld [vmem:[%s1867 + $0x70] sm:$0xf]
      %v1897 = vld [vmem:[%s1867 + $0x74] sm:$0xf]
      %v1898 = vld [vmem:[%s1867 + $0x78] sm:$0xf]
      %v1899 = vld [vmem:[%s1867 + $0x7c] sm:$0xf]
      %v1932 = vunpack.c.l.b16 %v1868
      %v1933 = vunpack.c.l.b16 %v1869
      %v1934 = vunpack.c.l.b16 %v1870
      %v1935 = vunpack.c.l.b16 %v1871
      %v1936 = vunpack.c.l.b16 %v1872
      %v1937 = vunpack.c.l.b16 %v1873
      %v1938 = vunpack.c.l.b16 %v1874
      %v1939 = vunpack.c.l.b16 %v1875
      %v1940 = vunpack.c.l.b16 %v1876
      %v1941 = vunpack.c.l.b16 %v1877
      %v1942 = vunpack.c.l.b16 %v1878
      %v1943 = vunpack.c.l.b16 %v1879
      %v1944 = vunpack.c.l.b16 %v1880
      %v1945 = vunpack.c.l.b16 %v1881
      %v1946 = vunpack.c.l.b16 %v1882
      %v1947 = vunpack.c.l.b16 %v1883
      %v1948 = vunpack.c.l.b16 %v1884
      %v1949 = vunpack.c.l.b16 %v1885
      %v1950 = vunpack.c.l.b16 %v1886
      %v1951 = vunpack.c.l.b16 %v1887
      %v1952 = vunpack.c.l.b16 %v1888
      %v1953 = vunpack.c.l.b16 %v1889
      %v1954 = vunpack.c.l.b16 %v1890
      %v1955 = vunpack.c.l.b16 %v1891
      %v1956 = vunpack.c.l.b16 %v1892
      %v1957 = vunpack.c.l.b16 %v1893
      %v1958 = vunpack.c.l.b16 %v1894
      %v1959 = vunpack.c.l.b16 %v1895
      %v1960 = vunpack.c.l.b16 %v1896
      %v1961 = vunpack.c.l.b16 %v1897
      %v1962 = vunpack.c.l.b16 %v1898
      %v1963 = vunpack.c.l.b16 %v1899
      %v1964 = vpack.c.b16 %v1933, %v1932
      %v1965 = vpack.c.b16 %v1935, %v1934
      %v1966 = vpack.c.b16 %v1937, %v1936
      %v1967 = vpack.c.b16 %v1939, %v1938
      %v1968 = vpack.c.b16 %v1941, %v1940
      %v1969 = vpack.c.b16 %v1943, %v1942
      %v1970 = vpack.c.b16 %v1945, %v1944
      %v1971 = vpack.c.b16 %v1947, %v1946
      %v1972 = vpack.c.b16 %v1949, %v1948
      %v1973 = vpack.c.b16 %v1951, %v1950
      %v1974 = vpack.c.b16 %v1953, %v1952
      %v1975 = vpack.c.b16 %v1955, %v1954
      %v1976 = vpack.c.b16 %v1957, %v1956
      %v1977 = vpack.c.b16 %v1959, %v1958
      %v1978 = vpack.c.b16 %v1961, %v1960
      %v1979 = vpack.c.b16 %v1963, %v1962
      %1996 = vmatpush.bf16.msra.mxu0 %v1971
      %1997 = vmatpush.bf16.msra.mxu0 %v1970
      %1998 = vmatpush.bf16.msra.mxu0 %v1969
      %1999 = vmatpush.bf16.msra.mxu0 %v1968
      %2000 = vmatpush.bf16.msra.mxu0 %v1967
      %2001 = vmatpush.bf16.msra.mxu0 %v1966
      %2002 = vmatpush.bf16.msra.mxu0 %v1965
      %2003 = vmatpush.bf16.msra.mxu0 %v1964
      %2004 = vmatmul.bf16.gmra.mxu0 %v452
      %v2005 = vpop.f32.mrf.mxu0
      %v2006 = vadd.f32 0.0, %v2005
      %v2007 = vpop.f32.mrf.mxu0
      %2008 = vdwg.mxu0
      %2009 = vmatpush.bf16.msra.mxu0 %v1979
      %2010 = vmatpush.bf16.msra.mxu0 %v1978
      %2011 = vmatpush.bf16.msra.mxu0 %v1977
      %2012 = vmatpush.bf16.msra.mxu0 %v1976
      %2013 = vmatpush.bf16.msra.mxu0 %v1975
      %2014 = vmatpush.bf16.msra.mxu0 %v1974
      %2015 = vmatpush.bf16.msra.mxu0 %v1973
      %2016 = vmatpush.bf16.msra.mxu0 %v1972
      %2017 = vmatmul.bf16.gmra.mxu0 %v453
      %v2018 = vpop.f32.mrf.mxu0
      %v2019 = vadd.f32 %v2006, %v2018
      %v2020 = vpop.f32.mrf.mxu0
      %2021 = vdwg.mxu0
      %s2022 = scalar_lea.vmem %s1, 112
      %v2023 = vld [vmem:[%s2022] sm:$0xf]
      %v2024 = vld [vmem:[%s2022 + $0x4] sm:$0xf]
      %v2025 = vld [vmem:[%s2022 + $0x8] sm:$0xf]
      %v2026 = vld [vmem:[%s2022 + $0xc] sm:$0xf]
      %v2027 = vpack.c.bf16 %v2019, %v2019
      %v2032 = vunpack.c.l.b16 %v2023
      %v2033 = vunpack.c.l.b16 %v2024
      %v2034 = vunpack.c.l.b16 %v2025
      %v2035 = vunpack.c.l.b16 %v2026
      %v2036 = vpack.c.b16 %v2033, %v2032
      %v2037 = vpack.c.b16 %v2035, %v2034
      %v2039 = vsel %vm784, %v2036, 0
      %v2042 = vsel %vm784, %v2037, 0
      %v2045 = vsel %vm791, %v2027, 0
      %2047 = vmatpush.bf16.msra.mxu0 0
      %2048 = vmatpush.bf16.msra.mxu0 0
      %2049 = vmatpush.bf16.msra.mxu0 0
      %2050 = vmatpush.bf16.msra.mxu0 0
      %2051 = vmatpush.bf16.msra.mxu0 0
      %2052 = vmatpush.bf16.msra.mxu0 0
      %2053 = vmatpush.bf16.msra.mxu0 0
      %2054 = vmatpush.bf16.msra.mxu0 %v2045
      %2055 = vmatmul.bf16.gmra.mxu0 %v2039
      %v2056 = vpop.f32.mrf.mxu0
      %v2057 = vadd.f32 0.0, %v2056
      %v2058 = vpop.f32.mrf.mxu0
      %v2059 = vadd.f32 0.0, %v2058
      %2060 = vmatmul.bf16.gmra.mxu0 %v2042
      %v2061 = vpop.f32.mrf.mxu0
      %v2062 = vadd.f32 0.0, %v2061
      %v2063 = vpop.f32.mrf.mxu0
      %v2064 = vadd.f32 0.0, %v2063
      %2065 = vdwg.mxu0
      %v2066 = vadd.f32 %v1863, %v2057
      %v2067 = vadd.f32 %v1864, %v2059
      %v2068 = vadd.f32 %v1865, %v2062
      %v2069 = vadd.f32 %v1866, %v2064
      %s2070 = scalar_lea.vmem %s3, 1024
      %v2071 = vld [vmem:[%s2070] sm:$0xf]
      %v2072 = vld [vmem:[%s2070 + $0x4] sm:$0xf]
      %v2073 = vld [vmem:[%s2070 + $0x8] sm:$0xf]
      %v2074 = vld [vmem:[%s2070 + $0xc] sm:$0xf]
      %v2075 = vld [vmem:[%s2070 + $0x10] sm:$0xf]
      %v2076 = vld [vmem:[%s2070 + $0x14] sm:$0xf]
      %v2077 = vld [vmem:[%s2070 + $0x18] sm:$0xf]
      %v2078 = vld [vmem:[%s2070 + $0x1c] sm:$0xf]
      %v2079 = vld [vmem:[%s2070 + $0x20] sm:$0xf]
      %v2080 = vld [vmem:[%s2070 + $0x24] sm:$0xf]
      %v2081 = vld [vmem:[%s2070 + $0x28] sm:$0xf]
      %v2082 = vld [vmem:[%s2070 + $0x2c] sm:$0xf]
      %v2083 = vld [vmem:[%s2070 + $0x30] sm:$0xf]
      %v2084 = vld [vmem:[%s2070 + $0x34] sm:$0xf]
      %v2085 = vld [vmem:[%s2070 + $0x38] sm:$0xf]
      %v2086 = vld [vmem:[%s2070 + $0x3c] sm:$0xf]
      %v2087 = vld [vmem:[%s2070 + $0x40] sm:$0xf]
      %v2088 = vld [vmem:[%s2070 + $0x44] sm:$0xf]
      %v2089 = vld [vmem:[%s2070 + $0x48] sm:$0xf]
      %v2090 = vld [vmem:[%s2070 + $0x4c] sm:$0xf]
      %v2091 = vld [vmem:[%s2070 + $0x50] sm:$0xf]
      %v2092 = vld [vmem:[%s2070 + $0x54] sm:$0xf]
      %v2093 = vld [vmem:[%s2070 + $0x58] sm:$0xf]
      %v2094 = vld [vmem:[%s2070 + $0x5c] sm:$0xf]
      %v2095 = vld [vmem:[%s2070 + $0x60] sm:$0xf]
      %v2096 = vld [vmem:[%s2070 + $0x64] sm:$0xf]
      %v2097 = vld [vmem:[%s2070 + $0x68] sm:$0xf]
      %v2098 = vld [vmem:[%s2070 + $0x6c] sm:$0xf]
      %v2099 = vld [vmem:[%s2070 + $0x70] sm:$0xf]
      %v2100 = vld [vmem:[%s2070 + $0x74] sm:$0xf]
      %v2101 = vld [vmem:[%s2070 + $0x78] sm:$0xf]
      %v2102 = vld [vmem:[%s2070 + $0x7c] sm:$0xf]
      %v2135 = vunpack.c.l.b16 %v2071
      %v2136 = vunpack.c.l.b16 %v2072
      %v2137 = vunpack.c.l.b16 %v2073
      %v2138 = vunpack.c.l.b16 %v2074
      %v2139 = vunpack.c.l.b16 %v2075
      %v2140 = vunpack.c.l.b16 %v2076
      %v2141 = vunpack.c.l.b16 %v2077
      %v2142 = vunpack.c.l.b16 %v2078
      %v2143 = vunpack.c.l.b16 %v2079
      %v2144 = vunpack.c.l.b16 %v2080
      %v2145 = vunpack.c.l.b16 %v2081
      %v2146 = vunpack.c.l.b16 %v2082
      %v2147 = vunpack.c.l.b16 %v2083
      %v2148 = vunpack.c.l.b16 %v2084
      %v2149 = vunpack.c.l.b16 %v2085
      %v2150 = vunpack.c.l.b16 %v2086
      %v2151 = vunpack.c.l.b16 %v2087
      %v2152 = vunpack.c.l.b16 %v2088
      %v2153 = vunpack.c.l.b16 %v2089
      %v2154 = vunpack.c.l.b16 %v2090
      %v2155 = vunpack.c.l.b16 %v2091
      %v2156 = vunpack.c.l.b16 %v2092
      %v2157 = vunpack.c.l.b16 %v2093
      %v2158 = vunpack.c.l.b16 %v2094
      %v2159 = vunpack.c.l.b16 %v2095
      %v2160 = vunpack.c.l.b16 %v2096
      %v2161 = vunpack.c.l.b16 %v2097
      %v2162 = vunpack.c.l.b16 %v2098
      %v2163 = vunpack.c.l.b16 %v2099
      %v2164 = vunpack.c.l.b16 %v2100
      %v2165 = vunpack.c.l.b16 %v2101
      %v2166 = vunpack.c.l.b16 %v2102
      %v2167 = vpack.c.b16 %v2136, %v2135
      %v2168 = vpack.c.b16 %v2138, %v2137
      %v2169 = vpack.c.b16 %v2140, %v2139
      %v2170 = vpack.c.b16 %v2142, %v2141
      %v2171 = vpack.c.b16 %v2144, %v2143
      %v2172 = vpack.c.b16 %v2146, %v2145
      %v2173 = vpack.c.b16 %v2148, %v2147
      %v2174 = vpack.c.b16 %v2150, %v2149
      %v2175 = vpack.c.b16 %v2152, %v2151
      %v2176 = vpack.c.b16 %v2154, %v2153
      %v2177 = vpack.c.b16 %v2156, %v2155
      %v2178 = vpack.c.b16 %v2158, %v2157
      %v2179 = vpack.c.b16 %v2160, %v2159
      %v2180 = vpack.c.b16 %v2162, %v2161
      %v2181 = vpack.c.b16 %v2164, %v2163
      %v2182 = vpack.c.b16 %v2166, %v2165
      %2199 = vmatpush.bf16.msra.mxu0 %v2174
      %2200 = vmatpush.bf16.msra.mxu0 %v2173
      %2201 = vmatpush.bf16.msra.mxu0 %v2172
      %2202 = vmatpush.bf16.msra.mxu0 %v2171
      %2203 = vmatpush.bf16.msra.mxu0 %v2170
      %2204 = vmatpush.bf16.msra.mxu0 %v2169
      %2205 = vmatpush.bf16.msra.mxu0 %v2168
      %2206 = vmatpush.bf16.msra.mxu0 %v2167
      %2207 = vmatmul.bf16.gmra.mxu0 %v452
      %v2208 = vpop.f32.mrf.mxu0
      %v2209 = vadd.f32 0.0, %v2208
      %v2210 = vpop.f32.mrf.mxu0
      %2211 = vdwg.mxu0
      %2212 = vmatpush.bf16.msra.mxu0 %v2182
      %2213 = vmatpush.bf16.msra.mxu0 %v2181
      %2214 = vmatpush.bf16.msra.mxu0 %v2180
      %2215 = vmatpush.bf16.msra.mxu0 %v2179
      %2216 = vmatpush.bf16.msra.mxu0 %v2178
      %2217 = vmatpush.bf16.msra.mxu0 %v2177
      %2218 = vmatpush.bf16.msra.mxu0 %v2176
      %2219 = vmatpush.bf16.msra.mxu0 %v2175
      %2220 = vmatmul.bf16.gmra.mxu0 %v453
      %v2221 = vpop.f32.mrf.mxu0
      %v2222 = vadd.f32 %v2209, %v2221
      %v2223 = vpop.f32.mrf.mxu0
      %2224 = vdwg.mxu0
      %s2225 = scalar_lea.vmem %s1, 128
      %v2226 = vld [vmem:[%s2225] sm:$0xf]
      %v2227 = vld [vmem:[%s2225 + $0x4] sm:$0xf]
      %v2228 = vld [vmem:[%s2225 + $0x8] sm:$0xf]
      %v2229 = vld [vmem:[%s2225 + $0xc] sm:$0xf]
      %v2230 = vpack.c.bf16 %v2222, %v2222
      %v2235 = vunpack.c.l.b16 %v2226
      %v2236 = vunpack.c.l.b16 %v2227
      %v2237 = vunpack.c.l.b16 %v2228
      %v2238 = vunpack.c.l.b16 %v2229
      %v2239 = vpack.c.b16 %v2236, %v2235
      %v2240 = vpack.c.b16 %v2238, %v2237
      %v2242 = vsel %vm784, %v2239, 0
      %v2245 = vsel %vm784, %v2240, 0
      %v2248 = vsel %vm791, %v2230, 0
      %2250 = vmatpush.bf16.msra.mxu0 0
      %2251 = vmatpush.bf16.msra.mxu0 0
      %2252 = vmatpush.bf16.msra.mxu0 0
      %2253 = vmatpush.bf16.msra.mxu0 0
      %2254 = vmatpush.bf16.msra.mxu0 0
      %2255 = vmatpush.bf16.msra.mxu0 0
      %2256 = vmatpush.bf16.msra.mxu0 0
      %2257 = vmatpush.bf16.msra.mxu0 %v2248
      %2258 = vmatmul.bf16.gmra.mxu0 %v2242
      %v2259 = vpop.f32.mrf.mxu0
      %v2260 = vadd.f32 0.0, %v2259
      %v2261 = vpop.f32.mrf.mxu0
      %v2262 = vadd.f32 0.0, %v2261
      %2263 = vmatmul.bf16.gmra.mxu0 %v2245
      %v2264 = vpop.f32.mrf.mxu0
      %v2265 = vadd.f32 0.0, %v2264
      %v2266 = vpop.f32.mrf.mxu0
      %v2267 = vadd.f32 0.0, %v2266
      %2268 = vdwg.mxu0
      %v2269 = vadd.f32 %v2066, %v2260
      %v2270 = vadd.f32 %v2067, %v2262
      %v2271 = vadd.f32 %v2068, %v2265
      %v2272 = vadd.f32 %v2069, %v2267
      %v2273 = vld [vmem:[%s2] sm:$0xff]
      %v2274 = vld [vmem:[%s2 + $0x8] sm:$0xff]
      %v2275 = vld [vmem:[%s2 + $0x10] sm:$0xff]
      %v2276 = vld [vmem:[%s2 + $0x18] sm:$0xff]
      %2278 = vset.pattern.permute.xlu0 0
      %2279 = vperm.xlu0 %2278, %v2273
      %v2280 = vpop.permute.xlu0 %2279
      %2283 = vset.pattern.permute.xlu0 0
      %2284 = vperm.xlu0 %2283, %v2274
      %v2285 = vpop.permute.xlu0 %2284
      %2288 = vset.pattern.permute.xlu0 0
      %2289 = vperm.xlu0 %2288, %v2275
      %v2290 = vpop.permute.xlu0 %2289
      %2293 = vset.pattern.permute.xlu0 0
      %2294 = vperm.xlu0 %2293, %v2276
      %v2295 = vpop.permute.xlu0 %2294
      %v2297 = vadd.f32 %v2269, %v2280
      %v2298 = vadd.f32 %v2270, %v2285
      %v2299 = vadd.f32 %v2271, %v2290
      %v2300 = vadd.f32 %v2272, %v2295
      %vm2301 = vcmp.ge.f32.partialorder %v2297, 0.0
      %vm2302 = vcmp.ge.f32.partialorder %v2298, 0.0
      %vm2303 = vcmp.ge.f32.partialorder %v2299, 0.0
      %vm2304 = vcmp.ge.f32.partialorder %v2300, 0.0
      %v2305 = vmul.f32 %v2297, 0.2
      %v2306 = vmul.f32 %v2298, 0.2
      %v2307 = vmul.f32 %v2299, 0.2
      %v2308 = vmul.f32 %v2300, 0.2
      %v2309 = vsel %vm2301, %v2297, %v2305
      %v2310 = vsel %vm2302, %v2298, %v2306
      %v2311 = vsel %vm2303, %v2299, %v2307
      %v2312 = vsel %vm2304, %v2300, %v2308
      %v2313 = vpack.c.bf16 %v2310, %v2309
      %v2314 = vpack.c.bf16 %v2312, %v2311
      %v2315 = vld [vmem:[%s6] sm:$0xf]
      %v2316 = vld [vmem:[%s6 + $0x4] sm:$0xf]
      %v2317 = vld [vmem:[%s6 + $0x8] sm:$0xf]
      %v2318 = vld [vmem:[%s6 + $0xc] sm:$0xf]
      %v2319 = vld [vmem:[%s6 + $0x10] sm:$0xf]
      %v2320 = vld [vmem:[%s6 + $0x14] sm:$0xf]
      %v2321 = vld [vmem:[%s6 + $0x18] sm:$0xf]
      %v2322 = vld [vmem:[%s6 + $0x1c] sm:$0xf]
      %v2331 = vunpack.c.l.b16 %v2315
      %v2332 = vunpack.c.l.b16 %v2316
      %v2333 = vunpack.c.l.b16 %v2317
      %v2334 = vunpack.c.l.b16 %v2318
      %v2335 = vunpack.c.l.b16 %v2319
      %v2336 = vunpack.c.l.b16 %v2320
      %v2337 = vunpack.c.l.b16 %v2321
      %v2338 = vunpack.c.l.b16 %v2322
      %v2339 = vpack.c.b16 %v2332, %v2331
      %v2340 = vpack.c.b16 %v2334, %v2333
      %v2341 = vpack.c.b16 %v2336, %v2335
      %v2342 = vpack.c.b16 %v2338, %v2337
      %vm2347 = vcmask 523264
      %v2349 = vsel %vm2347, %v2313, 0
      %v2352 = vsel %vm2347, %v2314, 0
      %2354 = vmatpush.bf16.msra.mxu0 0
      %2355 = vmatpush.bf16.msra.mxu0 0
      %2356 = vmatpush.bf16.msra.mxu0 0
      %2357 = vmatpush.bf16.msra.mxu0 0
      %2358 = vmatpush.bf16.msra.mxu0 %v2342
      %2359 = vmatpush.bf16.msra.mxu0 %v2341
      %2360 = vmatpush.bf16.msra.mxu0 %v2340
      %2361 = vmatpush.bf16.msra.mxu0 %v2339
      %2362 = vmatmul.bf16.gmra.mxu0 %v2349
      %v2363 = vpop.f32.mrf.mxu0
      %v2364 = vadd.f32 0.0, %v2363
      %v2365 = vpop.f32.mrf.mxu0
      %v2366 = vadd.f32 0.0, %v2365
      %2367 = vmatmul.bf16.gmra.mxu0 %v2352
      %v2368 = vpop.f32.mrf.mxu0
      %v2369 = vadd.f32 0.0, %v2368
      %v2370 = vpop.f32.mrf.mxu0
      %v2371 = vadd.f32 0.0, %v2370
      %2372 = vdwg.mxu0
      %v2373 = vld [vmem:[%s4] sm:$0xf]
      %v2374 = vld [vmem:[%s4 + $0x4] sm:$0xf]
      %v2375 = vld [vmem:[%s4 + $0x8] sm:$0xf]
      %v2376 = vld [vmem:[%s4 + $0xc] sm:$0xf]
      %v2377 = vld [vmem:[%s4 + $0x10] sm:$0xf]
      %v2378 = vld [vmem:[%s4 + $0x14] sm:$0xf]
      %v2379 = vld [vmem:[%s4 + $0x18] sm:$0xf]
      %v2380 = vld [vmem:[%s4 + $0x1c] sm:$0xf]
      %v2381 = vpack.c.bf16 %v2366, %v2364
      %v2382 = vpack.c.bf16 %v2371, %v2369
      %s2383 = scalar_lea.vmem %s6, 32
      %v2384 = vld [vmem:[%s2383] sm:$0xf]
      %v2385 = vld [vmem:[%s2383 + $0x4] sm:$0xf]
      %v2386 = vld [vmem:[%s2383 + $0x8] sm:$0xf]
      %v2387 = vld [vmem:[%s2383 + $0xc] sm:$0xf]
      %v2388 = vld [vmem:[%s2383 + $0x10] sm:$0xf]
      %v2389 = vld [vmem:[%s2383 + $0x14] sm:$0xf]
      %v2390 = vld [vmem:[%s2383 + $0x18] sm:$0xf]
      %v2391 = vld [vmem:[%s2383 + $0x1c] sm:$0xf]
      %v2400 = vunpack.c.l.b16 %v2384
      %v2401 = vunpack.c.l.b16 %v2385
      %v2402 = vunpack.c.l.b16 %v2386
      %v2403 = vunpack.c.l.b16 %v2387
      %v2404 = vunpack.c.l.b16 %v2388
      %v2405 = vunpack.c.l.b16 %v2389
      %v2406 = vunpack.c.l.b16 %v2390
      %v2407 = vunpack.c.l.b16 %v2391
      %v2408 = vpack.c.b16 %v2401, %v2400
      %v2409 = vpack.c.b16 %v2403, %v2402
      %v2410 = vpack.c.b16 %v2405, %v2404
      %v2411 = vpack.c.b16 %v2407, %v2406
      %2416 = vmatpush.bf16.msra.mxu0 0
      %2417 = vmatpush.bf16.msra.mxu0 0
      %2418 = vmatpush.bf16.msra.mxu0 0
      %2419 = vmatpush.bf16.msra.mxu0 0
      %2420 = vmatpush.bf16.msra.mxu0 %v2411
      %2421 = vmatpush.bf16.msra.mxu0 %v2410
      %2422 = vmatpush.bf16.msra.mxu0 %v2409
      %2423 = vmatpush.bf16.msra.mxu0 %v2408
      %2424 = vmatmul.bf16.gmra.mxu0 %v2349
      %v2425 = vpop.f32.mrf.mxu0
      %v2426 = vadd.f32 0.0, %v2425
      %v2427 = vpop.f32.mrf.mxu0
      %v2428 = vadd.f32 0.0, %v2427
      %2429 = vmatmul.bf16.gmra.mxu0 %v2352
      %v2430 = vpop.f32.mrf.mxu0
      %v2431 = vadd.f32 0.0, %v2430
      %v2432 = vpop.f32.mrf.mxu0
      %v2433 = vadd.f32 0.0, %v2432
      %2434 = vdwg.mxu0
      %s2435 = scalar_lea.vmem %s4, 32
      %v2436 = vld [vmem:[%s2435] sm:$0xf]
      %v2437 = vld [vmem:[%s2435 + $0x4] sm:$0xf]
      %v2438 = vld [vmem:[%s2435 + $0x8] sm:$0xf]
      %v2439 = vld [vmem:[%s2435 + $0xc] sm:$0xf]
      %v2440 = vld [vmem:[%s2435 + $0x10] sm:$0xf]
      %v2441 = vld [vmem:[%s2435 + $0x14] sm:$0xf]
      %v2442 = vld [vmem:[%s2435 + $0x18] sm:$0xf]
      %v2443 = vld [vmem:[%s2435 + $0x1c] sm:$0xf]
      %v2444 = vpack.c.bf16 %v2428, %v2426
      %v2445 = vpack.c.bf16 %v2433, %v2431
      %v2454 = vunpack.c.l.b16 %v2436
      %v2455 = vunpack.c.l.b16 %v2437
      %v2456 = vunpack.c.l.b16 %v2438
      %v2457 = vunpack.c.l.b16 %v2439
      %v2458 = vunpack.c.l.b16 %v2440
      %v2459 = vunpack.c.l.b16 %v2441
      %v2460 = vunpack.c.l.b16 %v2442
      %v2461 = vunpack.c.l.b16 %v2443
      %v2462 = vpack.c.b16 %v2455, %v2454
      %v2463 = vpack.c.b16 %v2457, %v2456
      %v2464 = vpack.c.b16 %v2459, %v2458
      %v2465 = vpack.c.b16 %v2461, %v2460
      %vm2466 = vcmask 261120
      %v2468 = vsel %vm2466, %v2462, 0
      %v2471 = vsel %vm2466, %v2463, 0
      %v2474 = vsel %vm2466, %v2464, 0
      %v2477 = vsel %vm2466, %v2465, 0
      %2479 = vmatpush.bf16.msra.mxu0 0
      %2480 = vmatpush.bf16.msra.mxu0 0
      %2481 = vmatpush.bf16.msra.mxu0 0
      %2482 = vmatpush.bf16.msra.mxu0 0
      %2483 = vmatpush.bf16.msra.mxu0 0
      %2484 = vmatpush.bf16.msra.mxu0 0
      %2485 = vmatpush.bf16.msra.mxu0 %v2445
      %2486 = vmatpush.bf16.msra.mxu0 %v2444
      %2487 = vmatmul.bf16.gmra.mxu0 %v2468
      %v2488 = vpop.f32.mrf.mxu0
      %v2489 = vadd.f32 0.0, %v2488
      %v2490 = vpop.f32.mrf.mxu0
      %v2491 = vadd.f32 0.0, %v2490
      %2492 = vmatmul.bf16.gmra.mxu0 %v2471
      %v2493 = vpop.f32.mrf.mxu0
      %v2494 = vadd.f32 0.0, %v2493
      %v2495 = vpop.f32.mrf.mxu0
      %v2496 = vadd.f32 0.0, %v2495
      %2497 = vmatmul.bf16.gmra.mxu0 %v2474
      %v2498 = vpop.f32.mrf.mxu0
      %v2499 = vadd.f32 0.0, %v2498
      %v2500 = vpop.f32.mrf.mxu0
      %v2501 = vadd.f32 0.0, %v2500
      %2502 = vmatmul.bf16.gmra.mxu0 %v2477
      %v2503 = vpop.f32.mrf.mxu0
      %v2504 = vadd.f32 0.0, %v2503
      %v2505 = vpop.f32.mrf.mxu0
      %v2506 = vadd.f32 0.0, %v2505
      %2507 = vdwg.mxu0
      %v2516 = vunpack.c.l.b16 %v2373
      %v2517 = vunpack.c.l.b16 %v2374
      %v2518 = vunpack.c.l.b16 %v2375
      %v2519 = vunpack.c.l.b16 %v2376
      %v2520 = vunpack.c.l.b16 %v2377
      %v2521 = vunpack.c.l.b16 %v2378
      %v2522 = vunpack.c.l.b16 %v2379
      %v2523 = vunpack.c.l.b16 %v2380
      %v2524 = vpack.c.b16 %v2517, %v2516
      %v2525 = vpack.c.b16 %v2519, %v2518
      %v2526 = vpack.c.b16 %v2521, %v2520
      %v2527 = vpack.c.b16 %v2523, %v2522
      %v2529 = vsel %vm2466, %v2524, 0
      %v2532 = vsel %vm2466, %v2525, 0
      %v2535 = vsel %vm2466, %v2526, 0
      %v2538 = vsel %vm2466, %v2527, 0
      %2540 = vmatpush.bf16.msra.mxu0 0
      %2541 = vmatpush.bf16.msra.mxu0 0
      %2542 = vmatpush.bf16.msra.mxu0 0
      %2543 = vmatpush.bf16.msra.mxu0 0
      %2544 = vmatpush.bf16.msra.mxu0 0
      %2545 = vmatpush.bf16.msra.mxu0 0
      %2546 = vmatpush.bf16.msra.mxu0 %v2382
      %2547 = vmatpush.bf16.msra.mxu0 %v2381
      %2548 = vmatmul.bf16.gmra.mxu0 %v2529
      %v2549 = vpop.f32.mrf.mxu0
      %v2550 = vadd.f32 %v2489, %v2549
      %v2551 = vpop.f32.mrf.mxu0
      %v2552 = vadd.f32 %v2491, %v2551
      %2553 = vmatmul.bf16.gmra.mxu0 %v2532
      %v2554 = vpop.f32.mrf.mxu0
      %v2555 = vadd.f32 %v2494, %v2554
      %v2556 = vpop.f32.mrf.mxu0
      %v2557 = vadd.f32 %v2496, %v2556
      %2558 = vmatmul.bf16.gmra.mxu0 %v2535
      %v2559 = vpop.f32.mrf.mxu0
      %v2560 = vadd.f32 %v2499, %v2559
      %v2561 = vpop.f32.mrf.mxu0
      %v2562 = vadd.f32 %v2501, %v2561
      %2563 = vmatmul.bf16.gmra.mxu0 %v2538
      %v2564 = vpop.f32.mrf.mxu0
      %v2565 = vadd.f32 %v2504, %v2564
      %v2566 = vpop.f32.mrf.mxu0
      %v2567 = vadd.f32 %v2506, %v2566
      %2568 = vdwg.mxu0
      %s2569 = scalar_lea.vmem %s6, 64
      %v2570 = vld [vmem:[%s2569] sm:$0xf]
      %v2571 = vld [vmem:[%s2569 + $0x4] sm:$0xf]
      %v2572 = vld [vmem:[%s2569 + $0x8] sm:$0xf]
      %v2573 = vld [vmem:[%s2569 + $0xc] sm:$0xf]
      %v2574 = vld [vmem:[%s2569 + $0x10] sm:$0xf]
      %v2575 = vld [vmem:[%s2569 + $0x14] sm:$0xf]
      %v2576 = vld [vmem:[%s2569 + $0x18] sm:$0xf]
      %v2577 = vld [vmem:[%s2569 + $0x1c] sm:$0xf]
      %v2586 = vunpack.c.l.b16 %v2570
      %v2587 = vunpack.c.l.b16 %v2571
      %v2588 = vunpack.c.l.b16 %v2572
      %v2589 = vunpack.c.l.b16 %v2573
      %v2590 = vunpack.c.l.b16 %v2574
      %v2591 = vunpack.c.l.b16 %v2575
      %v2592 = vunpack.c.l.b16 %v2576
      %v2593 = vunpack.c.l.b16 %v2577
      %v2594 = vpack.c.b16 %v2587, %v2586
      %v2595 = vpack.c.b16 %v2589, %v2588
      %v2596 = vpack.c.b16 %v2591, %v2590
      %v2597 = vpack.c.b16 %v2593, %v2592
      %2602 = vmatpush.bf16.msra.mxu0 0
      %2603 = vmatpush.bf16.msra.mxu0 0
      %2604 = vmatpush.bf16.msra.mxu0 0
      %2605 = vmatpush.bf16.msra.mxu0 0
      %2606 = vmatpush.bf16.msra.mxu0 %v2597
      %2607 = vmatpush.bf16.msra.mxu0 %v2596
      %2608 = vmatpush.bf16.msra.mxu0 %v2595
      %2609 = vmatpush.bf16.msra.mxu0 %v2594
      %2610 = vmatmul.bf16.gmra.mxu0 %v2349
      %v2611 = vpop.f32.mrf.mxu0
      %v2612 = vadd.f32 0.0, %v2611
      %v2613 = vpop.f32.mrf.mxu0
      %v2614 = vadd.f32 0.0, %v2613
      %2615 = vmatmul.bf16.gmra.mxu0 %v2352
      %v2616 = vpop.f32.mrf.mxu0
      %v2617 = vadd.f32 0.0, %v2616
      %v2618 = vpop.f32.mrf.mxu0
      %v2619 = vadd.f32 0.0, %v2618
      %2620 = vdwg.mxu0
      %s2621 = scalar_lea.vmem %s4, 64
      %v2622 = vld [vmem:[%s2621] sm:$0xf]
      %v2623 = vld [vmem:[%s2621 + $0x4] sm:$0xf]
      %v2624 = vld [vmem:[%s2621 + $0x8] sm:$0xf]
      %v2625 = vld [vmem:[%s2621 + $0xc] sm:$0xf]
      %v2626 = vld [vmem:[%s2621 + $0x10] sm:$0xf]
      %v2627 = vld [vmem:[%s2621 + $0x14] sm:$0xf]
      %v2628 = vld [vmem:[%s2621 + $0x18] sm:$0xf]
      %v2629 = vld [vmem:[%s2621 + $0x1c] sm:$0xf]
      %v2630 = vpack.c.bf16 %v2614, %v2612
      %v2631 = vpack.c.bf16 %v2619, %v2617
      %v2640 = vunpack.c.l.b16 %v2622
      %v2641 = vunpack.c.l.b16 %v2623
      %v2642 = vunpack.c.l.b16 %v2624
      %v2643 = vunpack.c.l.b16 %v2625
      %v2644 = vunpack.c.l.b16 %v2626
      %v2645 = vunpack.c.l.b16 %v2627
      %v2646 = vunpack.c.l.b16 %v2628
      %v2647 = vunpack.c.l.b16 %v2629
      %v2648 = vpack.c.b16 %v2641, %v2640
      %v2649 = vpack.c.b16 %v2643, %v2642
      %v2650 = vpack.c.b16 %v2645, %v2644
      %v2651 = vpack.c.b16 %v2647, %v2646
      %v2653 = vsel %vm2466, %v2648, 0
      %v2656 = vsel %vm2466, %v2649, 0
      %v2659 = vsel %vm2466, %v2650, 0
      %v2662 = vsel %vm2466, %v2651, 0
      %2664 = vmatpush.bf16.msra.mxu0 0
      %2665 = vmatpush.bf16.msra.mxu0 0
      %2666 = vmatpush.bf16.msra.mxu0 0
      %2667 = vmatpush.bf16.msra.mxu0 0
      %2668 = vmatpush.bf16.msra.mxu0 0
      %2669 = vmatpush.bf16.msra.mxu0 0
      %2670 = vmatpush.bf16.msra.mxu0 %v2631
      %2671 = vmatpush.bf16.msra.mxu0 %v2630
      %2672 = vmatmul.bf16.gmra.mxu0 %v2653
      %v2673 = vpop.f32.mrf.mxu0
      %v2674 = vadd.f32 0.0, %v2673
      %v2675 = vpop.f32.mrf.mxu0
      %v2676 = vadd.f32 0.0, %v2675
      %2677 = vmatmul.bf16.gmra.mxu0 %v2656
      %v2678 = vpop.f32.mrf.mxu0
      %v2679 = vadd.f32 0.0, %v2678
      %v2680 = vpop.f32.mrf.mxu0
      %v2681 = vadd.f32 0.0, %v2680
      %2682 = vmatmul.bf16.gmra.mxu0 %v2659
      %v2683 = vpop.f32.mrf.mxu0
      %v2684 = vadd.f32 0.0, %v2683
      %v2685 = vpop.f32.mrf.mxu0
      %v2686 = vadd.f32 0.0, %v2685
      %2687 = vmatmul.bf16.gmra.mxu0 %v2662
      %v2688 = vpop.f32.mrf.mxu0
      %v2689 = vadd.f32 0.0, %v2688
      %v2690 = vpop.f32.mrf.mxu0
      %v2691 = vadd.f32 0.0, %v2690
      %2692 = vdwg.mxu0
      %v2693 = vadd.f32 %v2550, %v2674
      %v2694 = vadd.f32 %v2552, %v2676
      %v2695 = vadd.f32 %v2555, %v2679
      %v2696 = vadd.f32 %v2557, %v2681
      %v2697 = vadd.f32 %v2560, %v2684
      %v2698 = vadd.f32 %v2562, %v2686
      %v2699 = vadd.f32 %v2565, %v2689
      %v2700 = vadd.f32 %v2567, %v2691
      %s2701 = scalar_lea.vmem %s6, 96
      %v2702 = vld [vmem:[%s2701] sm:$0xf]
      %v2703 = vld [vmem:[%s2701 + $0x4] sm:$0xf]
      %v2704 = vld [vmem:[%s2701 + $0x8] sm:$0xf]
      %v2705 = vld [vmem:[%s2701 + $0xc] sm:$0xf]
      %v2706 = vld [vmem:[%s2701 + $0x10] sm:$0xf]
      %v2707 = vld [vmem:[%s2701 + $0x14] sm:$0xf]
      %v2708 = vld [vmem:[%s2701 + $0x18] sm:$0xf]
      %v2709 = vld [vmem:[%s2701 + $0x1c] sm:$0xf]
      %v2718 = vunpack.c.l.b16 %v2702
      %v2719 = vunpack.c.l.b16 %v2703
      %v2720 = vunpack.c.l.b16 %v2704
      %v2721 = vunpack.c.l.b16 %v2705
      %v2722 = vunpack.c.l.b16 %v2706
      %v2723 = vunpack.c.l.b16 %v2707
      %v2724 = vunpack.c.l.b16 %v2708
      %v2725 = vunpack.c.l.b16 %v2709
      %v2726 = vpack.c.b16 %v2719, %v2718
      %v2727 = vpack.c.b16 %v2721, %v2720
      %v2728 = vpack.c.b16 %v2723, %v2722
      %v2729 = vpack.c.b16 %v2725, %v2724
      %2734 = vmatpush.bf16.msra.mxu0 0
      %2735 = vmatpush.bf16.msra.mxu0 0
      %2736 = vmatpush.bf16.msra.mxu0 0
      %2737 = vmatpush.bf16.msra.mxu0 0
      %2738 = vmatpush.bf16.msra.mxu0 %v2729
      %2739 = vmatpush.bf16.msra.mxu0 %v2728
      %2740 = vmatpush.bf16.msra.mxu0 %v2727
      %2741 = vmatpush.bf16.msra.mxu0 %v2726
      %2742 = vmatmul.bf16.gmra.mxu0 %v2349
      %v2743 = vpop.f32.mrf.mxu0
      %v2744 = vadd.f32 0.0, %v2743
      %v2745 = vpop.f32.mrf.mxu0
      %v2746 = vadd.f32 0.0, %v2745
      %2747 = vmatmul.bf16.gmra.mxu0 %v2352
      %v2748 = vpop.f32.mrf.mxu0
      %v2749 = vadd.f32 0.0, %v2748
      %v2750 = vpop.f32.mrf.mxu0
      %v2751 = vadd.f32 0.0, %v2750
      %2752 = vdwg.mxu0
      %s2753 = scalar_lea.vmem %s4, 96
      %v2754 = vld [vmem:[%s2753] sm:$0xf]
      %v2755 = vld [vmem:[%s2753 + $0x4] sm:$0xf]
      %v2756 = vld [vmem:[%s2753 + $0x8] sm:$0xf]
      %v2757 = vld [vmem:[%s2753 + $0xc] sm:$0xf]
      %v2758 = vld [vmem:[%s2753 + $0x10] sm:$0xf]
      %v2759 = vld [vmem:[%s2753 + $0x14] sm:$0xf]
      %v2760 = vld [vmem:[%s2753 + $0x18] sm:$0xf]
      %v2761 = vld [vmem:[%s2753 + $0x1c] sm:$0xf]
      %v2762 = vpack.c.bf16 %v2746, %v2744
      %v2763 = vpack.c.bf16 %v2751, %v2749
      %v2772 = vunpack.c.l.b16 %v2754
      %v2773 = vunpack.c.l.b16 %v2755
      %v2774 = vunpack.c.l.b16 %v2756
      %v2775 = vunpack.c.l.b16 %v2757
      %v2776 = vunpack.c.l.b16 %v2758
      %v2777 = vunpack.c.l.b16 %v2759
      %v2778 = vunpack.c.l.b16 %v2760
      %v2779 = vunpack.c.l.b16 %v2761
      %v2780 = vpack.c.b16 %v2773, %v2772
      %v2781 = vpack.c.b16 %v2775, %v2774
      %v2782 = vpack.c.b16 %v2777, %v2776
      %v2783 = vpack.c.b16 %v2779, %v2778
      %v2785 = vsel %vm2466, %v2780, 0
      %v2788 = vsel %vm2466, %v2781, 0
      %v2791 = vsel %vm2466, %v2782, 0
      %v2794 = vsel %vm2466, %v2783, 0
      %2796 = vmatpush.bf16.msra.mxu0 0
      %2797 = vmatpush.bf16.msra.mxu0 0
      %2798 = vmatpush.bf16.msra.mxu0 0
      %2799 = vmatpush.bf16.msra.mxu0 0
      %2800 = vmatpush.bf16.msra.mxu0 0
      %2801 = vmatpush.bf16.msra.mxu0 0
      %2802 = vmatpush.bf16.msra.mxu0 %v2763
      %2803 = vmatpush.bf16.msra.mxu0 %v2762
      %2804 = vmatmul.bf16.gmra.mxu0 %v2785
      %v2805 = vpop.f32.mrf.mxu0
      %v2806 = vadd.f32 0.0, %v2805
      %v2807 = vpop.f32.mrf.mxu0
      %v2808 = vadd.f32 0.0, %v2807
      %2809 = vmatmul.bf16.gmra.mxu0 %v2788
      %v2810 = vpop.f32.mrf.mxu0
      %v2811 = vadd.f32 0.0, %v2810
      %v2812 = vpop.f32.mrf.mxu0
      %v2813 = vadd.f32 0.0, %v2812
      %2814 = vmatmul.bf16.gmra.mxu0 %v2791
      %v2815 = vpop.f32.mrf.mxu0
      %v2816 = vadd.f32 0.0, %v2815
      %v2817 = vpop.f32.mrf.mxu0
      %v2818 = vadd.f32 0.0, %v2817
      %2819 = vmatmul.bf16.gmra.mxu0 %v2794
      %v2820 = vpop.f32.mrf.mxu0
      %v2821 = vadd.f32 0.0, %v2820
      %v2822 = vpop.f32.mrf.mxu0
      %v2823 = vadd.f32 0.0, %v2822
      %2824 = vdwg.mxu0
      %v2825 = vadd.f32 %v2693, %v2806
      %v2826 = vadd.f32 %v2694, %v2808
      %v2827 = vadd.f32 %v2695, %v2811
      %v2828 = vadd.f32 %v2696, %v2813
      %v2829 = vadd.f32 %v2697, %v2816
      %v2830 = vadd.f32 %v2698, %v2818
      %v2831 = vadd.f32 %v2699, %v2821
      %v2832 = vadd.f32 %v2700, %v2823
      %s2833 = scalar_lea.vmem %s6, 128
      %v2834 = vld [vmem:[%s2833] sm:$0xf]
      %v2835 = vld [vmem:[%s2833 + $0x4] sm:$0xf]
      %v2836 = vld [vmem:[%s2833 + $0x8] sm:$0xf]
      %v2837 = vld [vmem:[%s2833 + $0xc] sm:$0xf]
      %v2838 = vld [vmem:[%s2833 + $0x10] sm:$0xf]
      %v2839 = vld [vmem:[%s2833 + $0x14] sm:$0xf]
      %v2840 = vld [vmem:[%s2833 + $0x18] sm:$0xf]
      %v2841 = vld [vmem:[%s2833 + $0x1c] sm:$0xf]
      %v2850 = vunpack.c.l.b16 %v2834
      %v2851 = vunpack.c.l.b16 %v2835
      %v2852 = vunpack.c.l.b16 %v2836
      %v2853 = vunpack.c.l.b16 %v2837
      %v2854 = vunpack.c.l.b16 %v2838
      %v2855 = vunpack.c.l.b16 %v2839
      %v2856 = vunpack.c.l.b16 %v2840
      %v2857 = vunpack.c.l.b16 %v2841
      %v2858 = vpack.c.b16 %v2851, %v2850
      %v2859 = vpack.c.b16 %v2853, %v2852
      %v2860 = vpack.c.b16 %v2855, %v2854
      %v2861 = vpack.c.b16 %v2857, %v2856
      %2866 = vmatpush.bf16.msra.mxu0 0
      %2867 = vmatpush.bf16.msra.mxu0 0
      %2868 = vmatpush.bf16.msra.mxu0 0
      %2869 = vmatpush.bf16.msra.mxu0 0
      %2870 = vmatpush.bf16.msra.mxu0 %v2861
      %2871 = vmatpush.bf16.msra.mxu0 %v2860
      %2872 = vmatpush.bf16.msra.mxu0 %v2859
      %2873 = vmatpush.bf16.msra.mxu0 %v2858
      %2874 = vmatmul.bf16.gmra.mxu0 %v2349
      %v2875 = vpop.f32.mrf.mxu0
      %v2876 = vadd.f32 0.0, %v2875
      %v2877 = vpop.f32.mrf.mxu0
      %v2878 = vadd.f32 0.0, %v2877
      %2879 = vmatmul.bf16.gmra.mxu0 %v2352
      %v2880 = vpop.f32.mrf.mxu0
      %v2881 = vadd.f32 0.0, %v2880
      %v2882 = vpop.f32.mrf.mxu0
      %v2883 = vadd.f32 0.0, %v2882
      %2884 = vdwg.mxu0
      %s2885 = scalar_lea.vmem %s4, 128
      %v2886 = vld [vmem:[%s2885] sm:$0xf]
      %v2887 = vld [vmem:[%s2885 + $0x4] sm:$0xf]
      %v2888 = vld [vmem:[%s2885 + $0x8] sm:$0xf]
      %v2889 = vld [vmem:[%s2885 + $0xc] sm:$0xf]
      %v2890 = vld [vmem:[%s2885 + $0x10] sm:$0xf]
      %v2891 = vld [vmem:[%s2885 + $0x14] sm:$0xf]
      %v2892 = vld [vmem:[%s2885 + $0x18] sm:$0xf]
      %v2893 = vld [vmem:[%s2885 + $0x1c] sm:$0xf]
      %v2894 = vpack.c.bf16 %v2878, %v2876
      %v2895 = vpack.c.bf16 %v2883, %v2881
      %v2904 = vunpack.c.l.b16 %v2886
      %v2905 = vunpack.c.l.b16 %v2887
      %v2906 = vunpack.c.l.b16 %v2888
      %v2907 = vunpack.c.l.b16 %v2889
      %v2908 = vunpack.c.l.b16 %v2890
      %v2909 = vunpack.c.l.b16 %v2891
      %v2910 = vunpack.c.l.b16 %v2892
      %v2911 = vunpack.c.l.b16 %v2893
      %v2912 = vpack.c.b16 %v2905, %v2904
      %v2913 = vpack.c.b16 %v2907, %v2906
      %v2914 = vpack.c.b16 %v2909, %v2908
      %v2915 = vpack.c.b16 %v2911, %v2910
      %v2917 = vsel %vm2466, %v2912, 0
      %v2920 = vsel %vm2466, %v2913, 0
      %v2923 = vsel %vm2466, %v2914, 0
      %v2926 = vsel %vm2466, %v2915, 0
      %2928 = vmatpush.bf16.msra.mxu0 0
      %2929 = vmatpush.bf16.msra.mxu0 0
      %2930 = vmatpush.bf16.msra.mxu0 0
      %2931 = vmatpush.bf16.msra.mxu0 0
      %2932 = vmatpush.bf16.msra.mxu0 0
      %2933 = vmatpush.bf16.msra.mxu0 0
      %2934 = vmatpush.bf16.msra.mxu0 %v2895
      %2935 = vmatpush.bf16.msra.mxu0 %v2894
      %2936 = vmatmul.bf16.gmra.mxu0 %v2917
      %v2937 = vpop.f32.mrf.mxu0
      %v2938 = vadd.f32 0.0, %v2937
      %v2939 = vpop.f32.mrf.mxu0
      %v2940 = vadd.f32 0.0, %v2939
      %2941 = vmatmul.bf16.gmra.mxu0 %v2920
      %v2942 = vpop.f32.mrf.mxu0
      %v2943 = vadd.f32 0.0, %v2942
      %v2944 = vpop.f32.mrf.mxu0
      %v2945 = vadd.f32 0.0, %v2944
      %2946 = vmatmul.bf16.gmra.mxu0 %v2923
      %v2947 = vpop.f32.mrf.mxu0
      %v2948 = vadd.f32 0.0, %v2947
      %v2949 = vpop.f32.mrf.mxu0
      %v2950 = vadd.f32 0.0, %v2949
      %2951 = vmatmul.bf16.gmra.mxu0 %v2926
      %v2952 = vpop.f32.mrf.mxu0
      %v2953 = vadd.f32 0.0, %v2952
      %v2954 = vpop.f32.mrf.mxu0
      %v2955 = vadd.f32 0.0, %v2954
      %2956 = vdwg.mxu0
      %v2957 = vadd.f32 %v2825, %v2938
      %v2958 = vadd.f32 %v2826, %v2940
      %v2959 = vadd.f32 %v2827, %v2943
      %v2960 = vadd.f32 %v2828, %v2945
      %v2961 = vadd.f32 %v2829, %v2948
      %v2962 = vadd.f32 %v2830, %v2950
      %v2963 = vadd.f32 %v2831, %v2953
      %v2964 = vadd.f32 %v2832, %v2955
      %s2965 = scalar_lea.vmem %s6, 160
      %v2966 = vld [vmem:[%s2965] sm:$0xf]
      %v2967 = vld [vmem:[%s2965 + $0x4] sm:$0xf]
      %v2968 = vld [vmem:[%s2965 + $0x8] sm:$0xf]
      %v2969 = vld [vmem:[%s2965 + $0xc] sm:$0xf]
      %v2970 = vld [vmem:[%s2965 + $0x10] sm:$0xf]
      %v2971 = vld [vmem:[%s2965 + $0x14] sm:$0xf]
      %v2972 = vld [vmem:[%s2965 + $0x18] sm:$0xf]
      %v2973 = vld [vmem:[%s2965 + $0x1c] sm:$0xf]
      %v2982 = vunpack.c.l.b16 %v2966
      %v2983 = vunpack.c.l.b16 %v2967
      %v2984 = vunpack.c.l.b16 %v2968
      %v2985 = vunpack.c.l.b16 %v2969
      %v2986 = vunpack.c.l.b16 %v2970
      %v2987 = vunpack.c.l.b16 %v2971
      %v2988 = vunpack.c.l.b16 %v2972
      %v2989 = vunpack.c.l.b16 %v2973
      %v2990 = vpack.c.b16 %v2983, %v2982
      %v2991 = vpack.c.b16 %v2985, %v2984
      %v2992 = vpack.c.b16 %v2987, %v2986
      %v2993 = vpack.c.b16 %v2989, %v2988
      %2998 = vmatpush.bf16.msra.mxu0 0
      %2999 = vmatpush.bf16.msra.mxu0 0
      %3000 = vmatpush.bf16.msra.mxu0 0
      %3001 = vmatpush.bf16.msra.mxu0 0
      %3002 = vmatpush.bf16.msra.mxu0 %v2993
      %3003 = vmatpush.bf16.msra.mxu0 %v2992
      %3004 = vmatpush.bf16.msra.mxu0 %v2991
      %3005 = vmatpush.bf16.msra.mxu0 %v2990
      %3006 = vmatmul.bf16.gmra.mxu0 %v2349
      %v3007 = vpop.f32.mrf.mxu0
      %v3008 = vadd.f32 0.0, %v3007
      %v3009 = vpop.f32.mrf.mxu0
      %v3010 = vadd.f32 0.0, %v3009
      %3011 = vmatmul.bf16.gmra.mxu0 %v2352
      %v3012 = vpop.f32.mrf.mxu0
      %v3013 = vadd.f32 0.0, %v3012
      %v3014 = vpop.f32.mrf.mxu0
      %v3015 = vadd.f32 0.0, %v3014
      %3016 = vdwg.mxu0
      %s3017 = scalar_lea.vmem %s4, 160
      %v3018 = vld [vmem:[%s3017] sm:$0xf]
      %v3019 = vld [vmem:[%s3017 + $0x4] sm:$0xf]
      %v3020 = vld [vmem:[%s3017 + $0x8] sm:$0xf]
      %v3021 = vld [vmem:[%s3017 + $0xc] sm:$0xf]
      %v3022 = vld [vmem:[%s3017 + $0x10] sm:$0xf]
      %v3023 = vld [vmem:[%s3017 + $0x14] sm:$0xf]
      %v3024 = vld [vmem:[%s3017 + $0x18] sm:$0xf]
      %v3025 = vld [vmem:[%s3017 + $0x1c] sm:$0xf]
      %v3026 = vpack.c.bf16 %v3010, %v3008
      %v3027 = vpack.c.bf16 %v3015, %v3013
      %v3036 = vunpack.c.l.b16 %v3018
      %v3037 = vunpack.c.l.b16 %v3019
      %v3038 = vunpack.c.l.b16 %v3020
      %v3039 = vunpack.c.l.b16 %v3021
      %v3040 = vunpack.c.l.b16 %v3022
      %v3041 = vunpack.c.l.b16 %v3023
      %v3042 = vunpack.c.l.b16 %v3024
      %v3043 = vunpack.c.l.b16 %v3025
      %v3044 = vpack.c.b16 %v3037, %v3036
      %v3045 = vpack.c.b16 %v3039, %v3038
      %v3046 = vpack.c.b16 %v3041, %v3040
      %v3047 = vpack.c.b16 %v3043, %v3042
      %v3049 = vsel %vm2466, %v3044, 0
      %v3052 = vsel %vm2466, %v3045, 0
      %v3055 = vsel %vm2466, %v3046, 0
      %v3058 = vsel %vm2466, %v3047, 0
      %3060 = vmatpush.bf16.msra.mxu0 0
      %3061 = vmatpush.bf16.msra.mxu0 0
      %3062 = vmatpush.bf16.msra.mxu0 0
      %3063 = vmatpush.bf16.msra.mxu0 0
      %3064 = vmatpush.bf16.msra.mxu0 0
      %3065 = vmatpush.bf16.msra.mxu0 0
      %3066 = vmatpush.bf16.msra.mxu0 %v3027
      %3067 = vmatpush.bf16.msra.mxu0 %v3026
      %3068 = vmatmul.bf16.gmra.mxu0 %v3049
      %v3069 = vpop.f32.mrf.mxu0
      %v3070 = vadd.f32 0.0, %v3069
      %v3071 = vpop.f32.mrf.mxu0
      %v3072 = vadd.f32 0.0, %v3071
      %3073 = vmatmul.bf16.gmra.mxu0 %v3052
      %v3074 = vpop.f32.mrf.mxu0
      %v3075 = vadd.f32 0.0, %v3074
      %v3076 = vpop.f32.mrf.mxu0
      %v3077 = vadd.f32 0.0, %v3076
      %3078 = vmatmul.bf16.gmra.mxu0 %v3055
      %v3079 = vpop.f32.mrf.mxu0
      %v3080 = vadd.f32 0.0, %v3079
      %v3081 = vpop.f32.mrf.mxu0
      %v3082 = vadd.f32 0.0, %v3081
      %3083 = vmatmul.bf16.gmra.mxu0 %v3058
      %v3084 = vpop.f32.mrf.mxu0
      %v3085 = vadd.f32 0.0, %v3084
      %v3086 = vpop.f32.mrf.mxu0
      %v3087 = vadd.f32 0.0, %v3086
      %3088 = vdwg.mxu0
      %v3089 = vadd.f32 %v2957, %v3070
      %v3090 = vadd.f32 %v2958, %v3072
      %v3091 = vadd.f32 %v2959, %v3075
      %v3092 = vadd.f32 %v2960, %v3077
      %v3093 = vadd.f32 %v2961, %v3080
      %v3094 = vadd.f32 %v2962, %v3082
      %v3095 = vadd.f32 %v2963, %v3085
      %v3096 = vadd.f32 %v2964, %v3087
      %s3097 = scalar_lea.vmem %s6, 192
      %v3098 = vld [vmem:[%s3097] sm:$0xf]
      %v3099 = vld [vmem:[%s3097 + $0x4] sm:$0xf]
      %v3100 = vld [vmem:[%s3097 + $0x8] sm:$0xf]
      %v3101 = vld [vmem:[%s3097 + $0xc] sm:$0xf]
      %v3102 = vld [vmem:[%s3097 + $0x10] sm:$0xf]
      %v3103 = vld [vmem:[%s3097 + $0x14] sm:$0xf]
      %v3104 = vld [vmem:[%s3097 + $0x18] sm:$0xf]
      %v3105 = vld [vmem:[%s3097 + $0x1c] sm:$0xf]
      %v3114 = vunpack.c.l.b16 %v3098
      %v3115 = vunpack.c.l.b16 %v3099
      %v3116 = vunpack.c.l.b16 %v3100
      %v3117 = vunpack.c.l.b16 %v3101
      %v3118 = vunpack.c.l.b16 %v3102
      %v3119 = vunpack.c.l.b16 %v3103
      %v3120 = vunpack.c.l.b16 %v3104
      %v3121 = vunpack.c.l.b16 %v3105
      %v3122 = vpack.c.b16 %v3115, %v3114
      %v3123 = vpack.c.b16 %v3117, %v3116
      %v3124 = vpack.c.b16 %v3119, %v3118
      %v3125 = vpack.c.b16 %v3121, %v3120
      %3130 = vmatpush.bf16.msra.mxu0 0
      %3131 = vmatpush.bf16.msra.mxu0 0
      %3132 = vmatpush.bf16.msra.mxu0 0
      %3133 = vmatpush.bf16.msra.mxu0 0
      %3134 = vmatpush.bf16.msra.mxu0 %v3125
      %3135 = vmatpush.bf16.msra.mxu0 %v3124
      %3136 = vmatpush.bf16.msra.mxu0 %v3123
      %3137 = vmatpush.bf16.msra.mxu0 %v3122
      %3138 = vmatmul.bf16.gmra.mxu0 %v2349
      %v3139 = vpop.f32.mrf.mxu0
      %v3140 = vadd.f32 0.0, %v3139
      %v3141 = vpop.f32.mrf.mxu0
      %v3142 = vadd.f32 0.0, %v3141
      %3143 = vmatmul.bf16.gmra.mxu0 %v2352
      %v3144 = vpop.f32.mrf.mxu0
      %v3145 = vadd.f32 0.0, %v3144
      %v3146 = vpop.f32.mrf.mxu0
      %v3147 = vadd.f32 0.0, %v3146
      %3148 = vdwg.mxu0
      %s3149 = scalar_lea.vmem %s4, 192
      %v3150 = vld [vmem:[%s3149] sm:$0xf]
      %v3151 = vld [vmem:[%s3149 + $0x4] sm:$0xf]
      %v3152 = vld [vmem:[%s3149 + $0x8] sm:$0xf]
      %v3153 = vld [vmem:[%s3149 + $0xc] sm:$0xf]
      %v3154 = vld [vmem:[%s3149 + $0x10] sm:$0xf]
      %v3155 = vld [vmem:[%s3149 + $0x14] sm:$0xf]
      %v3156 = vld [vmem:[%s3149 + $0x18] sm:$0xf]
      %v3157 = vld [vmem:[%s3149 + $0x1c] sm:$0xf]
      %v3158 = vpack.c.bf16 %v3142, %v3140
      %v3159 = vpack.c.bf16 %v3147, %v3145
      %v3168 = vunpack.c.l.b16 %v3150
      %v3169 = vunpack.c.l.b16 %v3151
      %v3170 = vunpack.c.l.b16 %v3152
      %v3171 = vunpack.c.l.b16 %v3153
      %v3172 = vunpack.c.l.b16 %v3154
      %v3173 = vunpack.c.l.b16 %v3155
      %v3174 = vunpack.c.l.b16 %v3156
      %v3175 = vunpack.c.l.b16 %v3157
      %v3176 = vpack.c.b16 %v3169, %v3168
      %v3177 = vpack.c.b16 %v3171, %v3170
      %v3178 = vpack.c.b16 %v3173, %v3172
      %v3179 = vpack.c.b16 %v3175, %v3174
      %v3181 = vsel %vm2466, %v3176, 0
      %v3184 = vsel %vm2466, %v3177, 0
      %v3187 = vsel %vm2466, %v3178, 0
      %v3190 = vsel %vm2466, %v3179, 0
      %3192 = vmatpush.bf16.msra.mxu0 0
      %3193 = vmatpush.bf16.msra.mxu0 0
      %3194 = vmatpush.bf16.msra.mxu0 0
      %3195 = vmatpush.bf16.msra.mxu0 0
      %3196 = vmatpush.bf16.msra.mxu0 0
      %3197 = vmatpush.bf16.msra.mxu0 0
      %3198 = vmatpush.bf16.msra.mxu0 %v3159
      %3199 = vmatpush.bf16.msra.mxu0 %v3158
      %3200 = vmatmul.bf16.gmra.mxu0 %v3181
      %v3201 = vpop.f32.mrf.mxu0
      %v3202 = vadd.f32 0.0, %v3201
      %v3203 = vpop.f32.mrf.mxu0
      %v3204 = vadd.f32 0.0, %v3203
      %3205 = vmatmul.bf16.gmra.mxu0 %v3184
      %v3206 = vpop.f32.mrf.mxu0
      %v3207 = vadd.f32 0.0, %v3206
      %v3208 = vpop.f32.mrf.mxu0
      %v3209 = vadd.f32 0.0, %v3208
      %3210 = vmatmul.bf16.gmra.mxu0 %v3187
      %v3211 = vpop.f32.mrf.mxu0
      %v3212 = vadd.f32 0.0, %v3211
      %v3213 = vpop.f32.mrf.mxu0
      %v3214 = vadd.f32 0.0, %v3213
      %3215 = vmatmul.bf16.gmra.mxu0 %v3190
      %v3216 = vpop.f32.mrf.mxu0
      %v3217 = vadd.f32 0.0, %v3216
      %v3218 = vpop.f32.mrf.mxu0
      %v3219 = vadd.f32 0.0, %v3218
      %3220 = vdwg.mxu0
      %v3221 = vadd.f32 %v3089, %v3202
      %v3222 = vadd.f32 %v3090, %v3204
      %v3223 = vadd.f32 %v3091, %v3207
      %v3224 = vadd.f32 %v3092, %v3209
      %v3225 = vadd.f32 %v3093, %v3212
      %v3226 = vadd.f32 %v3094, %v3214
      %v3227 = vadd.f32 %v3095, %v3217
      %v3228 = vadd.f32 %v3096, %v3219
      %s3229 = scalar_lea.vmem %s6, 224
      %v3230 = vld [vmem:[%s3229] sm:$0xf]
      %v3231 = vld [vmem:[%s3229 + $0x4] sm:$0xf]
      %v3232 = vld [vmem:[%s3229 + $0x8] sm:$0xf]
      %v3233 = vld [vmem:[%s3229 + $0xc] sm:$0xf]
      %v3234 = vld [vmem:[%s3229 + $0x10] sm:$0xf]
      %v3235 = vld [vmem:[%s3229 + $0x14] sm:$0xf]
      %v3236 = vld [vmem:[%s3229 + $0x18] sm:$0xf]
      %v3237 = vld [vmem:[%s3229 + $0x1c] sm:$0xf]
      %v3246 = vunpack.c.l.b16 %v3230
      %v3247 = vunpack.c.l.b16 %v3231
      %v3248 = vunpack.c.l.b16 %v3232
      %v3249 = vunpack.c.l.b16 %v3233
      %v3250 = vunpack.c.l.b16 %v3234
      %v3251 = vunpack.c.l.b16 %v3235
      %v3252 = vunpack.c.l.b16 %v3236
      %v3253 = vunpack.c.l.b16 %v3237
      %v3254 = vpack.c.b16 %v3247, %v3246
      %v3255 = vpack.c.b16 %v3249, %v3248
      %v3256 = vpack.c.b16 %v3251, %v3250
      %v3257 = vpack.c.b16 %v3253, %v3252
      %3262 = vmatpush.bf16.msra.mxu0 0
      %3263 = vmatpush.bf16.msra.mxu0 0
      %3264 = vmatpush.bf16.msra.mxu0 0
      %3265 = vmatpush.bf16.msra.mxu0 0
      %3266 = vmatpush.bf16.msra.mxu0 %v3257
      %3267 = vmatpush.bf16.msra.mxu0 %v3256
      %3268 = vmatpush.bf16.msra.mxu0 %v3255
      %3269 = vmatpush.bf16.msra.mxu0 %v3254
      %3270 = vmatmul.bf16.gmra.mxu0 %v2349
      %v3271 = vpop.f32.mrf.mxu0
      %v3272 = vadd.f32 0.0, %v3271
      %v3273 = vpop.f32.mrf.mxu0
      %v3274 = vadd.f32 0.0, %v3273
      %3275 = vmatmul.bf16.gmra.mxu0 %v2352
      %v3276 = vpop.f32.mrf.mxu0
      %v3277 = vadd.f32 0.0, %v3276
      %v3278 = vpop.f32.mrf.mxu0
      %v3279 = vadd.f32 0.0, %v3278
      %3280 = vdwg.mxu0
      %s3281 = scalar_lea.vmem %s4, 224
      %v3282 = vld [vmem:[%s3281] sm:$0xf]
      %v3283 = vld [vmem:[%s3281 + $0x4] sm:$0xf]
      %v3284 = vld [vmem:[%s3281 + $0x8] sm:$0xf]
      %v3285 = vld [vmem:[%s3281 + $0xc] sm:$0xf]
      %v3286 = vld [vmem:[%s3281 + $0x10] sm:$0xf]
      %v3287 = vld [vmem:[%s3281 + $0x14] sm:$0xf]
      %v3288 = vld [vmem:[%s3281 + $0x18] sm:$0xf]
      %v3289 = vld [vmem:[%s3281 + $0x1c] sm:$0xf]
      %v3290 = vpack.c.bf16 %v3274, %v3272
      %v3291 = vpack.c.bf16 %v3279, %v3277
      %v3300 = vunpack.c.l.b16 %v3282
      %v3301 = vunpack.c.l.b16 %v3283
      %v3302 = vunpack.c.l.b16 %v3284
      %v3303 = vunpack.c.l.b16 %v3285
      %v3304 = vunpack.c.l.b16 %v3286
      %v3305 = vunpack.c.l.b16 %v3287
      %v3306 = vunpack.c.l.b16 %v3288
      %v3307 = vunpack.c.l.b16 %v3289
      %v3308 = vpack.c.b16 %v3301, %v3300
      %v3309 = vpack.c.b16 %v3303, %v3302
      %v3310 = vpack.c.b16 %v3305, %v3304
      %v3311 = vpack.c.b16 %v3307, %v3306
      %v3313 = vsel %vm2466, %v3308, 0
      %v3316 = vsel %vm2466, %v3309, 0
      %v3319 = vsel %vm2466, %v3310, 0
      %v3322 = vsel %vm2466, %v3311, 0
      %3324 = vmatpush.bf16.msra.mxu0 0
      %3325 = vmatpush.bf16.msra.mxu0 0
      %3326 = vmatpush.bf16.msra.mxu0 0
      %3327 = vmatpush.bf16.msra.mxu0 0
      %3328 = vmatpush.bf16.msra.mxu0 0
      %3329 = vmatpush.bf16.msra.mxu0 0
      %3330 = vmatpush.bf16.msra.mxu0 %v3291
      %3331 = vmatpush.bf16.msra.mxu0 %v3290
      %3332 = vmatmul.bf16.gmra.mxu0 %v3313
      %v3333 = vpop.f32.mrf.mxu0
      %v3334 = vadd.f32 0.0, %v3333
      %v3335 = vpop.f32.mrf.mxu0
      %v3336 = vadd.f32 0.0, %v3335
      %3337 = vmatmul.bf16.gmra.mxu0 %v3316
      %v3338 = vpop.f32.mrf.mxu0
      %v3339 = vadd.f32 0.0, %v3338
      %v3340 = vpop.f32.mrf.mxu0
      %v3341 = vadd.f32 0.0, %v3340
      %3342 = vmatmul.bf16.gmra.mxu0 %v3319
      %v3343 = vpop.f32.mrf.mxu0
      %v3344 = vadd.f32 0.0, %v3343
      %v3345 = vpop.f32.mrf.mxu0
      %v3346 = vadd.f32 0.0, %v3345
      %3347 = vmatmul.bf16.gmra.mxu0 %v3322
      %v3348 = vpop.f32.mrf.mxu0
      %v3349 = vadd.f32 0.0, %v3348
      %v3350 = vpop.f32.mrf.mxu0
      %v3351 = vadd.f32 0.0, %v3350
      %3352 = vdwg.mxu0
      %v3353 = vadd.f32 %v3221, %v3334
      %v3354 = vadd.f32 %v3222, %v3336
      %v3355 = vadd.f32 %v3223, %v3339
      %v3356 = vadd.f32 %v3224, %v3341
      %v3357 = vadd.f32 %v3225, %v3344
      %v3358 = vadd.f32 %v3226, %v3346
      %v3359 = vadd.f32 %v3227, %v3349
      %v3360 = vadd.f32 %v3228, %v3351
      %s3361 = scalar_lea.vmem %s6, 256
      %v3362 = vld [vmem:[%s3361] sm:$0xf]
      %v3363 = vld [vmem:[%s3361 + $0x4] sm:$0xf]
      %v3364 = vld [vmem:[%s3361 + $0x8] sm:$0xf]
      %v3365 = vld [vmem:[%s3361 + $0xc] sm:$0xf]
      %v3366 = vld [vmem:[%s3361 + $0x10] sm:$0xf]
      %v3367 = vld [vmem:[%s3361 + $0x14] sm:$0xf]
      %v3368 = vld [vmem:[%s3361 + $0x18] sm:$0xf]
      %v3369 = vld [vmem:[%s3361 + $0x1c] sm:$0xf]
      %v3378 = vunpack.c.l.b16 %v3362
      %v3379 = vunpack.c.l.b16 %v3363
      %v3380 = vunpack.c.l.b16 %v3364
      %v3381 = vunpack.c.l.b16 %v3365
      %v3382 = vunpack.c.l.b16 %v3366
      %v3383 = vunpack.c.l.b16 %v3367
      %v3384 = vunpack.c.l.b16 %v3368
      %v3385 = vunpack.c.l.b16 %v3369
      %v3386 = vpack.c.b16 %v3379, %v3378
      %v3387 = vpack.c.b16 %v3381, %v3380
      %v3388 = vpack.c.b16 %v3383, %v3382
      %v3389 = vpack.c.b16 %v3385, %v3384
      %3394 = vmatpush.bf16.msra.mxu0 0
      %3395 = vmatpush.bf16.msra.mxu0 0
      %3396 = vmatpush.bf16.msra.mxu0 0
      %3397 = vmatpush.bf16.msra.mxu0 0
      %3398 = vmatpush.bf16.msra.mxu0 %v3389
      %3399 = vmatpush.bf16.msra.mxu0 %v3388
      %3400 = vmatpush.bf16.msra.mxu0 %v3387
      %3401 = vmatpush.bf16.msra.mxu0 %v3386
      %3402 = vmatmul.bf16.gmra.mxu0 %v2349
      %v3403 = vpop.f32.mrf.mxu0
      %v3404 = vadd.f32 0.0, %v3403
      %v3405 = vpop.f32.mrf.mxu0
      %v3406 = vadd.f32 0.0, %v3405
      %3407 = vmatmul.bf16.gmra.mxu0 %v2352
      %v3408 = vpop.f32.mrf.mxu0
      %v3409 = vadd.f32 0.0, %v3408
      %v3410 = vpop.f32.mrf.mxu0
      %v3411 = vadd.f32 0.0, %v3410
      %3412 = vdwg.mxu0
      %s3413 = scalar_lea.vmem %s4, 256
      %v3414 = vld [vmem:[%s3413] sm:$0xf]
      %v3415 = vld [vmem:[%s3413 + $0x4] sm:$0xf]
      %v3416 = vld [vmem:[%s3413 + $0x8] sm:$0xf]
      %v3417 = vld [vmem:[%s3413 + $0xc] sm:$0xf]
      %v3418 = vld [vmem:[%s3413 + $0x10] sm:$0xf]
      %v3419 = vld [vmem:[%s3413 + $0x14] sm:$0xf]
      %v3420 = vld [vmem:[%s3413 + $0x18] sm:$0xf]
      %v3421 = vld [vmem:[%s3413 + $0x1c] sm:$0xf]
      %v3422 = vpack.c.bf16 %v3406, %v3404
      %v3423 = vpack.c.bf16 %v3411, %v3409
      %v3432 = vunpack.c.l.b16 %v3414
      %v3433 = vunpack.c.l.b16 %v3415
      %v3434 = vunpack.c.l.b16 %v3416
      %v3435 = vunpack.c.l.b16 %v3417
      %v3436 = vunpack.c.l.b16 %v3418
      %v3437 = vunpack.c.l.b16 %v3419
      %v3438 = vunpack.c.l.b16 %v3420
      %v3439 = vunpack.c.l.b16 %v3421
      %v3440 = vpack.c.b16 %v3433, %v3432
      %v3441 = vpack.c.b16 %v3435, %v3434
      %v3442 = vpack.c.b16 %v3437, %v3436
      %v3443 = vpack.c.b16 %v3439, %v3438
      %v3445 = vsel %vm2466, %v3440, 0
      %v3448 = vsel %vm2466, %v3441, 0
      %v3451 = vsel %vm2466, %v3442, 0
      %v3454 = vsel %vm2466, %v3443, 0
      %3456 = vmatpush.bf16.msra.mxu0 0
      %3457 = vmatpush.bf16.msra.mxu0 0
      %3458 = vmatpush.bf16.msra.mxu0 0
      %3459 = vmatpush.bf16.msra.mxu0 0
      %3460 = vmatpush.bf16.msra.mxu0 0
      %3461 = vmatpush.bf16.msra.mxu0 0
      %3462 = vmatpush.bf16.msra.mxu0 %v3423
      %3463 = vmatpush.bf16.msra.mxu0 %v3422
      %3464 = vmatmul.bf16.gmra.mxu0 %v3445
      %v3465 = vpop.f32.mrf.mxu0
      %v3466 = vadd.f32 0.0, %v3465
      %v3467 = vpop.f32.mrf.mxu0
      %v3468 = vadd.f32 0.0, %v3467
      %3469 = vmatmul.bf16.gmra.mxu0 %v3448
      %v3470 = vpop.f32.mrf.mxu0
      %v3471 = vadd.f32 0.0, %v3470
      %v3472 = vpop.f32.mrf.mxu0
      %v3473 = vadd.f32 0.0, %v3472
      %3474 = vmatmul.bf16.gmra.mxu0 %v3451
      %v3475 = vpop.f32.mrf.mxu0
      %v3476 = vadd.f32 0.0, %v3475
      %v3477 = vpop.f32.mrf.mxu0
      %v3478 = vadd.f32 0.0, %v3477
      %3479 = vmatmul.bf16.gmra.mxu0 %v3454
      %v3480 = vpop.f32.mrf.mxu0
      %v3481 = vadd.f32 0.0, %v3480
      %v3482 = vpop.f32.mrf.mxu0
      %v3483 = vadd.f32 0.0, %v3482
      %3484 = vdwg.mxu0
      %v3485 = vadd.f32 %v3353, %v3466
      %v3486 = vadd.f32 %v3354, %v3468
      %v3487 = vadd.f32 %v3355, %v3471
      %v3488 = vadd.f32 %v3356, %v3473
      %v3489 = vadd.f32 %v3357, %v3476
      %v3490 = vadd.f32 %v3358, %v3478
      %v3491 = vadd.f32 %v3359, %v3481
      %v3492 = vadd.f32 %v3360, %v3483
      %v3493 = vld [vmem:[%s5] sm:$0xff]
      %v3494 = vld [vmem:[%s5 + $0x8] sm:$0xff]
      %v3495 = vld [vmem:[%s5 + $0x10] sm:$0xff]
      %v3496 = vld [vmem:[%s5 + $0x18] sm:$0xff]
      %v3497 = vld [vmem:[%s5 + $0x20] sm:$0xff]
      %v3498 = vld [vmem:[%s5 + $0x28] sm:$0xff]
      %v3499 = vld [vmem:[%s5 + $0x30] sm:$0xff]
      %v3500 = vld [vmem:[%s5 + $0x38] sm:$0xff]
      %3502 = vset.pattern.permute.xlu0 0
      %3503 = vperm.xlu0 %3502, %v3493
      %v3504 = vpop.permute.xlu0 %3503
      %3507 = vset.pattern.permute.xlu0 0
      %3508 = vperm.xlu0 %3507, %v3494
      %v3509 = vpop.permute.xlu0 %3508
      %3512 = vset.pattern.permute.xlu0 0
      %3513 = vperm.xlu0 %3512, %v3495
      %v3514 = vpop.permute.xlu0 %3513
      %3517 = vset.pattern.permute.xlu0 0
      %3518 = vperm.xlu0 %3517, %v3496
      %v3519 = vpop.permute.xlu0 %3518
      %3522 = vset.pattern.permute.xlu0 0
      %3523 = vperm.xlu0 %3522, %v3497
      %v3524 = vpop.permute.xlu0 %3523
      %3527 = vset.pattern.permute.xlu0 0
      %3528 = vperm.xlu0 %3527, %v3498
      %v3529 = vpop.permute.xlu0 %3528
      %3532 = vset.pattern.permute.xlu0 0
      %3533 = vperm.xlu0 %3532, %v3499
      %v3534 = vpop.permute.xlu0 %3533
      %3537 = vset.pattern.permute.xlu0 0
      %3538 = vperm.xlu0 %3537, %v3500
      %v3539 = vpop.permute.xlu0 %3538
      %v3541 = vadd.f32 %v3485, %v3504
      %v3542 = vadd.f32 %v3486, %v3509
      %v3543 = vadd.f32 %v3487, %v3514
      %v3544 = vadd.f32 %v3488, %v3519
      %v3545 = vadd.f32 %v3489, %v3524
      %v3546 = vadd.f32 %v3490, %v3529
      %v3547 = vadd.f32 %v3491, %v3534
      %v3548 = vadd.f32 %v3492, %v3539
      %v3549 = vmax.f32 %v3541, 0.0
      %v3550 = vmax.f32 %v3542, 0.0
      %v3551 = vmax.f32 %v3543, 0.0
      %v3552 = vmax.f32 %v3544, 0.0
      %v3553 = vmax.f32 %v3545, 0.0
      %v3554 = vmax.f32 %v3546, 0.0
      %v3555 = vmax.f32 %v3547, 0.0
      %v3556 = vmax.f32 %v3548, 0.0
      %v3557 = vpack.c.bf16 %v3550, %v3549
      %v3558 = vpack.c.bf16 %v3552, %v3551
      %v3559 = vpack.c.bf16 %v3554, %v3553
      %v3560 = vpack.c.bf16 %v3556, %v3555
      %v3561 = vld [vmem:[%s9] sm:$0xf]
      %v3562 = vld [vmem:[%s9 + $0x4] sm:$0xf]
      %v3565 = vunpack.c.l.b16 %v3561
      %v3566 = vunpack.c.l.b16 %v3562
      %v3567 = vpack.c.b16 %v3566, %v3565
      %vm3569 = vcmask 130048
      %v3571 = vsel %vm3569, %v3557, 0
      %v3574 = vsel %vm3569, %v3558, 0
      %v3577 = vsel %vm3569, %v3559, 0
      %v3580 = vsel %vm3569, %v3560, 0
      %3582 = vmatpush.bf16.msra.mxu0 0
      %3583 = vmatpush.bf16.msra.mxu0 0
      %3584 = vmatpush.bf16.msra.mxu0 0
      %3585 = vmatpush.bf16.msra.mxu0 0
      %3586 = vmatpush.bf16.msra.mxu0 0
      %3587 = vmatpush.bf16.msra.mxu0 0
      %3588 = vmatpush.bf16.msra.mxu0 0
      %3589 = vmatpush.bf16.msra.mxu0 %v3567
      %3590 = vmatmul.bf16.gmra.mxu0 %v3571
      %v3591 = vpop.f32.mrf.mxu0
      %v3592 = vadd.f32 0.0, %v3591
      %v3593 = vpop.f32.mrf.mxu0
      %v3594 = vadd.f32 0.0, %v3593
      %3595 = vmatmul.bf16.gmra.mxu0 %v3574
      %v3596 = vpop.f32.mrf.mxu0
      %v3597 = vadd.f32 0.0, %v3596
      %v3598 = vpop.f32.mrf.mxu0
      %v3599 = vadd.f32 0.0, %v3598
      %3600 = vmatmul.bf16.gmra.mxu0 %v3577
      %v3601 = vpop.f32.mrf.mxu0
      %v3602 = vadd.f32 0.0, %v3601
      %v3603 = vpop.f32.mrf.mxu0
      %v3604 = vadd.f32 0.0, %v3603
      %3605 = vmatmul.bf16.gmra.mxu0 %v3580
      %v3606 = vpop.f32.mrf.mxu0
      %v3607 = vadd.f32 0.0, %v3606
      %v3608 = vpop.f32.mrf.mxu0
      %v3609 = vadd.f32 0.0, %v3608
      %3610 = vdwg.mxu0
      %v3611 = vld [vmem:[%s7] sm:$0xf]
      %v3612 = vld [vmem:[%s7 + $0x4] sm:$0xf]
      %v3613 = vld [vmem:[%s7 + $0x8] sm:$0xf]
      %v3614 = vld [vmem:[%s7 + $0xc] sm:$0xf]
      %v3615 = vpack.c.bf16 %v3594, %v3592
      %v3616 = vpack.c.bf16 %v3599, %v3597
      %v3617 = vpack.c.bf16 %v3604, %v3602
      %v3618 = vpack.c.bf16 %v3609, %v3607
      %s3619 = scalar_lea.vmem %s9, 8
      %v3620 = vld [vmem:[%s3619] sm:$0xf]
      %v3621 = vld [vmem:[%s3619 + $0x4] sm:$0xf]
      %v3624 = vunpack.c.l.b16 %v3620
      %v3625 = vunpack.c.l.b16 %v3621
      %v3626 = vpack.c.b16 %v3625, %v3624
      %3628 = vmatpush.bf16.msra.mxu0 0
      %3629 = vmatpush.bf16.msra.mxu0 0
      %3630 = vmatpush.bf16.msra.mxu0 0
      %3631 = vmatpush.bf16.msra.mxu0 0
      %3632 = vmatpush.bf16.msra.mxu0 0
      %3633 = vmatpush.bf16.msra.mxu0 0
      %3634 = vmatpush.bf16.msra.mxu0 0
      %3635 = vmatpush.bf16.msra.mxu0 %v3626
      %3636 = vmatmul.bf16.gmra.mxu0 %v3571
      %v3637 = vpop.f32.mrf.mxu0
      %v3638 = vadd.f32 0.0, %v3637
      %v3639 = vpop.f32.mrf.mxu0
      %v3640 = vadd.f32 0.0, %v3639
      %3641 = vmatmul.bf16.gmra.mxu0 %v3574
      %v3642 = vpop.f32.mrf.mxu0
      %v3643 = vadd.f32 0.0, %v3642
      %v3644 = vpop.f32.mrf.mxu0
      %v3645 = vadd.f32 0.0, %v3644
      %3646 = vmatmul.bf16.gmra.mxu0 %v3577
      %v3647 = vpop.f32.mrf.mxu0
      %v3648 = vadd.f32 0.0, %v3647
      %v3649 = vpop.f32.mrf.mxu0
      %v3650 = vadd.f32 0.0, %v3649
      %3651 = vmatmul.bf16.gmra.mxu0 %v3580
      %v3652 = vpop.f32.mrf.mxu0
      %v3653 = vadd.f32 0.0, %v3652
      %v3654 = vpop.f32.mrf.mxu0
      %v3655 = vadd.f32 0.0, %v3654
      %3656 = vdwg.mxu0
      %s3657 = scalar_lea.vmem %s7, 16
      %v3658 = vld [vmem:[%s3657] sm:$0xf]
      %v3659 = vld [vmem:[%s3657 + $0x4] sm:$0xf]
      %v3660 = vld [vmem:[%s3657 + $0x8] sm:$0xf]
      %v3661 = vld [vmem:[%s3657 + $0xc] sm:$0xf]
      %v3662 = vpack.c.bf16 %v3640, %v3638
      %v3663 = vpack.c.bf16 %v3645, %v3643
      %v3664 = vpack.c.bf16 %v3650, %v3648
      %v3665 = vpack.c.bf16 %v3655, %v3653
      %v3670 = vunpack.c.l.b16 %v3658
      %v3671 = vunpack.c.l.b16 %v3659
      %v3672 = vunpack.c.l.b16 %v3660
      %v3673 = vunpack.c.l.b16 %v3661
      %v3674 = vpack.c.b16 %v3671, %v3670
      %v3675 = vpack.c.b16 %v3673, %v3672
      %v3677 = vsel %vm2347, %v3674, 0
      %v3680 = vsel %vm2347, %v3675, 0
      %3682 = vmatpush.bf16.msra.mxu0 0
      %3683 = vmatpush.bf16.msra.mxu0 0
      %3684 = vmatpush.bf16.msra.mxu0 0
      %3685 = vmatpush.bf16.msra.mxu0 0
      %3686 = vmatpush.bf16.msra.mxu0 %v3665
      %3687 = vmatpush.bf16.msra.mxu0 %v3664
      %3688 = vmatpush.bf16.msra.mxu0 %v3663
      %3689 = vmatpush.bf16.msra.mxu0 %v3662
      %3690 = vmatmul.bf16.gmra.mxu0 %v3677
      %v3691 = vpop.f32.mrf.mxu0
      %v3692 = vadd.f32 0.0, %v3691
      %v3693 = vpop.f32.mrf.mxu0
      %v3694 = vadd.f32 0.0, %v3693
      %3695 = vmatmul.bf16.gmra.mxu0 %v3680
      %v3696 = vpop.f32.mrf.mxu0
      %v3697 = vadd.f32 0.0, %v3696
      %v3698 = vpop.f32.mrf.mxu0
      %v3699 = vadd.f32 0.0, %v3698
      %3700 = vdwg.mxu0
      %v3705 = vunpack.c.l.b16 %v3611
      %v3706 = vunpack.c.l.b16 %v3612
      %v3707 = vunpack.c.l.b16 %v3613
      %v3708 = vunpack.c.l.b16 %v3614
      %v3709 = vpack.c.b16 %v3706, %v3705
      %v3710 = vpack.c.b16 %v3708, %v3707
      %v3712 = vsel %vm2347, %v3709, 0
      %v3715 = vsel %vm2347, %v3710, 0
      %3717 = vmatpush.bf16.msra.mxu0 0
      %3718 = vmatpush.bf16.msra.mxu0 0
      %3719 = vmatpush.bf16.msra.mxu0 0
      %3720 = vmatpush.bf16.msra.mxu0 0
      %3721 = vmatpush.bf16.msra.mxu0 %v3618
      %3722 = vmatpush.bf16.msra.mxu0 %v3617
      %3723 = vmatpush.bf16.msra.mxu0 %v3616
      %3724 = vmatpush.bf16.msra.mxu0 %v3615
      %3725 = vmatmul.bf16.gmra.mxu0 %v3712
      %v3726 = vpop.f32.mrf.mxu0
      %v3727 = vadd.f32 %v3692, %v3726
      %v3728 = vpop.f32.mrf.mxu0
      %v3729 = vadd.f32 %v3694, %v3728
      %3730 = vmatmul.bf16.gmra.mxu0 %v3715
      %v3731 = vpop.f32.mrf.mxu0
      %v3732 = vadd.f32 %v3697, %v3731
      %v3733 = vpop.f32.mrf.mxu0
      %v3734 = vadd.f32 %v3699, %v3733
      %3735 = vdwg.mxu0
      %s3736 = scalar_lea.vmem %s9, 16
      %v3737 = vld [vmem:[%s3736] sm:$0xf]
      %v3738 = vld [vmem:[%s3736 + $0x4] sm:$0xf]
      %v3741 = vunpack.c.l.b16 %v3737
      %v3742 = vunpack.c.l.b16 %v3738
      %v3743 = vpack.c.b16 %v3742, %v3741
      %3745 = vmatpush.bf16.msra.mxu0 0
      %3746 = vmatpush.bf16.msra.mxu0 0
      %3747 = vmatpush.bf16.msra.mxu0 0
      %3748 = vmatpush.bf16.msra.mxu0 0
      %3749 = vmatpush.bf16.msra.mxu0 0
      %3750 = vmatpush.bf16.msra.mxu0 0
      %3751 = vmatpush.bf16.msra.mxu0 0
      %3752 = vmatpush.bf16.msra.mxu0 %v3743
      %3753 = vmatmul.bf16.gmra.mxu0 %v3571
      %v3754 = vpop.f32.mrf.mxu0
      %v3755 = vadd.f32 0.0, %v3754
      %v3756 = vpop.f32.mrf.mxu0
      %v3757 = vadd.f32 0.0, %v3756
      %3758 = vmatmul.bf16.gmra.mxu0 %v3574
      %v3759 = vpop.f32.mrf.mxu0
      %v3760 = vadd.f32 0.0, %v3759
      %v3761 = vpop.f32.mrf.mxu0
      %v3762 = vadd.f32 0.0, %v3761
      %3763 = vmatmul.bf16.gmra.mxu0 %v3577
      %v3764 = vpop.f32.mrf.mxu0
      %v3765 = vadd.f32 0.0, %v3764
      %v3766 = vpop.f32.mrf.mxu0
      %v3767 = vadd.f32 0.0, %v3766
      %3768 = vmatmul.bf16.gmra.mxu0 %v3580
      %v3769 = vpop.f32.mrf.mxu0
      %v3770 = vadd.f32 0.0, %v3769
      %v3771 = vpop.f32.mrf.mxu0
      %v3772 = vadd.f32 0.0, %v3771
      %3773 = vdwg.mxu0
      %s3774 = scalar_lea.vmem %s7, 32
      %v3775 = vld [vmem:[%s3774] sm:$0xf]
      %v3776 = vld [vmem:[%s3774 + $0x4] sm:$0xf]
      %v3777 = vld [vmem:[%s3774 + $0x8] sm:$0xf]
      %v3778 = vld [vmem:[%s3774 + $0xc] sm:$0xf]
      %v3779 = vpack.c.bf16 %v3757, %v3755
      %v3780 = vpack.c.bf16 %v3762, %v3760
      %v3781 = vpack.c.bf16 %v3767, %v3765
      %v3782 = vpack.c.bf16 %v3772, %v3770
      %v3787 = vunpack.c.l.b16 %v3775
      %v3788 = vunpack.c.l.b16 %v3776
      %v3789 = vunpack.c.l.b16 %v3777
      %v3790 = vunpack.c.l.b16 %v3778
      %v3791 = vpack.c.b16 %v3788, %v3787
      %v3792 = vpack.c.b16 %v3790, %v3789
      %v3794 = vsel %vm2347, %v3791, 0
      %v3797 = vsel %vm2347, %v3792, 0
      %3799 = vmatpush.bf16.msra.mxu0 0
      %3800 = vmatpush.bf16.msra.mxu0 0
      %3801 = vmatpush.bf16.msra.mxu0 0
      %3802 = vmatpush.bf16.msra.mxu0 0
      %3803 = vmatpush.bf16.msra.mxu0 %v3782
      %3804 = vmatpush.bf16.msra.mxu0 %v3781
      %3805 = vmatpush.bf16.msra.mxu0 %v3780
      %3806 = vmatpush.bf16.msra.mxu0 %v3779
      %3807 = vmatmul.bf16.gmra.mxu0 %v3794
      %v3808 = vpop.f32.mrf.mxu0
      %v3809 = vadd.f32 0.0, %v3808
      %v3810 = vpop.f32.mrf.mxu0
      %v3811 = vadd.f32 0.0, %v3810
      %3812 = vmatmul.bf16.gmra.mxu0 %v3797
      %v3813 = vpop.f32.mrf.mxu0
      %v3814 = vadd.f32 0.0, %v3813
      %v3815 = vpop.f32.mrf.mxu0
      %v3816 = vadd.f32 0.0, %v3815
      %3817 = vdwg.mxu0
      %v3818 = vadd.f32 %v3727, %v3809
      %v3819 = vadd.f32 %v3729, %v3811
      %v3820 = vadd.f32 %v3732, %v3814
      %v3821 = vadd.f32 %v3734, %v3816
      %s3822 = scalar_lea.vmem %s9, 24
      %v3823 = vld [vmem:[%s3822] sm:$0xf]
      %v3824 = vld [vmem:[%s3822 + $0x4] sm:$0xf]
      %v3827 = vunpack.c.l.b16 %v3823
      %v3828 = vunpack.c.l.b16 %v3824
      %v3829 = vpack.c.b16 %v3828, %v3827
      %3831 = vmatpush.bf16.msra.mxu0 0
      %3832 = vmatpush.bf16.msra.mxu0 0
      %3833 = vmatpush.bf16.msra.mxu0 0
      %3834 = vmatpush.bf16.msra.mxu0 0
      %3835 = vmatpush.bf16.msra.mxu0 0
      %3836 = vmatpush.bf16.msra.mxu0 0
      %3837 = vmatpush.bf16.msra.mxu0 0
      %3838 = vmatpush.bf16.msra.mxu0 %v3829
      %3839 = vmatmul.bf16.gmra.mxu0 %v3571
      %v3840 = vpop.f32.mrf.mxu0
      %v3841 = vadd.f32 0.0, %v3840
      %v3842 = vpop.f32.mrf.mxu0
      %v3843 = vadd.f32 0.0, %v3842
      %3844 = vmatmul.bf16.gmra.mxu0 %v3574
      %v3845 = vpop.f32.mrf.mxu0
      %v3846 = vadd.f32 0.0, %v3845
      %v3847 = vpop.f32.mrf.mxu0
      %v3848 = vadd.f32 0.0, %v3847
      %3849 = vmatmul.bf16.gmra.mxu0 %v3577
      %v3850 = vpop.f32.mrf.mxu0
      %v3851 = vadd.f32 0.0, %v3850
      %v3852 = vpop.f32.mrf.mxu0
      %v3853 = vadd.f32 0.0, %v3852
      %3854 = vmatmul.bf16.gmra.mxu0 %v3580
      %v3855 = vpop.f32.mrf.mxu0
      %v3856 = vadd.f32 0.0, %v3855
      %v3857 = vpop.f32.mrf.mxu0
      %v3858 = vadd.f32 0.0, %v3857
      %3859 = vdwg.mxu0
      %s3860 = scalar_lea.vmem %s7, 48
      %v3861 = vld [vmem:[%s3860] sm:$0xf]
      %v3862 = vld [vmem:[%s3860 + $0x4] sm:$0xf]
      %v3863 = vld [vmem:[%s3860 + $0x8] sm:$0xf]
      %v3864 = vld [vmem:[%s3860 + $0xc] sm:$0xf]
      %v3865 = vpack.c.bf16 %v3843, %v3841
      %v3866 = vpack.c.bf16 %v3848, %v3846
      %v3867 = vpack.c.bf16 %v3853, %v3851
      %v3868 = vpack.c.bf16 %v3858, %v3856
      %v3873 = vunpack.c.l.b16 %v3861
      %v3874 = vunpack.c.l.b16 %v3862
      %v3875 = vunpack.c.l.b16 %v3863
      %v3876 = vunpack.c.l.b16 %v3864
      %v3877 = vpack.c.b16 %v3874, %v3873
      %v3878 = vpack.c.b16 %v3876, %v3875
      %v3880 = vsel %vm2347, %v3877, 0
      %v3883 = vsel %vm2347, %v3878, 0
      %3885 = vmatpush.bf16.msra.mxu0 0
      %3886 = vmatpush.bf16.msra.mxu0 0
      %3887 = vmatpush.bf16.msra.mxu0 0
      %3888 = vmatpush.bf16.msra.mxu0 0
      %3889 = vmatpush.bf16.msra.mxu0 %v3868
      %3890 = vmatpush.bf16.msra.mxu0 %v3867
      %3891 = vmatpush.bf16.msra.mxu0 %v3866
      %3892 = vmatpush.bf16.msra.mxu0 %v3865
      %3893 = vmatmul.bf16.gmra.mxu0 %v3880
      %v3894 = vpop.f32.mrf.mxu0
      %v3895 = vadd.f32 0.0, %v3894
      %v3896 = vpop.f32.mrf.mxu0
      %v3897 = vadd.f32 0.0, %v3896
      %3898 = vmatmul.bf16.gmra.mxu0 %v3883
      %v3899 = vpop.f32.mrf.mxu0
      %v3900 = vadd.f32 0.0, %v3899
      %v3901 = vpop.f32.mrf.mxu0
      %v3902 = vadd.f32 0.0, %v3901
      %3903 = vdwg.mxu0
      %v3904 = vadd.f32 %v3818, %v3895
      %v3905 = vadd.f32 %v3819, %v3897
      %v3906 = vadd.f32 %v3820, %v3900
      %v3907 = vadd.f32 %v3821, %v3902
      %s3908 = scalar_lea.vmem %s9, 32
      %v3909 = vld [vmem:[%s3908] sm:$0xf]
      %v3910 = vld [vmem:[%s3908 + $0x4] sm:$0xf]
      %v3913 = vunpack.c.l.b16 %v3909
      %v3914 = vunpack.c.l.b16 %v3910
      %v3915 = vpack.c.b16 %v3914, %v3913
      %3917 = vmatpush.bf16.msra.mxu0 0
      %3918 = vmatpush.bf16.msra.mxu0 0
      %3919 = vmatpush.bf16.msra.mxu0 0
      %3920 = vmatpush.bf16.msra.mxu0 0
      %3921 = vmatpush.bf16.msra.mxu0 0
      %3922 = vmatpush.bf16.msra.mxu0 0
      %3923 = vmatpush.bf16.msra.mxu0 0
      %3924 = vmatpush.bf16.msra.mxu0 %v3915
      %3925 = vmatmul.bf16.gmra.mxu0 %v3571
      %v3926 = vpop.f32.mrf.mxu0
      %v3927 = vadd.f32 0.0, %v3926
      %v3928 = vpop.f32.mrf.mxu0
      %v3929 = vadd.f32 0.0, %v3928
      %3930 = vmatmul.bf16.gmra.mxu0 %v3574
      %v3931 = vpop.f32.mrf.mxu0
      %v3932 = vadd.f32 0.0, %v3931
      %v3933 = vpop.f32.mrf.mxu0
      %v3934 = vadd.f32 0.0, %v3933
      %3935 = vmatmul.bf16.gmra.mxu0 %v3577
      %v3936 = vpop.f32.mrf.mxu0
      %v3937 = vadd.f32 0.0, %v3936
      %v3938 = vpop.f32.mrf.mxu0
      %v3939 = vadd.f32 0.0, %v3938
      %3940 = vmatmul.bf16.gmra.mxu0 %v3580
      %v3941 = vpop.f32.mrf.mxu0
      %v3942 = vadd.f32 0.0, %v3941
      %v3943 = vpop.f32.mrf.mxu0
      %v3944 = vadd.f32 0.0, %v3943
      %3945 = vdwg.mxu0
      %s3946 = scalar_lea.vmem %s7, 64
      %v3947 = vld [vmem:[%s3946] sm:$0xf]
      %v3948 = vld [vmem:[%s3946 + $0x4] sm:$0xf]
      %v3949 = vld [vmem:[%s3946 + $0x8] sm:$0xf]
      %v3950 = vld [vmem:[%s3946 + $0xc] sm:$0xf]
      %v3951 = vpack.c.bf16 %v3929, %v3927
      %v3952 = vpack.c.bf16 %v3934, %v3932
      %v3953 = vpack.c.bf16 %v3939, %v3937
      %v3954 = vpack.c.bf16 %v3944, %v3942
      %v3959 = vunpack.c.l.b16 %v3947
      %v3960 = vunpack.c.l.b16 %v3948
      %v3961 = vunpack.c.l.b16 %v3949
      %v3962 = vunpack.c.l.b16 %v3950
      %v3963 = vpack.c.b16 %v3960, %v3959
      %v3964 = vpack.c.b16 %v3962, %v3961
      %v3966 = vsel %vm2347, %v3963, 0
      %v3969 = vsel %vm2347, %v3964, 0
      %3971 = vmatpush.bf16.msra.mxu0 0
      %3972 = vmatpush.bf16.msra.mxu0 0
      %3973 = vmatpush.bf16.msra.mxu0 0
      %3974 = vmatpush.bf16.msra.mxu0 0
      %3975 = vmatpush.bf16.msra.mxu0 %v3954
      %3976 = vmatpush.bf16.msra.mxu0 %v3953
      %3977 = vmatpush.bf16.msra.mxu0 %v3952
      %3978 = vmatpush.bf16.msra.mxu0 %v3951
      %3979 = vmatmul.bf16.gmra.mxu0 %v3966
      %v3980 = vpop.f32.mrf.mxu0
      %v3981 = vadd.f32 0.0, %v3980
      %v3982 = vpop.f32.mrf.mxu0
      %v3983 = vadd.f32 0.0, %v3982
      %3984 = vmatmul.bf16.gmra.mxu0 %v3969
      %v3985 = vpop.f32.mrf.mxu0
      %v3986 = vadd.f32 0.0, %v3985
      %v3987 = vpop.f32.mrf.mxu0
      %v3988 = vadd.f32 0.0, %v3987
      %3989 = vdwg.mxu0
      %v3990 = vadd.f32 %v3904, %v3981
      %v3991 = vadd.f32 %v3905, %v3983
      %v3992 = vadd.f32 %v3906, %v3986
      %v3993 = vadd.f32 %v3907, %v3988
      %s3994 = scalar_lea.vmem %s9, 40
      %v3995 = vld [vmem:[%s3994] sm:$0xf]
      %v3996 = vld [vmem:[%s3994 + $0x4] sm:$0xf]
      %v3999 = vunpack.c.l.b16 %v3995
      %v4000 = vunpack.c.l.b16 %v3996
      %v4001 = vpack.c.b16 %v4000, %v3999
      %4003 = vmatpush.bf16.msra.mxu0 0
      %4004 = vmatpush.bf16.msra.mxu0 0
      %4005 = vmatpush.bf16.msra.mxu0 0
      %4006 = vmatpush.bf16.msra.mxu0 0
      %4007 = vmatpush.bf16.msra.mxu0 0
      %4008 = vmatpush.bf16.msra.mxu0 0
      %4009 = vmatpush.bf16.msra.mxu0 0
      %4010 = vmatpush.bf16.msra.mxu0 %v4001
      %4011 = vmatmul.bf16.gmra.mxu0 %v3571
      %v4012 = vpop.f32.mrf.mxu0
      %v4013 = vadd.f32 0.0, %v4012
      %v4014 = vpop.f32.mrf.mxu0
      %v4015 = vadd.f32 0.0, %v4014
      %4016 = vmatmul.bf16.gmra.mxu0 %v3574
      %v4017 = vpop.f32.mrf.mxu0
      %v4018 = vadd.f32 0.0, %v4017
      %v4019 = vpop.f32.mrf.mxu0
      %v4020 = vadd.f32 0.0, %v4019
      %4021 = vmatmul.bf16.gmra.mxu0 %v3577
      %v4022 = vpop.f32.mrf.mxu0
      %v4023 = vadd.f32 0.0, %v4022
      %v4024 = vpop.f32.mrf.mxu0
      %v4025 = vadd.f32 0.0, %v4024
      %4026 = vmatmul.bf16.gmra.mxu0 %v3580
      %v4027 = vpop.f32.mrf.mxu0
      %v4028 = vadd.f32 0.0, %v4027
      %v4029 = vpop.f32.mrf.mxu0
      %v4030 = vadd.f32 0.0, %v4029
      %4031 = vdwg.mxu0
      %s4032 = scalar_lea.vmem %s7, 80
      %v4033 = vld [vmem:[%s4032] sm:$0xf]
      %v4034 = vld [vmem:[%s4032 + $0x4] sm:$0xf]
      %v4035 = vld [vmem:[%s4032 + $0x8] sm:$0xf]
      %v4036 = vld [vmem:[%s4032 + $0xc] sm:$0xf]
      %v4037 = vpack.c.bf16 %v4015, %v4013
      %v4038 = vpack.c.bf16 %v4020, %v4018
      %v4039 = vpack.c.bf16 %v4025, %v4023
      %v4040 = vpack.c.bf16 %v4030, %v4028
      %v4045 = vunpack.c.l.b16 %v4033
      %v4046 = vunpack.c.l.b16 %v4034
      %v4047 = vunpack.c.l.b16 %v4035
      %v4048 = vunpack.c.l.b16 %v4036
      %v4049 = vpack.c.b16 %v4046, %v4045
      %v4050 = vpack.c.b16 %v4048, %v4047
      %v4052 = vsel %vm2347, %v4049, 0
      %v4055 = vsel %vm2347, %v4050, 0
      %4057 = vmatpush.bf16.msra.mxu0 0
      %4058 = vmatpush.bf16.msra.mxu0 0
      %4059 = vmatpush.bf16.msra.mxu0 0
      %4060 = vmatpush.bf16.msra.mxu0 0
      %4061 = vmatpush.bf16.msra.mxu0 %v4040
      %4062 = vmatpush.bf16.msra.mxu0 %v4039
      %4063 = vmatpush.bf16.msra.mxu0 %v4038
      %4064 = vmatpush.bf16.msra.mxu0 %v4037
      %4065 = vmatmul.bf16.gmra.mxu0 %v4052
      %v4066 = vpop.f32.mrf.mxu0
      %v4067 = vadd.f32 0.0, %v4066
      %v4068 = vpop.f32.mrf.mxu0
      %v4069 = vadd.f32 0.0, %v4068
      %4070 = vmatmul.bf16.gmra.mxu0 %v4055
      %v4071 = vpop.f32.mrf.mxu0
      %v4072 = vadd.f32 0.0, %v4071
      %v4073 = vpop.f32.mrf.mxu0
      %v4074 = vadd.f32 0.0, %v4073
      %4075 = vdwg.mxu0
      %v4076 = vadd.f32 %v3990, %v4067
      %v4077 = vadd.f32 %v3991, %v4069
      %v4078 = vadd.f32 %v3992, %v4072
      %v4079 = vadd.f32 %v3993, %v4074
      %s4080 = scalar_lea.vmem %s9, 48
      %v4081 = vld [vmem:[%s4080] sm:$0xf]
      %v4082 = vld [vmem:[%s4080 + $0x4] sm:$0xf]
      %v4085 = vunpack.c.l.b16 %v4081
      %v4086 = vunpack.c.l.b16 %v4082
      %v4087 = vpack.c.b16 %v4086, %v4085
      %4089 = vmatpush.bf16.msra.mxu0 0
      %4090 = vmatpush.bf16.msra.mxu0 0
      %4091 = vmatpush.bf16.msra.mxu0 0
      %4092 = vmatpush.bf16.msra.mxu0 0
      %4093 = vmatpush.bf16.msra.mxu0 0
      %4094 = vmatpush.bf16.msra.mxu0 0
      %4095 = vmatpush.bf16.msra.mxu0 0
      %4096 = vmatpush.bf16.msra.mxu0 %v4087
      %4097 = vmatmul.bf16.gmra.mxu0 %v3571
      %v4098 = vpop.f32.mrf.mxu0
      %v4099 = vadd.f32 0.0, %v4098
      %v4100 = vpop.f32.mrf.mxu0
      %v4101 = vadd.f32 0.0, %v4100
      %4102 = vmatmul.bf16.gmra.mxu0 %v3574
      %v4103 = vpop.f32.mrf.mxu0
      %v4104 = vadd.f32 0.0, %v4103
      %v4105 = vpop.f32.mrf.mxu0
      %v4106 = vadd.f32 0.0, %v4105
      %4107 = vmatmul.bf16.gmra.mxu0 %v3577
      %v4108 = vpop.f32.mrf.mxu0
      %v4109 = vadd.f32 0.0, %v4108
      %v4110 = vpop.f32.mrf.mxu0
      %v4111 = vadd.f32 0.0, %v4110
      %4112 = vmatmul.bf16.gmra.mxu0 %v3580
      %v4113 = vpop.f32.mrf.mxu0
      %v4114 = vadd.f32 0.0, %v4113
      %v4115 = vpop.f32.mrf.mxu0
      %v4116 = vadd.f32 0.0, %v4115
      %4117 = vdwg.mxu0
      %s4118 = scalar_lea.vmem %s7, 96
      %v4119 = vld [vmem:[%s4118] sm:$0xf]
      %v4120 = vld [vmem:[%s4118 + $0x4] sm:$0xf]
      %v4121 = vld [vmem:[%s4118 + $0x8] sm:$0xf]
      %v4122 = vld [vmem:[%s4118 + $0xc] sm:$0xf]
      %v4123 = vpack.c.bf16 %v4101, %v4099
      %v4124 = vpack.c.bf16 %v4106, %v4104
      %v4125 = vpack.c.bf16 %v4111, %v4109
      %v4126 = vpack.c.bf16 %v4116, %v4114
      %v4131 = vunpack.c.l.b16 %v4119
      %v4132 = vunpack.c.l.b16 %v4120
      %v4133 = vunpack.c.l.b16 %v4121
      %v4134 = vunpack.c.l.b16 %v4122
      %v4135 = vpack.c.b16 %v4132, %v4131
      %v4136 = vpack.c.b16 %v4134, %v4133
      %v4138 = vsel %vm2347, %v4135, 0
      %v4141 = vsel %vm2347, %v4136, 0
      %4143 = vmatpush.bf16.msra.mxu0 0
      %4144 = vmatpush.bf16.msra.mxu0 0
      %4145 = vmatpush.bf16.msra.mxu0 0
      %4146 = vmatpush.bf16.msra.mxu0 0
      %4147 = vmatpush.bf16.msra.mxu0 %v4126
      %4148 = vmatpush.bf16.msra.mxu0 %v4125
      %4149 = vmatpush.bf16.msra.mxu0 %v4124
      %4150 = vmatpush.bf16.msra.mxu0 %v4123
      %4151 = vmatmul.bf16.gmra.mxu0 %v4138
      %v4152 = vpop.f32.mrf.mxu0
      %v4153 = vadd.f32 0.0, %v4152
      %v4154 = vpop.f32.mrf.mxu0
      %v4155 = vadd.f32 0.0, %v4154
      %4156 = vmatmul.bf16.gmra.mxu0 %v4141
      %v4157 = vpop.f32.mrf.mxu0
      %v4158 = vadd.f32 0.0, %v4157
      %v4159 = vpop.f32.mrf.mxu0
      %v4160 = vadd.f32 0.0, %v4159
      %4161 = vdwg.mxu0
      %v4162 = vadd.f32 %v4076, %v4153
      %v4163 = vadd.f32 %v4077, %v4155
      %v4164 = vadd.f32 %v4078, %v4158
      %v4165 = vadd.f32 %v4079, %v4160
      %s4166 = scalar_lea.vmem %s9, 56
      %v4167 = vld [vmem:[%s4166] sm:$0xf]
      %v4168 = vld [vmem:[%s4166 + $0x4] sm:$0xf]
      %v4171 = vunpack.c.l.b16 %v4167
      %v4172 = vunpack.c.l.b16 %v4168
      %v4173 = vpack.c.b16 %v4172, %v4171
      %4175 = vmatpush.bf16.msra.mxu0 0
      %4176 = vmatpush.bf16.msra.mxu0 0
      %4177 = vmatpush.bf16.msra.mxu0 0
      %4178 = vmatpush.bf16.msra.mxu0 0
      %4179 = vmatpush.bf16.msra.mxu0 0
      %4180 = vmatpush.bf16.msra.mxu0 0
      %4181 = vmatpush.bf16.msra.mxu0 0
      %4182 = vmatpush.bf16.msra.mxu0 %v4173
      %4183 = vmatmul.bf16.gmra.mxu0 %v3571
      %v4184 = vpop.f32.mrf.mxu0
      %v4185 = vadd.f32 0.0, %v4184
      %v4186 = vpop.f32.mrf.mxu0
      %v4187 = vadd.f32 0.0, %v4186
      %4188 = vmatmul.bf16.gmra.mxu0 %v3574
      %v4189 = vpop.f32.mrf.mxu0
      %v4190 = vadd.f32 0.0, %v4189
      %v4191 = vpop.f32.mrf.mxu0
      %v4192 = vadd.f32 0.0, %v4191
      %4193 = vmatmul.bf16.gmra.mxu0 %v3577
      %v4194 = vpop.f32.mrf.mxu0
      %v4195 = vadd.f32 0.0, %v4194
      %v4196 = vpop.f32.mrf.mxu0
      %v4197 = vadd.f32 0.0, %v4196
      %4198 = vmatmul.bf16.gmra.mxu0 %v3580
      %v4199 = vpop.f32.mrf.mxu0
      %v4200 = vadd.f32 0.0, %v4199
      %v4201 = vpop.f32.mrf.mxu0
      %v4202 = vadd.f32 0.0, %v4201
      %4203 = vdwg.mxu0
      %s4204 = scalar_lea.vmem %s7, 112
      %v4205 = vld [vmem:[%s4204] sm:$0xf]
      %v4206 = vld [vmem:[%s4204 + $0x4] sm:$0xf]
      %v4207 = vld [vmem:[%s4204 + $0x8] sm:$0xf]
      %v4208 = vld [vmem:[%s4204 + $0xc] sm:$0xf]
      %v4209 = vpack.c.bf16 %v4187, %v4185
      %v4210 = vpack.c.bf16 %v4192, %v4190
      %v4211 = vpack.c.bf16 %v4197, %v4195
      %v4212 = vpack.c.bf16 %v4202, %v4200
      %v4217 = vunpack.c.l.b16 %v4205
      %v4218 = vunpack.c.l.b16 %v4206
      %v4219 = vunpack.c.l.b16 %v4207
      %v4220 = vunpack.c.l.b16 %v4208
      %v4221 = vpack.c.b16 %v4218, %v4217
      %v4222 = vpack.c.b16 %v4220, %v4219
      %v4224 = vsel %vm2347, %v4221, 0
      %v4227 = vsel %vm2347, %v4222, 0
      %4229 = vmatpush.bf16.msra.mxu0 0
      %4230 = vmatpush.bf16.msra.mxu0 0
      %4231 = vmatpush.bf16.msra.mxu0 0
      %4232 = vmatpush.bf16.msra.mxu0 0
      %4233 = vmatpush.bf16.msra.mxu0 %v4212
      %4234 = vmatpush.bf16.msra.mxu0 %v4211
      %4235 = vmatpush.bf16.msra.mxu0 %v4210
      %4236 = vmatpush.bf16.msra.mxu0 %v4209
      %4237 = vmatmul.bf16.gmra.mxu0 %v4224
      %v4238 = vpop.f32.mrf.mxu0
      %v4239 = vadd.f32 0.0, %v4238
      %v4240 = vpop.f32.mrf.mxu0
      %v4241 = vadd.f32 0.0, %v4240
      %4242 = vmatmul.bf16.gmra.mxu0 %v4227
      %v4243 = vpop.f32.mrf.mxu0
      %v4244 = vadd.f32 0.0, %v4243
      %v4245 = vpop.f32.mrf.mxu0
      %v4246 = vadd.f32 0.0, %v4245
      %4247 = vdwg.mxu0
      %v4248 = vadd.f32 %v4162, %v4239
      %v4249 = vadd.f32 %v4163, %v4241
      %v4250 = vadd.f32 %v4164, %v4244
      %v4251 = vadd.f32 %v4165, %v4246
      %s4252 = scalar_lea.vmem %s9, 64
      %v4253 = vld [vmem:[%s4252] sm:$0xf]
      %v4254 = vld [vmem:[%s4252 + $0x4] sm:$0xf]
      %v4257 = vunpack.c.l.b16 %v4253
      %v4258 = vunpack.c.l.b16 %v4254
      %v4259 = vpack.c.b16 %v4258, %v4257
      %4261 = vmatpush.bf16.msra.mxu0 0
      %4262 = vmatpush.bf16.msra.mxu0 0
      %4263 = vmatpush.bf16.msra.mxu0 0
      %4264 = vmatpush.bf16.msra.mxu0 0
      %4265 = vmatpush.bf16.msra.mxu0 0
      %4266 = vmatpush.bf16.msra.mxu0 0
      %4267 = vmatpush.bf16.msra.mxu0 0
      %4268 = vmatpush.bf16.msra.mxu0 %v4259
      %4269 = vmatmul.bf16.gmra.mxu0 %v3571
      %v4270 = vpop.f32.mrf.mxu0
      %v4271 = vadd.f32 0.0, %v4270
      %v4272 = vpop.f32.mrf.mxu0
      %v4273 = vadd.f32 0.0, %v4272
      %4274 = vmatmul.bf16.gmra.mxu0 %v3574
      %v4275 = vpop.f32.mrf.mxu0
      %v4276 = vadd.f32 0.0, %v4275
      %v4277 = vpop.f32.mrf.mxu0
      %v4278 = vadd.f32 0.0, %v4277
      %4279 = vmatmul.bf16.gmra.mxu0 %v3577
      %v4280 = vpop.f32.mrf.mxu0
      %v4281 = vadd.f32 0.0, %v4280
      %v4282 = vpop.f32.mrf.mxu0
      %v4283 = vadd.f32 0.0, %v4282
      %4284 = vmatmul.bf16.gmra.mxu0 %v3580
      %v4285 = vpop.f32.mrf.mxu0
      %v4286 = vadd.f32 0.0, %v4285
      %v4287 = vpop.f32.mrf.mxu0
      %v4288 = vadd.f32 0.0, %v4287
      %4289 = vdwg.mxu0
      %s4290 = scalar_lea.vmem %s7, 128
      %v4291 = vld [vmem:[%s4290] sm:$0xf]
      %v4292 = vld [vmem:[%s4290 + $0x4] sm:$0xf]
      %v4293 = vld [vmem:[%s4290 + $0x8] sm:$0xf]
      %v4294 = vld [vmem:[%s4290 + $0xc] sm:$0xf]
      %v4295 = vpack.c.bf16 %v4273, %v4271
      %v4296 = vpack.c.bf16 %v4278, %v4276
      %v4297 = vpack.c.bf16 %v4283, %v4281
      %v4298 = vpack.c.bf16 %v4288, %v4286
      %v4303 = vunpack.c.l.b16 %v4291
      %v4304 = vunpack.c.l.b16 %v4292
      %v4305 = vunpack.c.l.b16 %v4293
      %v4306 = vunpack.c.l.b16 %v4294
      %v4307 = vpack.c.b16 %v4304, %v4303
      %v4308 = vpack.c.b16 %v4306, %v4305
      %v4310 = vsel %vm2347, %v4307, 0
      %v4313 = vsel %vm2347, %v4308, 0
      %4315 = vmatpush.bf16.msra.mxu0 0
      %4316 = vmatpush.bf16.msra.mxu0 0
      %4317 = vmatpush.bf16.msra.mxu0 0
      %4318 = vmatpush.bf16.msra.mxu0 0
      %4319 = vmatpush.bf16.msra.mxu0 %v4298
      %4320 = vmatpush.bf16.msra.mxu0 %v4297
      %4321 = vmatpush.bf16.msra.mxu0 %v4296
      %4322 = vmatpush.bf16.msra.mxu0 %v4295
      %4323 = vmatmul.bf16.gmra.mxu0 %v4310
      %v4324 = vpop.f32.mrf.mxu0
      %v4325 = vadd.f32 0.0, %v4324
      %v4326 = vpop.f32.mrf.mxu0
      %v4327 = vadd.f32 0.0, %v4326
      %4328 = vmatmul.bf16.gmra.mxu0 %v4313
      %v4329 = vpop.f32.mrf.mxu0
      %v4330 = vadd.f32 0.0, %v4329
      %v4331 = vpop.f32.mrf.mxu0
      %v4332 = vadd.f32 0.0, %v4331
      %4333 = vdwg.mxu0
      %v4334 = vadd.f32 %v4248, %v4325
      %v4335 = vadd.f32 %v4249, %v4327
      %v4336 = vadd.f32 %v4250, %v4330
      %v4337 = vadd.f32 %v4251, %v4332
      %v4338 = vld [vmem:[%s8] sm:$0xff]
      %v4339 = vld [vmem:[%s8 + $0x8] sm:$0xff]
      %v4340 = vld [vmem:[%s8 + $0x10] sm:$0xff]
      %v4341 = vld [vmem:[%s8 + $0x18] sm:$0xff]
      %4343 = vset.pattern.permute.xlu0 0
      %4344 = vperm.xlu0 %4343, %v4338
      %v4345 = vpop.permute.xlu0 %4344
      %4348 = vset.pattern.permute.xlu0 0
      %4349 = vperm.xlu0 %4348, %v4339
      %v4350 = vpop.permute.xlu0 %4349
      %4353 = vset.pattern.permute.xlu0 0
      %4354 = vperm.xlu0 %4353, %v4340
      %v4355 = vpop.permute.xlu0 %4354
      %4358 = vset.pattern.permute.xlu0 0
      %4359 = vperm.xlu0 %4358, %v4341
      %v4360 = vpop.permute.xlu0 %4359
      %v4362 = vadd.f32 %v4334, %v4345
      %v4363 = vadd.f32 %v4335, %v4350
      %v4364 = vadd.f32 %v4336, %v4355
      %v4365 = vadd.f32 %v4337, %v4360
      %v4366 = vmax.f32 %v4362, 0.0
      %v4367 = vmax.f32 %v4363, 0.0
      %v4368 = vmax.f32 %v4364, 0.0
      %v4369 = vmax.f32 %v4365, 0.0
      %v4370 = vmax.f32 %v2297, 0.0
      %v4371 = vmax.f32 %v2298, 0.0
      %v4372 = vmax.f32 %v2299, 0.0
      %v4373 = vmax.f32 %v2300, 0.0
      %v4374 = vpack.c.bf16 %v4367, %v4366
      %v4375 = vpack.c.bf16 %v4369, %v4368
      %v4376 = vpack.c.bf16 %v4371, %v4370
      %v4377 = vpack.c.bf16 %v4373, %v4372
      %v4378 = vld [vmem:[%s12] sm:$0xff]
      %v4379 = vld [vmem:[%s12 + $0x8] sm:$0xff]
      %v4380 = vld [vmem:[%s12 + $0x10] sm:$0xff]
      %v4381 = vld [vmem:[%s12 + $0x18] sm:$0xff]
      %v4382 = vld [vmem:[%s12 + $0x20] sm:$0xff]
      %v4383 = vld [vmem:[%s12 + $0x28] sm:$0xff]
      %v4384 = vld [vmem:[%s12 + $0x30] sm:$0xff]
      %v4385 = vld [vmem:[%s12 + $0x38] sm:$0xff]
      %v4394 = vunpack.c.l.b16 %v4378
      %v4395 = vunpack.c.h.b16 %v4378
      %v4396 = vunpack.c.l.b16 %v4379
      %v4397 = vunpack.c.h.b16 %v4379
      %v4398 = vunpack.c.l.b16 %v4380
      %v4399 = vunpack.c.h.b16 %v4380
      %v4400 = vunpack.c.l.b16 %v4381
      %v4401 = vunpack.c.h.b16 %v4381
      %v4402 = vunpack.c.l.b16 %v4382
      %v4403 = vunpack.c.h.b16 %v4382
      %v4404 = vunpack.c.l.b16 %v4383
      %v4405 = vunpack.c.h.b16 %v4383
      %v4406 = vunpack.c.l.b16 %v4384
      %v4407 = vunpack.c.h.b16 %v4384
      %v4408 = vunpack.c.l.b16 %v4385
      %v4409 = vunpack.c.h.b16 %v4385
      %v4410 = vpack.c.b16 %v4396, %v4394
      %v4411 = vpack.c.b16 %v4397, %v4395
      %v4412 = vpack.c.b16 %v4400, %v4398
      %v4413 = vpack.c.b16 %v4401, %v4399
      %v4414 = vpack.c.b16 %v4404, %v4402
      %v4415 = vpack.c.b16 %v4405, %v4403
      %v4416 = vpack.c.b16 %v4408, %v4406
      %v4417 = vpack.c.b16 %v4409, %v4407
      %v4427 = vsel %vm2347, %v4374, 0
      %v4430 = vsel %vm2347, %v4375, 0
      %v4433 = vsel %vm2347, %v4376, 0
      %v4436 = vsel %vm2347, %v4377, 0
      %4438 = vmatpush.bf16.msra.mxu0 0
      %4439 = vmatpush.bf16.msra.mxu0 0
      %4440 = vmatpush.bf16.msra.mxu0 0
      %4441 = vmatpush.bf16.msra.mxu0 0
      %4442 = vmatpush.bf16.msra.mxu0 %v4416
      %4443 = vmatpush.bf16.msra.mxu0 %v4414
      %4444 = vmatpush.bf16.msra.mxu0 %v4412
      %4445 = vmatpush.bf16.msra.mxu0 %v4410
      %4446 = vmatmul.bf16.gmra.mxu0 %v4427
      %v4447 = vpop.f32.mrf.mxu0
      %v4448 = vadd.f32 0.0, %v4447
      %v4449 = vpop.f32.mrf.mxu0
      %v4450 = vadd.f32 0.0, %v4449
      %4451 = vmatmul.bf16.gmra.mxu0 %v4430
      %v4452 = vpop.f32.mrf.mxu0
      %v4453 = vadd.f32 0.0, %v4452
      %v4454 = vpop.f32.mrf.mxu0
      %v4455 = vadd.f32 0.0, %v4454
      %4456 = vmatmul.bf16.gmra.mxu0 %v4433
      %v4457 = vpop.f32.mrf.mxu0
      %v4458 = vadd.f32 0.0, %v4457
      %v4459 = vpop.f32.mrf.mxu0
      %v4460 = vadd.f32 0.0, %v4459
      %4461 = vmatmul.bf16.gmra.mxu0 %v4436
      %v4462 = vpop.f32.mrf.mxu0
      %v4463 = vadd.f32 0.0, %v4462
      %v4464 = vpop.f32.mrf.mxu0
      %v4465 = vadd.f32 0.0, %v4464
      %4466 = vdwg.mxu0
      %4467 = vmatpush.bf16.msra.mxu0 0
      %4468 = vmatpush.bf16.msra.mxu0 0
      %4469 = vmatpush.bf16.msra.mxu0 0
      %4470 = vmatpush.bf16.msra.mxu0 0
      %4471 = vmatpush.bf16.msra.mxu0 %v4417
      %4472 = vmatpush.bf16.msra.mxu0 %v4415
      %4473 = vmatpush.bf16.msra.mxu0 %v4413
      %4474 = vmatpush.bf16.msra.mxu0 %v4411
      %4475 = vmatmul.bf16.gmra.mxu0 %v4427
      %v4476 = vpop.f32.mrf.mxu0
      %v4477 = vadd.f32 0.0, %v4476
      %v4478 = vpop.f32.mrf.mxu0
      %v4479 = vadd.f32 0.0, %v4478
      %4480 = vmatmul.bf16.gmra.mxu0 %v4430
      %v4481 = vpop.f32.mrf.mxu0
      %v4482 = vadd.f32 0.0, %v4481
      %v4483 = vpop.f32.mrf.mxu0
      %v4484 = vadd.f32 0.0, %v4483
      %4485 = vmatmul.bf16.gmra.mxu0 %v4433
      %v4486 = vpop.f32.mrf.mxu0
      %v4487 = vadd.f32 0.0, %v4486
      %v4488 = vpop.f32.mrf.mxu0
      %v4489 = vadd.f32 0.0, %v4488
      %4490 = vmatmul.bf16.gmra.mxu0 %v4436
      %v4491 = vpop.f32.mrf.mxu0
      %v4492 = vadd.f32 0.0, %v4491
      %v4493 = vpop.f32.mrf.mxu0
      %v4494 = vadd.f32 0.0, %v4493
      %4495 = vdwg.mxu0
      %v4496 = vld [vmem:[%s10] sm:$0xf]
      %v4497 = vld [vmem:[%s10 + $0x4] sm:$0xf]
      %v4498 = vld [vmem:[%s10 + $0x8] sm:$0xf]
      %v4499 = vld [vmem:[%s10 + $0xc] sm:$0xf]
      %v4500 = vpack.c.bf16 %v4450, %v4448
      %v4501 = vpack.c.bf16 %v4479, %v4477
      %v4502 = vpack.c.bf16 %v4455, %v4453
      %v4503 = vpack.c.bf16 %v4484, %v4482
      %v4504 = vpack.c.bf16 %v4460, %v4458
      %v4505 = vpack.c.bf16 %v4489, %v4487
      %v4506 = vpack.c.bf16 %v4465, %v4463
      %v4507 = vpack.c.bf16 %v4494, %v4492
      %s4508 = scalar_lea.vmem %s12, 64
      %v4509 = vld [vmem:[%s4508] sm:$0xff]
      %v4510 = vld [vmem:[%s4508 + $0x8] sm:$0xff]
      %v4511 = vld [vmem:[%s4508 + $0x10] sm:$0xff]
      %v4512 = vld [vmem:[%s4508 + $0x18] sm:$0xff]
      %v4513 = vld [vmem:[%s4508 + $0x20] sm:$0xff]
      %v4514 = vld [vmem:[%s4508 + $0x28] sm:$0xff]
      %v4515 = vld [vmem:[%s4508 + $0x30] sm:$0xff]
      %v4516 = vld [vmem:[%s4508 + $0x38] sm:$0xff]
      %v4525 = vunpack.c.l.b16 %v4509
      %v4526 = vunpack.c.h.b16 %v4509
      %v4527 = vunpack.c.l.b16 %v4510
      %v4528 = vunpack.c.h.b16 %v4510
      %v4529 = vunpack.c.l.b16 %v4511
      %v4530 = vunpack.c.h.b16 %v4511
      %v4531 = vunpack.c.l.b16 %v4512
      %v4532 = vunpack.c.h.b16 %v4512
      %v4533 = vunpack.c.l.b16 %v4513
      %v4534 = vunpack.c.h.b16 %v4513
      %v4535 = vunpack.c.l.b16 %v4514
      %v4536 = vunpack.c.h.b16 %v4514
      %v4537 = vunpack.c.l.b16 %v4515
      %v4538 = vunpack.c.h.b16 %v4515
      %v4539 = vunpack.c.l.b16 %v4516
      %v4540 = vunpack.c.h.b16 %v4516
      %v4541 = vpack.c.b16 %v4527, %v4525
      %v4542 = vpack.c.b16 %v4528, %v4526
      %v4543 = vpack.c.b16 %v4531, %v4529
      %v4544 = vpack.c.b16 %v4532, %v4530
      %v4545 = vpack.c.b16 %v4535, %v4533
      %v4546 = vpack.c.b16 %v4536, %v4534
      %v4547 = vpack.c.b16 %v4539, %v4537
      %v4548 = vpack.c.b16 %v4540, %v4538
      %4557 = vmatpush.bf16.msra.mxu0 0
      %4558 = vmatpush.bf16.msra.mxu0 0
      %4559 = vmatpush.bf16.msra.mxu0 0
      %4560 = vmatpush.bf16.msra.mxu0 0
      %4561 = vmatpush.bf16.msra.mxu0 %v4547
      %4562 = vmatpush.bf16.msra.mxu0 %v4545
      %4563 = vmatpush.bf16.msra.mxu0 %v4543
      %4564 = vmatpush.bf16.msra.mxu0 %v4541
      %4565 = vmatmul.bf16.gmra.mxu0 %v4427
      %v4566 = vpop.f32.mrf.mxu0
      %v4567 = vadd.f32 0.0, %v4566
      %v4568 = vpop.f32.mrf.mxu0
      %v4569 = vadd.f32 0.0, %v4568
      %4570 = vmatmul.bf16.gmra.mxu0 %v4430
      %v4571 = vpop.f32.mrf.mxu0
      %v4572 = vadd.f32 0.0, %v4571
      %v4573 = vpop.f32.mrf.mxu0
      %v4574 = vadd.f32 0.0, %v4573
      %4575 = vmatmul.bf16.gmra.mxu0 %v4433
      %v4576 = vpop.f32.mrf.mxu0
      %v4577 = vadd.f32 0.0, %v4576
      %v4578 = vpop.f32.mrf.mxu0
      %v4579 = vadd.f32 0.0, %v4578
      %4580 = vmatmul.bf16.gmra.mxu0 %v4436
      %v4581 = vpop.f32.mrf.mxu0
      %v4582 = vadd.f32 0.0, %v4581
      %v4583 = vpop.f32.mrf.mxu0
      %v4584 = vadd.f32 0.0, %v4583
      %4585 = vdwg.mxu0
      %4586 = vmatpush.bf16.msra.mxu0 0
      %4587 = vmatpush.bf16.msra.mxu0 0
      %4588 = vmatpush.bf16.msra.mxu0 0
      %4589 = vmatpush.bf16.msra.mxu0 0
      %4590 = vmatpush.bf16.msra.mxu0 %v4548
      %4591 = vmatpush.bf16.msra.mxu0 %v4546
      %4592 = vmatpush.bf16.msra.mxu0 %v4544
      %4593 = vmatpush.bf16.msra.mxu0 %v4542
      %4594 = vmatmul.bf16.gmra.mxu0 %v4427
      %v4595 = vpop.f32.mrf.mxu0
      %v4596 = vadd.f32 0.0, %v4595
      %v4597 = vpop.f32.mrf.mxu0
      %v4598 = vadd.f32 0.0, %v4597
      %4599 = vmatmul.bf16.gmra.mxu0 %v4430
      %v4600 = vpop.f32.mrf.mxu0
      %v4601 = vadd.f32 0.0, %v4600
      %v4602 = vpop.f32.mrf.mxu0
      %v4603 = vadd.f32 0.0, %v4602
      %4604 = vmatmul.bf16.gmra.mxu0 %v4433
      %v4605 = vpop.f32.mrf.mxu0
      %v4606 = vadd.f32 0.0, %v4605
      %v4607 = vpop.f32.mrf.mxu0
      %v4608 = vadd.f32 0.0, %v4607
      %4609 = vmatmul.bf16.gmra.mxu0 %v4436
      %v4610 = vpop.f32.mrf.mxu0
      %v4611 = vadd.f32 0.0, %v4610
      %v4612 = vpop.f32.mrf.mxu0
      %v4613 = vadd.f32 0.0, %v4612
      %4614 = vdwg.mxu0
      %s4615 = scalar_lea.vmem %s10, 16
      %v4616 = vld [vmem:[%s4615] sm:$0xf]
      %v4617 = vld [vmem:[%s4615 + $0x4] sm:$0xf]
      %v4618 = vld [vmem:[%s4615 + $0x8] sm:$0xf]
      %v4619 = vld [vmem:[%s4615 + $0xc] sm:$0xf]
      %v4620 = vpack.c.bf16 %v4569, %v4567
      %v4621 = vpack.c.bf16 %v4598, %v4596
      %v4622 = vpack.c.bf16 %v4574, %v4572
      %v4623 = vpack.c.bf16 %v4603, %v4601
      %v4624 = vpack.c.bf16 %v4579, %v4577
      %v4625 = vpack.c.bf16 %v4608, %v4606
      %v4626 = vpack.c.bf16 %v4584, %v4582
      %v4627 = vpack.c.bf16 %v4613, %v4611
      %v4632 = vunpack.c.l.b16 %v4616
      %v4633 = vunpack.c.l.b16 %v4617
      %v4634 = vunpack.c.l.b16 %v4618
      %v4635 = vunpack.c.l.b16 %v4619
      %v4636 = vpack.c.b16 %v4633, %v4632
      %v4637 = vpack.c.b16 %v4635, %v4634
      %v4639 = vsel %vm2347, %v4636, 0
      %v4642 = vsel %vm2347, %v4637, 0
      %4644 = vmatpush.bf16.msra.mxu0 0
      %4645 = vmatpush.bf16.msra.mxu0 0
      %4646 = vmatpush.bf16.msra.mxu0 0
      %4647 = vmatpush.bf16.msra.mxu0 0
      %4648 = vmatpush.bf16.msra.mxu0 %v4626
      %4649 = vmatpush.bf16.msra.mxu0 %v4624
      %4650 = vmatpush.bf16.msra.mxu0 %v4622
      %4651 = vmatpush.bf16.msra.mxu0 %v4620
      %4652 = vmatmul.bf16.gmra.mxu0 %v4639
      %v4653 = vpop.f32.mrf.mxu0
      %v4654 = vadd.f32 0.0, %v4653
      %v4655 = vpop.f32.mrf.mxu0
      %v4656 = vadd.f32 0.0, %v4655
      %4657 = vmatmul.bf16.gmra.mxu0 %v4642
      %v4658 = vpop.f32.mrf.mxu0
      %v4659 = vadd.f32 0.0, %v4658
      %v4660 = vpop.f32.mrf.mxu0
      %v4661 = vadd.f32 0.0, %v4660
      %4662 = vdwg.mxu0
      %4663 = vmatpush.bf16.msra.mxu0 0
      %4664 = vmatpush.bf16.msra.mxu0 0
      %4665 = vmatpush.bf16.msra.mxu0 0
      %4666 = vmatpush.bf16.msra.mxu0 0
      %4667 = vmatpush.bf16.msra.mxu0 %v4627
      %4668 = vmatpush.bf16.msra.mxu0 %v4625
      %4669 = vmatpush.bf16.msra.mxu0 %v4623
      %4670 = vmatpush.bf16.msra.mxu0 %v4621
      %4671 = vmatmul.bf16.gmra.mxu0 %v4639
      %v4672 = vpop.f32.mrf.mxu0
      %v4673 = vadd.f32 0.0, %v4672
      %v4674 = vpop.f32.mrf.mxu0
      %v4675 = vadd.f32 0.0, %v4674
      %4676 = vmatmul.bf16.gmra.mxu0 %v4642
      %v4677 = vpop.f32.mrf.mxu0
      %v4678 = vadd.f32 0.0, %v4677
      %v4679 = vpop.f32.mrf.mxu0
      %v4680 = vadd.f32 0.0, %v4679
      %4681 = vdwg.mxu0
      %v4686 = vunpack.c.l.b16 %v4496
      %v4687 = vunpack.c.l.b16 %v4497
      %v4688 = vunpack.c.l.b16 %v4498
      %v4689 = vunpack.c.l.b16 %v4499
      %v4690 = vpack.c.b16 %v4687, %v4686
      %v4691 = vpack.c.b16 %v4689, %v4688
      %v4693 = vsel %vm2347, %v4690, 0
      %v4696 = vsel %vm2347, %v4691, 0
      %4698 = vmatpush.bf16.msra.mxu0 0
      %4699 = vmatpush.bf16.msra.mxu0 0
      %4700 = vmatpush.bf16.msra.mxu0 0
      %4701 = vmatpush.bf16.msra.mxu0 0
      %4702 = vmatpush.bf16.msra.mxu0 %v4506
      %4703 = vmatpush.bf16.msra.mxu0 %v4504
      %4704 = vmatpush.bf16.msra.mxu0 %v4502
      %4705 = vmatpush.bf16.msra.mxu0 %v4500
      %4706 = vmatmul.bf16.gmra.mxu0 %v4693
      %v4707 = vpop.f32.mrf.mxu0
      %v4708 = vadd.f32 %v4654, %v4707
      %v4709 = vpop.f32.mrf.mxu0
      %v4710 = vadd.f32 %v4656, %v4709
      %4711 = vmatmul.bf16.gmra.mxu0 %v4696
      %v4712 = vpop.f32.mrf.mxu0
      %v4713 = vadd.f32 %v4659, %v4712
      %v4714 = vpop.f32.mrf.mxu0
      %v4715 = vadd.f32 %v4661, %v4714
      %4716 = vdwg.mxu0
      %4717 = vmatpush.bf16.msra.mxu0 0
      %4718 = vmatpush.bf16.msra.mxu0 0
      %4719 = vmatpush.bf16.msra.mxu0 0
      %4720 = vmatpush.bf16.msra.mxu0 0
      %4721 = vmatpush.bf16.msra.mxu0 %v4507
      %4722 = vmatpush.bf16.msra.mxu0 %v4505
      %4723 = vmatpush.bf16.msra.mxu0 %v4503
      %4724 = vmatpush.bf16.msra.mxu0 %v4501
      %4725 = vmatmul.bf16.gmra.mxu0 %v4693
      %v4726 = vpop.f32.mrf.mxu0
      %v4727 = vadd.f32 %v4673, %v4726
      %v4728 = vpop.f32.mrf.mxu0
      %v4729 = vadd.f32 %v4675, %v4728
      %4730 = vmatmul.bf16.gmra.mxu0 %v4696
      %v4731 = vpop.f32.mrf.mxu0
      %v4732 = vadd.f32 %v4678, %v4731
      %v4733 = vpop.f32.mrf.mxu0
      %v4734 = vadd.f32 %v4680, %v4733
      %4735 = vdwg.mxu0
      %s4736 = scalar_lea.vmem %s12, 128
      %v4737 = vld [vmem:[%s4736] sm:$0xff]
      %v4738 = vld [vmem:[%s4736 + $0x8] sm:$0xff]
      %v4739 = vld [vmem:[%s4736 + $0x10] sm:$0xff]
      %v4740 = vld [vmem:[%s4736 + $0x18] sm:$0xff]
      %v4741 = vld [vmem:[%s4736 + $0x20] sm:$0xff]
      %v4742 = vld [vmem:[%s4736 + $0x28] sm:$0xff]
      %v4743 = vld [vmem:[%s4736 + $0x30] sm:$0xff]
      %v4744 = vld [vmem:[%s4736 + $0x38] sm:$0xff]
      %v4753 = vunpack.c.l.b16 %v4737
      %v4754 = vunpack.c.h.b16 %v4737
      %v4755 = vunpack.c.l.b16 %v4738
      %v4756 = vunpack.c.h.b16 %v4738
      %v4757 = vunpack.c.l.b16 %v4739
      %v4758 = vunpack.c.h.b16 %v4739
      %v4759 = vunpack.c.l.b16 %v4740
      %v4760 = vunpack.c.h.b16 %v4740
      %v4761 = vunpack.c.l.b16 %v4741
      %v4762 = vunpack.c.h.b16 %v4741
      %v4763 = vunpack.c.l.b16 %v4742
      %v4764 = vunpack.c.h.b16 %v4742
      %v4765 = vunpack.c.l.b16 %v4743
      %v4766 = vunpack.c.h.b16 %v4743
      %v4767 = vunpack.c.l.b16 %v4744
      %v4768 = vunpack.c.h.b16 %v4744
      %v4769 = vpack.c.b16 %v4755, %v4753
      %v4770 = vpack.c.b16 %v4756, %v4754
      %v4771 = vpack.c.b16 %v4759, %v4757
      %v4772 = vpack.c.b16 %v4760, %v4758
      %v4773 = vpack.c.b16 %v4763, %v4761
      %v4774 = vpack.c.b16 %v4764, %v4762
      %v4775 = vpack.c.b16 %v4767, %v4765
      %v4776 = vpack.c.b16 %v4768, %v4766
      %4785 = vmatpush.bf16.msra.mxu0 0
      %4786 = vmatpush.bf16.msra.mxu0 0
      %4787 = vmatpush.bf16.msra.mxu0 0
      %4788 = vmatpush.bf16.msra.mxu0 0
      %4789 = vmatpush.bf16.msra.mxu0 %v4775
      %4790 = vmatpush.bf16.msra.mxu0 %v4773
      %4791 = vmatpush.bf16.msra.mxu0 %v4771
      %4792 = vmatpush.bf16.msra.mxu0 %v4769
      %4793 = vmatmul.bf16.gmra.mxu0 %v4427
      %v4794 = vpop.f32.mrf.mxu0
      %v4795 = vadd.f32 0.0, %v4794
      %v4796 = vpop.f32.mrf.mxu0
      %v4797 = vadd.f32 0.0, %v4796
      %4798 = vmatmul.bf16.gmra.mxu0 %v4430
      %v4799 = vpop.f32.mrf.mxu0
      %v4800 = vadd.f32 0.0, %v4799
      %v4801 = vpop.f32.mrf.mxu0
      %v4802 = vadd.f32 0.0, %v4801
      %4803 = vmatmul.bf16.gmra.mxu0 %v4433
      %v4804 = vpop.f32.mrf.mxu0
      %v4805 = vadd.f32 0.0, %v4804
      %v4806 = vpop.f32.mrf.mxu0
      %v4807 = vadd.f32 0.0, %v4806
      %4808 = vmatmul.bf16.gmra.mxu0 %v4436
      %v4809 = vpop.f32.mrf.mxu0
      %v4810 = vadd.f32 0.0, %v4809
      %v4811 = vpop.f32.mrf.mxu0
      %v4812 = vadd.f32 0.0, %v4811
      %4813 = vdwg.mxu0
      %4814 = vmatpush.bf16.msra.mxu0 0
      %4815 = vmatpush.bf16.msra.mxu0 0
      %4816 = vmatpush.bf16.msra.mxu0 0
      %4817 = vmatpush.bf16.msra.mxu0 0
      %4818 = vmatpush.bf16.msra.mxu0 %v4776
      %4819 = vmatpush.bf16.msra.mxu0 %v4774
      %4820 = vmatpush.bf16.msra.mxu0 %v4772
      %4821 = vmatpush.bf16.msra.mxu0 %v4770
      %4822 = vmatmul.bf16.gmra.mxu0 %v4427
      %v4823 = vpop.f32.mrf.mxu0
      %v4824 = vadd.f32 0.0, %v4823
      %v4825 = vpop.f32.mrf.mxu0
      %v4826 = vadd.f32 0.0, %v4825
      %4827 = vmatmul.bf16.gmra.mxu0 %v4430
      %v4828 = vpop.f32.mrf.mxu0
      %v4829 = vadd.f32 0.0, %v4828
      %v4830 = vpop.f32.mrf.mxu0
      %v4831 = vadd.f32 0.0, %v4830
      %4832 = vmatmul.bf16.gmra.mxu0 %v4433
      %v4833 = vpop.f32.mrf.mxu0
      %v4834 = vadd.f32 0.0, %v4833
      %v4835 = vpop.f32.mrf.mxu0
      %v4836 = vadd.f32 0.0, %v4835
      %4837 = vmatmul.bf16.gmra.mxu0 %v4436
      %v4838 = vpop.f32.mrf.mxu0
      %v4839 = vadd.f32 0.0, %v4838
      %v4840 = vpop.f32.mrf.mxu0
      %v4841 = vadd.f32 0.0, %v4840
      %4842 = vdwg.mxu0
      %s4843 = scalar_lea.vmem %s10, 32
      %v4844 = vld [vmem:[%s4843] sm:$0xf]
      %v4845 = vld [vmem:[%s4843 + $0x4] sm:$0xf]
      %v4846 = vld [vmem:[%s4843 + $0x8] sm:$0xf]
      %v4847 = vld [vmem:[%s4843 + $0xc] sm:$0xf]
      %v4848 = vpack.c.bf16 %v4797, %v4795
      %v4849 = vpack.c.bf16 %v4826, %v4824
      %v4850 = vpack.c.bf16 %v4802, %v4800
      %v4851 = vpack.c.bf16 %v4831, %v4829
      %v4852 = vpack.c.bf16 %v4807, %v4805
      %v4853 = vpack.c.bf16 %v4836, %v4834
      %v4854 = vpack.c.bf16 %v4812, %v4810
      %v4855 = vpack.c.bf16 %v4841, %v4839
      %v4860 = vunpack.c.l.b16 %v4844
      %v4861 = vunpack.c.l.b16 %v4845
      %v4862 = vunpack.c.l.b16 %v4846
      %v4863 = vunpack.c.l.b16 %v4847
      %v4864 = vpack.c.b16 %v4861, %v4860
      %v4865 = vpack.c.b16 %v4863, %v4862
      %v4867 = vsel %vm2347, %v4864, 0
      %v4870 = vsel %vm2347, %v4865, 0
      %4872 = vmatpush.bf16.msra.mxu0 0
      %4873 = vmatpush.bf16.msra.mxu0 0
      %4874 = vmatpush.bf16.msra.mxu0 0
      %4875 = vmatpush.bf16.msra.mxu0 0
      %4876 = vmatpush.bf16.msra.mxu0 %v4854
      %4877 = vmatpush.bf16.msra.mxu0 %v4852
      %4878 = vmatpush.bf16.msra.mxu0 %v4850
      %4879 = vmatpush.bf16.msra.mxu0 %v4848
      %4880 = vmatmul.bf16.gmra.mxu0 %v4867
      %v4881 = vpop.f32.mrf.mxu0
      %v4882 = vadd.f32 0.0, %v4881
      %v4883 = vpop.f32.mrf.mxu0
      %v4884 = vadd.f32 0.0, %v4883
      %4885 = vmatmul.bf16.gmra.mxu0 %v4870
      %v4886 = vpop.f32.mrf.mxu0
      %v4887 = vadd.f32 0.0, %v4886
      %v4888 = vpop.f32.mrf.mxu0
      %v4889 = vadd.f32 0.0, %v4888
      %4890 = vdwg.mxu0
      %4891 = vmatpush.bf16.msra.mxu0 0
      %4892 = vmatpush.bf16.msra.mxu0 0
      %4893 = vmatpush.bf16.msra.mxu0 0
      %4894 = vmatpush.bf16.msra.mxu0 0
      %4895 = vmatpush.bf16.msra.mxu0 %v4855
      %4896 = vmatpush.bf16.msra.mxu0 %v4853
      %4897 = vmatpush.bf16.msra.mxu0 %v4851
      %4898 = vmatpush.bf16.msra.mxu0 %v4849
      %4899 = vmatmul.bf16.gmra.mxu0 %v4867
      %v4900 = vpop.f32.mrf.mxu0
      %v4901 = vadd.f32 0.0, %v4900
      %v4902 = vpop.f32.mrf.mxu0
      %v4903 = vadd.f32 0.0, %v4902
      %4904 = vmatmul.bf16.gmra.mxu0 %v4870
      %v4905 = vpop.f32.mrf.mxu0
      %v4906 = vadd.f32 0.0, %v4905
      %v4907 = vpop.f32.mrf.mxu0
      %v4908 = vadd.f32 0.0, %v4907
      %4909 = vdwg.mxu0
      %v4910 = vadd.f32 %v4708, %v4882
      %v4911 = vadd.f32 %v4727, %v4901
      %v4912 = vadd.f32 %v4710, %v4884
      %v4913 = vadd.f32 %v4729, %v4903
      %v4914 = vadd.f32 %v4713, %v4887
      %v4915 = vadd.f32 %v4732, %v4906
      %v4916 = vadd.f32 %v4715, %v4889
      %v4917 = vadd.f32 %v4734, %v4908
      %s4918 = scalar_lea.vmem %s12, 192
      %v4919 = vld [vmem:[%s4918] sm:$0xff]
      %v4920 = vld [vmem:[%s4918 + $0x8] sm:$0xff]
      %v4921 = vld [vmem:[%s4918 + $0x10] sm:$0xff]
      %v4922 = vld [vmem:[%s4918 + $0x18] sm:$0xff]
      %v4923 = vld [vmem:[%s4918 + $0x20] sm:$0xff]
      %v4924 = vld [vmem:[%s4918 + $0x28] sm:$0xff]
      %v4925 = vld [vmem:[%s4918 + $0x30] sm:$0xff]
      %v4926 = vld [vmem:[%s4918 + $0x38] sm:$0xff]
      %v4935 = vunpack.c.l.b16 %v4919
      %v4936 = vunpack.c.h.b16 %v4919
      %v4937 = vunpack.c.l.b16 %v4920
      %v4938 = vunpack.c.h.b16 %v4920
      %v4939 = vunpack.c.l.b16 %v4921
      %v4940 = vunpack.c.h.b16 %v4921
      %v4941 = vunpack.c.l.b16 %v4922
      %v4942 = vunpack.c.h.b16 %v4922
      %v4943 = vunpack.c.l.b16 %v4923
      %v4944 = vunpack.c.h.b16 %v4923
      %v4945 = vunpack.c.l.b16 %v4924
      %v4946 = vunpack.c.h.b16 %v4924
      %v4947 = vunpack.c.l.b16 %v4925
      %v4948 = vunpack.c.h.b16 %v4925
      %v4949 = vunpack.c.l.b16 %v4926
      %v4950 = vunpack.c.h.b16 %v4926
      %v4951 = vpack.c.b16 %v4937, %v4935
      %v4952 = vpack.c.b16 %v4938, %v4936
      %v4953 = vpack.c.b16 %v4941, %v4939
      %v4954 = vpack.c.b16 %v4942, %v4940
      %v4955 = vpack.c.b16 %v4945, %v4943
      %v4956 = vpack.c.b16 %v4946, %v4944
      %v4957 = vpack.c.b16 %v4949, %v4947
      %v4958 = vpack.c.b16 %v4950, %v4948
      %4967 = vmatpush.bf16.msra.mxu0 0
      %4968 = vmatpush.bf16.msra.mxu0 0
      %4969 = vmatpush.bf16.msra.mxu0 0
      %4970 = vmatpush.bf16.msra.mxu0 0
      %4971 = vmatpush.bf16.msra.mxu0 %v4957
      %4972 = vmatpush.bf16.msra.mxu0 %v4955
      %4973 = vmatpush.bf16.msra.mxu0 %v4953
      %4974 = vmatpush.bf16.msra.mxu0 %v4951
      %4975 = vmatmul.bf16.gmra.mxu0 %v4427
      %v4976 = vpop.f32.mrf.mxu0
      %v4977 = vadd.f32 0.0, %v4976
      %v4978 = vpop.f32.mrf.mxu0
      %v4979 = vadd.f32 0.0, %v4978
      %4980 = vmatmul.bf16.gmra.mxu0 %v4430
      %v4981 = vpop.f32.mrf.mxu0
      %v4982 = vadd.f32 0.0, %v4981
      %v4983 = vpop.f32.mrf.mxu0
      %v4984 = vadd.f32 0.0, %v4983
      %4985 = vmatmul.bf16.gmra.mxu0 %v4433
      %v4986 = vpop.f32.mrf.mxu0
      %v4987 = vadd.f32 0.0, %v4986
      %v4988 = vpop.f32.mrf.mxu0
      %v4989 = vadd.f32 0.0, %v4988
      %4990 = vmatmul.bf16.gmra.mxu0 %v4436
      %v4991 = vpop.f32.mrf.mxu0
      %v4992 = vadd.f32 0.0, %v4991
      %v4993 = vpop.f32.mrf.mxu0
      %v4994 = vadd.f32 0.0, %v4993
      %4995 = vdwg.mxu0
      %4996 = vmatpush.bf16.msra.mxu0 0
      %4997 = vmatpush.bf16.msra.mxu0 0
      %4998 = vmatpush.bf16.msra.mxu0 0
      %4999 = vmatpush.bf16.msra.mxu0 0
      %5000 = vmatpush.bf16.msra.mxu0 %v4958
      %5001 = vmatpush.bf16.msra.mxu0 %v4956
      %5002 = vmatpush.bf16.msra.mxu0 %v4954
      %5003 = vmatpush.bf16.msra.mxu0 %v4952
      %5004 = vmatmul.bf16.gmra.mxu0 %v4427
      %v5005 = vpop.f32.mrf.mxu0
      %v5006 = vadd.f32 0.0, %v5005
      %v5007 = vpop.f32.mrf.mxu0
      %v5008 = vadd.f32 0.0, %v5007
      %5009 = vmatmul.bf16.gmra.mxu0 %v4430
      %v5010 = vpop.f32.mrf.mxu0
      %v5011 = vadd.f32 0.0, %v5010
      %v5012 = vpop.f32.mrf.mxu0
      %v5013 = vadd.f32 0.0, %v5012
      %5014 = vmatmul.bf16.gmra.mxu0 %v4433
      %v5015 = vpop.f32.mrf.mxu0
      %v5016 = vadd.f32 0.0, %v5015
      %v5017 = vpop.f32.mrf.mxu0
      %v5018 = vadd.f32 0.0, %v5017
      %5019 = vmatmul.bf16.gmra.mxu0 %v4436
      %v5020 = vpop.f32.mrf.mxu0
      %v5021 = vadd.f32 0.0, %v5020
      %v5022 = vpop.f32.mrf.mxu0
      %v5023 = vadd.f32 0.0, %v5022
      %5024 = vdwg.mxu0
      %s5025 = scalar_lea.vmem %s10, 48
      %v5026 = vld [vmem:[%s5025] sm:$0xf]
      %v5027 = vld [vmem:[%s5025 + $0x4] sm:$0xf]
      %v5028 = vld [vmem:[%s5025 + $0x8] sm:$0xf]
      %v5029 = vld [vmem:[%s5025 + $0xc] sm:$0xf]
      %v5030 = vpack.c.bf16 %v4979, %v4977
      %v5031 = vpack.c.bf16 %v5008, %v5006
      %v5032 = vpack.c.bf16 %v4984, %v4982
      %v5033 = vpack.c.bf16 %v5013, %v5011
      %v5034 = vpack.c.bf16 %v4989, %v4987
      %v5035 = vpack.c.bf16 %v5018, %v5016
      %v5036 = vpack.c.bf16 %v4994, %v4992
      %v5037 = vpack.c.bf16 %v5023, %v5021
      %v5042 = vunpack.c.l.b16 %v5026
      %v5043 = vunpack.c.l.b16 %v5027
      %v5044 = vunpack.c.l.b16 %v5028
      %v5045 = vunpack.c.l.b16 %v5029
      %v5046 = vpack.c.b16 %v5043, %v5042
      %v5047 = vpack.c.b16 %v5045, %v5044
      %v5049 = vsel %vm2347, %v5046, 0
      %v5052 = vsel %vm2347, %v5047, 0
      %5054 = vmatpush.bf16.msra.mxu0 0
      %5055 = vmatpush.bf16.msra.mxu0 0
      %5056 = vmatpush.bf16.msra.mxu0 0
      %5057 = vmatpush.bf16.msra.mxu0 0
      %5058 = vmatpush.bf16.msra.mxu0 %v5036
      %5059 = vmatpush.bf16.msra.mxu0 %v5034
      %5060 = vmatpush.bf16.msra.mxu0 %v5032
      %5061 = vmatpush.bf16.msra.mxu0 %v5030
      %5062 = vmatmul.bf16.gmra.mxu0 %v5049
      %v5063 = vpop.f32.mrf.mxu0
      %v5064 = vadd.f32 0.0, %v5063
      %v5065 = vpop.f32.mrf.mxu0
      %v5066 = vadd.f32 0.0, %v5065
      %5067 = vmatmul.bf16.gmra.mxu0 %v5052
      %v5068 = vpop.f32.mrf.mxu0
      %v5069 = vadd.f32 0.0, %v5068
      %v5070 = vpop.f32.mrf.mxu0
      %v5071 = vadd.f32 0.0, %v5070
      %5072 = vdwg.mxu0
      %5073 = vmatpush.bf16.msra.mxu0 0
      %5074 = vmatpush.bf16.msra.mxu0 0
      %5075 = vmatpush.bf16.msra.mxu0 0
      %5076 = vmatpush.bf16.msra.mxu0 0
      %5077 = vmatpush.bf16.msra.mxu0 %v5037
      %5078 = vmatpush.bf16.msra.mxu0 %v5035
      %5079 = vmatpush.bf16.msra.mxu0 %v5033
      %5080 = vmatpush.bf16.msra.mxu0 %v5031
      %5081 = vmatmul.bf16.gmra.mxu0 %v5049
      %v5082 = vpop.f32.mrf.mxu0
      %v5083 = vadd.f32 0.0, %v5082
      %v5084 = vpop.f32.mrf.mxu0
      %v5085 = vadd.f32 0.0, %v5084
      %5086 = vmatmul.bf16.gmra.mxu0 %v5052
      %v5087 = vpop.f32.mrf.mxu0
      %v5088 = vadd.f32 0.0, %v5087
      %v5089 = vpop.f32.mrf.mxu0
      %v5090 = vadd.f32 0.0, %v5089
      %5091 = vdwg.mxu0
      %v5092 = vadd.f32 %v4910, %v5064
      %v5093 = vadd.f32 %v4911, %v5083
      %v5094 = vadd.f32 %v4912, %v5066
      %v5095 = vadd.f32 %v4913, %v5085
      %v5096 = vadd.f32 %v4914, %v5069
      %v5097 = vadd.f32 %v4915, %v5088
      %v5098 = vadd.f32 %v4916, %v5071
      %v5099 = vadd.f32 %v4917, %v5090
      %s5100 = scalar_lea.vmem %s12, 256
      %v5101 = vld [vmem:[%s5100] sm:$0xff]
      %v5102 = vld [vmem:[%s5100 + $0x8] sm:$0xff]
      %v5103 = vld [vmem:[%s5100 + $0x10] sm:$0xff]
      %v5104 = vld [vmem:[%s5100 + $0x18] sm:$0xff]
      %v5105 = vld [vmem:[%s5100 + $0x20] sm:$0xff]
      %v5106 = vld [vmem:[%s5100 + $0x28] sm:$0xff]
      %v5107 = vld [vmem:[%s5100 + $0x30] sm:$0xff]
      %v5108 = vld [vmem:[%s5100 + $0x38] sm:$0xff]
      %v5117 = vunpack.c.l.b16 %v5101
      %v5118 = vunpack.c.h.b16 %v5101
      %v5119 = vunpack.c.l.b16 %v5102
      %v5120 = vunpack.c.h.b16 %v5102
      %v5121 = vunpack.c.l.b16 %v5103
      %v5122 = vunpack.c.h.b16 %v5103
      %v5123 = vunpack.c.l.b16 %v5104
      %v5124 = vunpack.c.h.b16 %v5104
      %v5125 = vunpack.c.l.b16 %v5105
      %v5126 = vunpack.c.h.b16 %v5105
      %v5127 = vunpack.c.l.b16 %v5106
      %v5128 = vunpack.c.h.b16 %v5106
      %v5129 = vunpack.c.l.b16 %v5107
      %v5130 = vunpack.c.h.b16 %v5107
      %v5131 = vunpack.c.l.b16 %v5108
      %v5132 = vunpack.c.h.b16 %v5108
      %v5133 = vpack.c.b16 %v5119, %v5117
      %v5134 = vpack.c.b16 %v5120, %v5118
      %v5135 = vpack.c.b16 %v5123, %v5121
      %v5136 = vpack.c.b16 %v5124, %v5122
      %v5137 = vpack.c.b16 %v5127, %v5125
      %v5138 = vpack.c.b16 %v5128, %v5126
      %v5139 = vpack.c.b16 %v5131, %v5129
      %v5140 = vpack.c.b16 %v5132, %v5130
      %5149 = vmatpush.bf16.msra.mxu0 0
      %5150 = vmatpush.bf16.msra.mxu0 0
      %5151 = vmatpush.bf16.msra.mxu0 0
      %5152 = vmatpush.bf16.msra.mxu0 0
      %5153 = vmatpush.bf16.msra.mxu0 %v5139
      %5154 = vmatpush.bf16.msra.mxu0 %v5137
      %5155 = vmatpush.bf16.msra.mxu0 %v5135
      %5156 = vmatpush.bf16.msra.mxu0 %v5133
      %5157 = vmatmul.bf16.gmra.mxu0 %v4427
      %v5158 = vpop.f32.mrf.mxu0
      %v5159 = vadd.f32 0.0, %v5158
      %v5160 = vpop.f32.mrf.mxu0
      %v5161 = vadd.f32 0.0, %v5160
      %5162 = vmatmul.bf16.gmra.mxu0 %v4430
      %v5163 = vpop.f32.mrf.mxu0
      %v5164 = vadd.f32 0.0, %v5163
      %v5165 = vpop.f32.mrf.mxu0
      %v5166 = vadd.f32 0.0, %v5165
      %5167 = vmatmul.bf16.gmra.mxu0 %v4433
      %v5168 = vpop.f32.mrf.mxu0
      %v5169 = vadd.f32 0.0, %v5168
      %v5170 = vpop.f32.mrf.mxu0
      %v5171 = vadd.f32 0.0, %v5170
      %5172 = vmatmul.bf16.gmra.mxu0 %v4436
      %v5173 = vpop.f32.mrf.mxu0
      %v5174 = vadd.f32 0.0, %v5173
      %v5175 = vpop.f32.mrf.mxu0
      %v5176 = vadd.f32 0.0, %v5175
      %5177 = vdwg.mxu0
      %5178 = vmatpush.bf16.msra.mxu0 0
      %5179 = vmatpush.bf16.msra.mxu0 0
      %5180 = vmatpush.bf16.msra.mxu0 0
      %5181 = vmatpush.bf16.msra.mxu0 0
      %5182 = vmatpush.bf16.msra.mxu0 %v5140
      %5183 = vmatpush.bf16.msra.mxu0 %v5138
      %5184 = vmatpush.bf16.msra.mxu0 %v5136
      %5185 = vmatpush.bf16.msra.mxu0 %v5134
      %5186 = vmatmul.bf16.gmra.mxu0 %v4427
      %v5187 = vpop.f32.mrf.mxu0
      %v5188 = vadd.f32 0.0, %v5187
      %v5189 = vpop.f32.mrf.mxu0
      %v5190 = vadd.f32 0.0, %v5189
      %5191 = vmatmul.bf16.gmra.mxu0 %v4430
      %v5192 = vpop.f32.mrf.mxu0
      %v5193 = vadd.f32 0.0, %v5192
      %v5194 = vpop.f32.mrf.mxu0
      %v5195 = vadd.f32 0.0, %v5194
      %5196 = vmatmul.bf16.gmra.mxu0 %v4433
      %v5197 = vpop.f32.mrf.mxu0
      %v5198 = vadd.f32 0.0, %v5197
      %v5199 = vpop.f32.mrf.mxu0
      %v5200 = vadd.f32 0.0, %v5199
      %5201 = vmatmul.bf16.gmra.mxu0 %v4436
      %v5202 = vpop.f32.mrf.mxu0
      %v5203 = vadd.f32 0.0, %v5202
      %v5204 = vpop.f32.mrf.mxu0
      %v5205 = vadd.f32 0.0, %v5204
      %5206 = vdwg.mxu0
      %s5207 = scalar_lea.vmem %s10, 64
      %v5208 = vld [vmem:[%s5207] sm:$0xf]
      %v5209 = vld [vmem:[%s5207 + $0x4] sm:$0xf]
      %v5210 = vld [vmem:[%s5207 + $0x8] sm:$0xf]
      %v5211 = vld [vmem:[%s5207 + $0xc] sm:$0xf]
      %v5212 = vpack.c.bf16 %v5161, %v5159
      %v5213 = vpack.c.bf16 %v5190, %v5188
      %v5214 = vpack.c.bf16 %v5166, %v5164
      %v5215 = vpack.c.bf16 %v5195, %v5193
      %v5216 = vpack.c.bf16 %v5171, %v5169
      %v5217 = vpack.c.bf16 %v5200, %v5198
      %v5218 = vpack.c.bf16 %v5176, %v5174
      %v5219 = vpack.c.bf16 %v5205, %v5203
      %v5224 = vunpack.c.l.b16 %v5208
      %v5225 = vunpack.c.l.b16 %v5209
      %v5226 = vunpack.c.l.b16 %v5210
      %v5227 = vunpack.c.l.b16 %v5211
      %v5228 = vpack.c.b16 %v5225, %v5224
      %v5229 = vpack.c.b16 %v5227, %v5226
      %v5231 = vsel %vm2347, %v5228, 0
      %v5234 = vsel %vm2347, %v5229, 0
      %5236 = vmatpush.bf16.msra.mxu0 0
      %5237 = vmatpush.bf16.msra.mxu0 0
      %5238 = vmatpush.bf16.msra.mxu0 0
      %5239 = vmatpush.bf16.msra.mxu0 0
      %5240 = vmatpush.bf16.msra.mxu0 %v5218
      %5241 = vmatpush.bf16.msra.mxu0 %v5216
      %5242 = vmatpush.bf16.msra.mxu0 %v5214
      %5243 = vmatpush.bf16.msra.mxu0 %v5212
      %5244 = vmatmul.bf16.gmra.mxu0 %v5231
      %v5245 = vpop.f32.mrf.mxu0
      %v5246 = vadd.f32 0.0, %v5245
      %v5247 = vpop.f32.mrf.mxu0
      %v5248 = vadd.f32 0.0, %v5247
      %5249 = vmatmul.bf16.gmra.mxu0 %v5234
      %v5250 = vpop.f32.mrf.mxu0
      %v5251 = vadd.f32 0.0, %v5250
      %v5252 = vpop.f32.mrf.mxu0
      %v5253 = vadd.f32 0.0, %v5252
      %5254 = vdwg.mxu0
      %5255 = vmatpush.bf16.msra.mxu0 0
      %5256 = vmatpush.bf16.msra.mxu0 0
      %5257 = vmatpush.bf16.msra.mxu0 0
      %5258 = vmatpush.bf16.msra.mxu0 0
      %5259 = vmatpush.bf16.msra.mxu0 %v5219
      %5260 = vmatpush.bf16.msra.mxu0 %v5217
      %5261 = vmatpush.bf16.msra.mxu0 %v5215
      %5262 = vmatpush.bf16.msra.mxu0 %v5213
      %5263 = vmatmul.bf16.gmra.mxu0 %v5231
      %v5264 = vpop.f32.mrf.mxu0
      %v5265 = vadd.f32 0.0, %v5264
      %v5266 = vpop.f32.mrf.mxu0
      %v5267 = vadd.f32 0.0, %v5266
      %5268 = vmatmul.bf16.gmra.mxu0 %v5234
      %v5269 = vpop.f32.mrf.mxu0
      %v5270 = vadd.f32 0.0, %v5269
      %v5271 = vpop.f32.mrf.mxu0
      %v5272 = vadd.f32 0.0, %v5271
      %5273 = vdwg.mxu0
      %v5274 = vadd.f32 %v5092, %v5246
      %v5275 = vadd.f32 %v5093, %v5265
      %v5276 = vadd.f32 %v5094, %v5248
      %v5277 = vadd.f32 %v5095, %v5267
      %v5278 = vadd.f32 %v5096, %v5251
      %v5279 = vadd.f32 %v5097, %v5270
      %v5280 = vadd.f32 %v5098, %v5253
      %v5281 = vadd.f32 %v5099, %v5272
      %s5282 = scalar_lea.vmem %s12, 320
      %v5283 = vld [vmem:[%s5282] sm:$0xff]
      %v5284 = vld [vmem:[%s5282 + $0x8] sm:$0xff]
      %v5285 = vld [vmem:[%s5282 + $0x10] sm:$0xff]
      %v5286 = vld [vmem:[%s5282 + $0x18] sm:$0xff]
      %v5287 = vld [vmem:[%s5282 + $0x20] sm:$0xff]
      %v5288 = vld [vmem:[%s5282 + $0x28] sm:$0xff]
      %v5289 = vld [vmem:[%s5282 + $0x30] sm:$0xff]
      %v5290 = vld [vmem:[%s5282 + $0x38] sm:$0xff]
      %v5299 = vunpack.c.l.b16 %v5283
      %v5300 = vunpack.c.h.b16 %v5283
      %v5301 = vunpack.c.l.b16 %v5284
      %v5302 = vunpack.c.h.b16 %v5284
      %v5303 = vunpack.c.l.b16 %v5285
      %v5304 = vunpack.c.h.b16 %v5285
      %v5305 = vunpack.c.l.b16 %v5286
      %v5306 = vunpack.c.h.b16 %v5286
      %v5307 = vunpack.c.l.b16 %v5287
      %v5308 = vunpack.c.h.b16 %v5287
      %v5309 = vunpack.c.l.b16 %v5288
      %v5310 = vunpack.c.h.b16 %v5288
      %v5311 = vunpack.c.l.b16 %v5289
      %v5312 = vunpack.c.h.b16 %v5289
      %v5313 = vunpack.c.l.b16 %v5290
      %v5314 = vunpack.c.h.b16 %v5290
      %v5315 = vpack.c.b16 %v5301, %v5299
      %v5316 = vpack.c.b16 %v5302, %v5300
      %v5317 = vpack.c.b16 %v5305, %v5303
      %v5318 = vpack.c.b16 %v5306, %v5304
      %v5319 = vpack.c.b16 %v5309, %v5307
      %v5320 = vpack.c.b16 %v5310, %v5308
      %v5321 = vpack.c.b16 %v5313, %v5311
      %v5322 = vpack.c.b16 %v5314, %v5312
      %5331 = vmatpush.bf16.msra.mxu0 0
      %5332 = vmatpush.bf16.msra.mxu0 0
      %5333 = vmatpush.bf16.msra.mxu0 0
      %5334 = vmatpush.bf16.msra.mxu0 0
      %5335 = vmatpush.bf16.msra.mxu0 %v5321
      %5336 = vmatpush.bf16.msra.mxu0 %v5319
      %5337 = vmatpush.bf16.msra.mxu0 %v5317
      %5338 = vmatpush.bf16.msra.mxu0 %v5315
      %5339 = vmatmul.bf16.gmra.mxu0 %v4427
      %v5340 = vpop.f32.mrf.mxu0
      %v5341 = vadd.f32 0.0, %v5340
      %v5342 = vpop.f32.mrf.mxu0
      %v5343 = vadd.f32 0.0, %v5342
      %5344 = vmatmul.bf16.gmra.mxu0 %v4430
      %v5345 = vpop.f32.mrf.mxu0
      %v5346 = vadd.f32 0.0, %v5345
      %v5347 = vpop.f32.mrf.mxu0
      %v5348 = vadd.f32 0.0, %v5347
      %5349 = vmatmul.bf16.gmra.mxu0 %v4433
      %v5350 = vpop.f32.mrf.mxu0
      %v5351 = vadd.f32 0.0, %v5350
      %v5352 = vpop.f32.mrf.mxu0
      %v5353 = vadd.f32 0.0, %v5352
      %5354 = vmatmul.bf16.gmra.mxu0 %v4436
      %v5355 = vpop.f32.mrf.mxu0
      %v5356 = vadd.f32 0.0, %v5355
      %v5357 = vpop.f32.mrf.mxu0
      %v5358 = vadd.f32 0.0, %v5357
      %5359 = vdwg.mxu0
      %5360 = vmatpush.bf16.msra.mxu0 0
      %5361 = vmatpush.bf16.msra.mxu0 0
      %5362 = vmatpush.bf16.msra.mxu0 0
      %5363 = vmatpush.bf16.msra.mxu0 0
      %5364 = vmatpush.bf16.msra.mxu0 %v5322
      %5365 = vmatpush.bf16.msra.mxu0 %v5320
      %5366 = vmatpush.bf16.msra.mxu0 %v5318
      %5367 = vmatpush.bf16.msra.mxu0 %v5316
      %5368 = vmatmul.bf16.gmra.mxu0 %v4427
      %v5369 = vpop.f32.mrf.mxu0
      %v5370 = vadd.f32 0.0, %v5369
      %v5371 = vpop.f32.mrf.mxu0
      %v5372 = vadd.f32 0.0, %v5371
      %5373 = vmatmul.bf16.gmra.mxu0 %v4430
      %v5374 = vpop.f32.mrf.mxu0
      %v5375 = vadd.f32 0.0, %v5374
      %v5376 = vpop.f32.mrf.mxu0
      %v5377 = vadd.f32 0.0, %v5376
      %5378 = vmatmul.bf16.gmra.mxu0 %v4433
      %v5379 = vpop.f32.mrf.mxu0
      %v5380 = vadd.f32 0.0, %v5379
      %v5381 = vpop.f32.mrf.mxu0
      %v5382 = vadd.f32 0.0, %v5381
      %5383 = vmatmul.bf16.gmra.mxu0 %v4436
      %v5384 = vpop.f32.mrf.mxu0
      %v5385 = vadd.f32 0.0, %v5384
      %v5386 = vpop.f32.mrf.mxu0
      %v5387 = vadd.f32 0.0, %v5386
      %5388 = vdwg.mxu0
      %s5389 = scalar_lea.vmem %s10, 80
      %v5390 = vld [vmem:[%s5389] sm:$0xf]
      %v5391 = vld [vmem:[%s5389 + $0x4] sm:$0xf]
      %v5392 = vld [vmem:[%s5389 + $0x8] sm:$0xf]
      %v5393 = vld [vmem:[%s5389 + $0xc] sm:$0xf]
      %v5394 = vpack.c.bf16 %v5343, %v5341
      %v5395 = vpack.c.bf16 %v5372, %v5370
      %v5396 = vpack.c.bf16 %v5348, %v5346
      %v5397 = vpack.c.bf16 %v5377, %v5375
      %v5398 = vpack.c.bf16 %v5353, %v5351
      %v5399 = vpack.c.bf16 %v5382, %v5380
      %v5400 = vpack.c.bf16 %v5358, %v5356
      %v5401 = vpack.c.bf16 %v5387, %v5385
      %v5406 = vunpack.c.l.b16 %v5390
      %v5407 = vunpack.c.l.b16 %v5391
      %v5408 = vunpack.c.l.b16 %v5392
      %v5409 = vunpack.c.l.b16 %v5393
      %v5410 = vpack.c.b16 %v5407, %v5406
      %v5411 = vpack.c.b16 %v5409, %v5408
      %v5413 = vsel %vm2347, %v5410, 0
      %v5416 = vsel %vm2347, %v5411, 0
      %5418 = vmatpush.bf16.msra.mxu0 0
      %5419 = vmatpush.bf16.msra.mxu0 0
      %5420 = vmatpush.bf16.msra.mxu0 0
      %5421 = vmatpush.bf16.msra.mxu0 0
      %5422 = vmatpush.bf16.msra.mxu0 %v5400
      %5423 = vmatpush.bf16.msra.mxu0 %v5398
      %5424 = vmatpush.bf16.msra.mxu0 %v5396
      %5425 = vmatpush.bf16.msra.mxu0 %v5394
      %5426 = vmatmul.bf16.gmra.mxu0 %v5413
      %v5427 = vpop.f32.mrf.mxu0
      %v5428 = vadd.f32 0.0, %v5427
      %v5429 = vpop.f32.mrf.mxu0
      %v5430 = vadd.f32 0.0, %v5429
      %5431 = vmatmul.bf16.gmra.mxu0 %v5416
      %v5432 = vpop.f32.mrf.mxu0
      %v5433 = vadd.f32 0.0, %v5432
      %v5434 = vpop.f32.mrf.mxu0
      %v5435 = vadd.f32 0.0, %v5434
      %5436 = vdwg.mxu0
      %5437 = vmatpush.bf16.msra.mxu0 0
      %5438 = vmatpush.bf16.msra.mxu0 0
      %5439 = vmatpush.bf16.msra.mxu0 0
      %5440 = vmatpush.bf16.msra.mxu0 0
      %5441 = vmatpush.bf16.msra.mxu0 %v5401
      %5442 = vmatpush.bf16.msra.mxu0 %v5399
      %5443 = vmatpush.bf16.msra.mxu0 %v5397
      %5444 = vmatpush.bf16.msra.mxu0 %v5395
      %5445 = vmatmul.bf16.gmra.mxu0 %v5413
      %v5446 = vpop.f32.mrf.mxu0
      %v5447 = vadd.f32 0.0, %v5446
      %v5448 = vpop.f32.mrf.mxu0
      %v5449 = vadd.f32 0.0, %v5448
      %5450 = vmatmul.bf16.gmra.mxu0 %v5416
      %v5451 = vpop.f32.mrf.mxu0
      %v5452 = vadd.f32 0.0, %v5451
      %v5453 = vpop.f32.mrf.mxu0
      %v5454 = vadd.f32 0.0, %v5453
      %5455 = vdwg.mxu0
      %v5456 = vadd.f32 %v5274, %v5428
      %v5457 = vadd.f32 %v5275, %v5447
      %v5458 = vadd.f32 %v5276, %v5430
      %v5459 = vadd.f32 %v5277, %v5449
      %v5460 = vadd.f32 %v5278, %v5433
      %v5461 = vadd.f32 %v5279, %v5452
      %v5462 = vadd.f32 %v5280, %v5435
      %v5463 = vadd.f32 %v5281, %v5454
      %s5464 = scalar_lea.vmem %s12, 384
      %v5465 = vld [vmem:[%s5464] sm:$0xff]
      %v5466 = vld [vmem:[%s5464 + $0x8] sm:$0xff]
      %v5467 = vld [vmem:[%s5464 + $0x10] sm:$0xff]
      %v5468 = vld [vmem:[%s5464 + $0x18] sm:$0xff]
      %v5469 = vld [vmem:[%s5464 + $0x20] sm:$0xff]
      %v5470 = vld [vmem:[%s5464 + $0x28] sm:$0xff]
      %v5471 = vld [vmem:[%s5464 + $0x30] sm:$0xff]
      %v5472 = vld [vmem:[%s5464 + $0x38] sm:$0xff]
      %v5481 = vunpack.c.l.b16 %v5465
      %v5482 = vunpack.c.h.b16 %v5465
      %v5483 = vunpack.c.l.b16 %v5466
      %v5484 = vunpack.c.h.b16 %v5466
      %v5485 = vunpack.c.l.b16 %v5467
      %v5486 = vunpack.c.h.b16 %v5467
      %v5487 = vunpack.c.l.b16 %v5468
      %v5488 = vunpack.c.h.b16 %v5468
      %v5489 = vunpack.c.l.b16 %v5469
      %v5490 = vunpack.c.h.b16 %v5469
      %v5491 = vunpack.c.l.b16 %v5470
      %v5492 = vunpack.c.h.b16 %v5470
      %v5493 = vunpack.c.l.b16 %v5471
      %v5494 = vunpack.c.h.b16 %v5471
      %v5495 = vunpack.c.l.b16 %v5472
      %v5496 = vunpack.c.h.b16 %v5472
      %v5497 = vpack.c.b16 %v5483, %v5481
      %v5498 = vpack.c.b16 %v5484, %v5482
      %v5499 = vpack.c.b16 %v5487, %v5485
      %v5500 = vpack.c.b16 %v5488, %v5486
      %v5501 = vpack.c.b16 %v5491, %v5489
      %v5502 = vpack.c.b16 %v5492, %v5490
      %v5503 = vpack.c.b16 %v5495, %v5493
      %v5504 = vpack.c.b16 %v5496, %v5494
      %5513 = vmatpush.bf16.msra.mxu0 0
      %5514 = vmatpush.bf16.msra.mxu0 0
      %5515 = vmatpush.bf16.msra.mxu0 0
      %5516 = vmatpush.bf16.msra.mxu0 0
      %5517 = vmatpush.bf16.msra.mxu0 %v5503
      %5518 = vmatpush.bf16.msra.mxu0 %v5501
      %5519 = vmatpush.bf16.msra.mxu0 %v5499
      %5520 = vmatpush.bf16.msra.mxu0 %v5497
      %5521 = vmatmul.bf16.gmra.mxu0 %v4427
      %v5522 = vpop.f32.mrf.mxu0
      %v5523 = vadd.f32 0.0, %v5522
      %v5524 = vpop.f32.mrf.mxu0
      %v5525 = vadd.f32 0.0, %v5524
      %5526 = vmatmul.bf16.gmra.mxu0 %v4430
      %v5527 = vpop.f32.mrf.mxu0
      %v5528 = vadd.f32 0.0, %v5527
      %v5529 = vpop.f32.mrf.mxu0
      %v5530 = vadd.f32 0.0, %v5529
      %5531 = vmatmul.bf16.gmra.mxu0 %v4433
      %v5532 = vpop.f32.mrf.mxu0
      %v5533 = vadd.f32 0.0, %v5532
      %v5534 = vpop.f32.mrf.mxu0
      %v5535 = vadd.f32 0.0, %v5534
      %5536 = vmatmul.bf16.gmra.mxu0 %v4436
      %v5537 = vpop.f32.mrf.mxu0
      %v5538 = vadd.f32 0.0, %v5537
      %v5539 = vpop.f32.mrf.mxu0
      %v5540 = vadd.f32 0.0, %v5539
      %5541 = vdwg.mxu0
      %5542 = vmatpush.bf16.msra.mxu0 0
      %5543 = vmatpush.bf16.msra.mxu0 0
      %5544 = vmatpush.bf16.msra.mxu0 0
      %5545 = vmatpush.bf16.msra.mxu0 0
      %5546 = vmatpush.bf16.msra.mxu0 %v5504
      %5547 = vmatpush.bf16.msra.mxu0 %v5502
      %5548 = vmatpush.bf16.msra.mxu0 %v5500
      %5549 = vmatpush.bf16.msra.mxu0 %v5498
      %5550 = vmatmul.bf16.gmra.mxu0 %v4427
      %v5551 = vpop.f32.mrf.mxu0
      %v5552 = vadd.f32 0.0, %v5551
      %v5553 = vpop.f32.mrf.mxu0
      %v5554 = vadd.f32 0.0, %v5553
      %5555 = vmatmul.bf16.gmra.mxu0 %v4430
      %v5556 = vpop.f32.mrf.mxu0
      %v5557 = vadd.f32 0.0, %v5556
      %v5558 = vpop.f32.mrf.mxu0
      %v5559 = vadd.f32 0.0, %v5558
      %5560 = vmatmul.bf16.gmra.mxu0 %v4433
      %v5561 = vpop.f32.mrf.mxu0
      %v5562 = vadd.f32 0.0, %v5561
      %v5563 = vpop.f32.mrf.mxu0
      %v5564 = vadd.f32 0.0, %v5563
      %5565 = vmatmul.bf16.gmra.mxu0 %v4436
      %v5566 = vpop.f32.mrf.mxu0
      %v5567 = vadd.f32 0.0, %v5566
      %v5568 = vpop.f32.mrf.mxu0
      %v5569 = vadd.f32 0.0, %v5568
      %5570 = vdwg.mxu0
      %s5571 = scalar_lea.vmem %s10, 96
      %v5572 = vld [vmem:[%s5571] sm:$0xf]
      %v5573 = vld [vmem:[%s5571 + $0x4] sm:$0xf]
      %v5574 = vld [vmem:[%s5571 + $0x8] sm:$0xf]
      %v5575 = vld [vmem:[%s5571 + $0xc] sm:$0xf]
      %v5576 = vpack.c.bf16 %v5525, %v5523
      %v5577 = vpack.c.bf16 %v5554, %v5552
      %v5578 = vpack.c.bf16 %v5530, %v5528
      %v5579 = vpack.c.bf16 %v5559, %v5557
      %v5580 = vpack.c.bf16 %v5535, %v5533
      %v5581 = vpack.c.bf16 %v5564, %v5562
      %v5582 = vpack.c.bf16 %v5540, %v5538
      %v5583 = vpack.c.bf16 %v5569, %v5567
      %v5588 = vunpack.c.l.b16 %v5572
      %v5589 = vunpack.c.l.b16 %v5573
      %v5590 = vunpack.c.l.b16 %v5574
      %v5591 = vunpack.c.l.b16 %v5575
      %v5592 = vpack.c.b16 %v5589, %v5588
      %v5593 = vpack.c.b16 %v5591, %v5590
      %v5595 = vsel %vm2347, %v5592, 0
      %v5598 = vsel %vm2347, %v5593, 0
      %5600 = vmatpush.bf16.msra.mxu0 0
      %5601 = vmatpush.bf16.msra.mxu0 0
      %5602 = vmatpush.bf16.msra.mxu0 0
      %5603 = vmatpush.bf16.msra.mxu0 0
      %5604 = vmatpush.bf16.msra.mxu0 %v5582
      %5605 = vmatpush.bf16.msra.mxu0 %v5580
      %5606 = vmatpush.bf16.msra.mxu0 %v5578
      %5607 = vmatpush.bf16.msra.mxu0 %v5576
      %5608 = vmatmul.bf16.gmra.mxu0 %v5595
      %v5609 = vpop.f32.mrf.mxu0
      %v5610 = vadd.f32 0.0, %v5609
      %v5611 = vpop.f32.mrf.mxu0
      %v5612 = vadd.f32 0.0, %v5611
      %5613 = vmatmul.bf16.gmra.mxu0 %v5598
      %v5614 = vpop.f32.mrf.mxu0
      %v5615 = vadd.f32 0.0, %v5614
      %v5616 = vpop.f32.mrf.mxu0
      %v5617 = vadd.f32 0.0, %v5616
      %5618 = vdwg.mxu0
      %5619 = vmatpush.bf16.msra.mxu0 0
      %5620 = vmatpush.bf16.msra.mxu0 0
      %5621 = vmatpush.bf16.msra.mxu0 0
      %5622 = vmatpush.bf16.msra.mxu0 0
      %5623 = vmatpush.bf16.msra.mxu0 %v5583
      %5624 = vmatpush.bf16.msra.mxu0 %v5581
      %5625 = vmatpush.bf16.msra.mxu0 %v5579
      %5626 = vmatpush.bf16.msra.mxu0 %v5577
      %5627 = vmatmul.bf16.gmra.mxu0 %v5595
      %v5628 = vpop.f32.mrf.mxu0
      %v5629 = vadd.f32 0.0, %v5628
      %v5630 = vpop.f32.mrf.mxu0
      %v5631 = vadd.f32 0.0, %v5630
      %5632 = vmatmul.bf16.gmra.mxu0 %v5598
      %v5633 = vpop.f32.mrf.mxu0
      %v5634 = vadd.f32 0.0, %v5633
      %v5635 = vpop.f32.mrf.mxu0
      %v5636 = vadd.f32 0.0, %v5635
      %5637 = vdwg.mxu0
      %v5638 = vadd.f32 %v5456, %v5610
      %v5639 = vadd.f32 %v5457, %v5629
      %v5640 = vadd.f32 %v5458, %v5612
      %v5641 = vadd.f32 %v5459, %v5631
      %v5642 = vadd.f32 %v5460, %v5615
      %v5643 = vadd.f32 %v5461, %v5634
      %v5644 = vadd.f32 %v5462, %v5617
      %v5645 = vadd.f32 %v5463, %v5636
      %s5646 = scalar_lea.vmem %s12, 448
      %v5647 = vld [vmem:[%s5646] sm:$0xff]
      %v5648 = vld [vmem:[%s5646 + $0x8] sm:$0xff]
      %v5649 = vld [vmem:[%s5646 + $0x10] sm:$0xff]
      %v5650 = vld [vmem:[%s5646 + $0x18] sm:$0xff]
      %v5651 = vld [vmem:[%s5646 + $0x20] sm:$0xff]
      %v5652 = vld [vmem:[%s5646 + $0x28] sm:$0xff]
      %v5653 = vld [vmem:[%s5646 + $0x30] sm:$0xff]
      %v5654 = vld [vmem:[%s5646 + $0x38] sm:$0xff]
      %v5663 = vunpack.c.l.b16 %v5647
      %v5664 = vunpack.c.h.b16 %v5647
      %v5665 = vunpack.c.l.b16 %v5648
      %v5666 = vunpack.c.h.b16 %v5648
      %v5667 = vunpack.c.l.b16 %v5649
      %v5668 = vunpack.c.h.b16 %v5649
      %v5669 = vunpack.c.l.b16 %v5650
      %v5670 = vunpack.c.h.b16 %v5650
      %v5671 = vunpack.c.l.b16 %v5651
      %v5672 = vunpack.c.h.b16 %v5651
      %v5673 = vunpack.c.l.b16 %v5652
      %v5674 = vunpack.c.h.b16 %v5652
      %v5675 = vunpack.c.l.b16 %v5653
      %v5676 = vunpack.c.h.b16 %v5653
      %v5677 = vunpack.c.l.b16 %v5654
      %v5678 = vunpack.c.h.b16 %v5654
      %v5679 = vpack.c.b16 %v5665, %v5663
      %v5680 = vpack.c.b16 %v5666, %v5664
      %v5681 = vpack.c.b16 %v5669, %v5667
      %v5682 = vpack.c.b16 %v5670, %v5668
      %v5683 = vpack.c.b16 %v5673, %v5671
      %v5684 = vpack.c.b16 %v5674, %v5672
      %v5685 = vpack.c.b16 %v5677, %v5675
      %v5686 = vpack.c.b16 %v5678, %v5676
      %5695 = vmatpush.bf16.msra.mxu0 0
      %5696 = vmatpush.bf16.msra.mxu0 0
      %5697 = vmatpush.bf16.msra.mxu0 0
      %5698 = vmatpush.bf16.msra.mxu0 0
      %5699 = vmatpush.bf16.msra.mxu0 %v5685
      %5700 = vmatpush.bf16.msra.mxu0 %v5683
      %5701 = vmatpush.bf16.msra.mxu0 %v5681
      %5702 = vmatpush.bf16.msra.mxu0 %v5679
      %5703 = vmatmul.bf16.gmra.mxu0 %v4427
      %v5704 = vpop.f32.mrf.mxu0
      %v5705 = vadd.f32 0.0, %v5704
      %v5706 = vpop.f32.mrf.mxu0
      %v5707 = vadd.f32 0.0, %v5706
      %5708 = vmatmul.bf16.gmra.mxu0 %v4430
      %v5709 = vpop.f32.mrf.mxu0
      %v5710 = vadd.f32 0.0, %v5709
      %v5711 = vpop.f32.mrf.mxu0
      %v5712 = vadd.f32 0.0, %v5711
      %5713 = vmatmul.bf16.gmra.mxu0 %v4433
      %v5714 = vpop.f32.mrf.mxu0
      %v5715 = vadd.f32 0.0, %v5714
      %v5716 = vpop.f32.mrf.mxu0
      %v5717 = vadd.f32 0.0, %v5716
      %5718 = vmatmul.bf16.gmra.mxu0 %v4436
      %v5719 = vpop.f32.mrf.mxu0
      %v5720 = vadd.f32 0.0, %v5719
      %v5721 = vpop.f32.mrf.mxu0
      %v5722 = vadd.f32 0.0, %v5721
      %5723 = vdwg.mxu0
      %5724 = vmatpush.bf16.msra.mxu0 0
      %5725 = vmatpush.bf16.msra.mxu0 0
      %5726 = vmatpush.bf16.msra.mxu0 0
      %5727 = vmatpush.bf16.msra.mxu0 0
      %5728 = vmatpush.bf16.msra.mxu0 %v5686
      %5729 = vmatpush.bf16.msra.mxu0 %v5684
      %5730 = vmatpush.bf16.msra.mxu0 %v5682
      %5731 = vmatpush.bf16.msra.mxu0 %v5680
      %5732 = vmatmul.bf16.gmra.mxu0 %v4427
      %v5733 = vpop.f32.mrf.mxu0
      %v5734 = vadd.f32 0.0, %v5733
      %v5735 = vpop.f32.mrf.mxu0
      %v5736 = vadd.f32 0.0, %v5735
      %5737 = vmatmul.bf16.gmra.mxu0 %v4430
      %v5738 = vpop.f32.mrf.mxu0
      %v5739 = vadd.f32 0.0, %v5738
      %v5740 = vpop.f32.mrf.mxu0
      %v5741 = vadd.f32 0.0, %v5740
      %5742 = vmatmul.bf16.gmra.mxu0 %v4433
      %v5743 = vpop.f32.mrf.mxu0
      %v5744 = vadd.f32 0.0, %v5743
      %v5745 = vpop.f32.mrf.mxu0
      %v5746 = vadd.f32 0.0, %v5745
      %5747 = vmatmul.bf16.gmra.mxu0 %v4436
      %v5748 = vpop.f32.mrf.mxu0
      %v5749 = vadd.f32 0.0, %v5748
      %v5750 = vpop.f32.mrf.mxu0
      %v5751 = vadd.f32 0.0, %v5750
      %5752 = vdwg.mxu0
      %s5753 = scalar_lea.vmem %s10, 112
      %v5754 = vld [vmem:[%s5753] sm:$0xf]
      %v5755 = vld [vmem:[%s5753 + $0x4] sm:$0xf]
      %v5756 = vld [vmem:[%s5753 + $0x8] sm:$0xf]
      %v5757 = vld [vmem:[%s5753 + $0xc] sm:$0xf]
      %v5758 = vpack.c.bf16 %v5707, %v5705
      %v5759 = vpack.c.bf16 %v5736, %v5734
      %v5760 = vpack.c.bf16 %v5712, %v5710
      %v5761 = vpack.c.bf16 %v5741, %v5739
      %v5762 = vpack.c.bf16 %v5717, %v5715
      %v5763 = vpack.c.bf16 %v5746, %v5744
      %v5764 = vpack.c.bf16 %v5722, %v5720
      %v5765 = vpack.c.bf16 %v5751, %v5749
      %v5770 = vunpack.c.l.b16 %v5754
      %v5771 = vunpack.c.l.b16 %v5755
      %v5772 = vunpack.c.l.b16 %v5756
      %v5773 = vunpack.c.l.b16 %v5757
      %v5774 = vpack.c.b16 %v5771, %v5770
      %v5775 = vpack.c.b16 %v5773, %v5772
      %v5777 = vsel %vm2347, %v5774, 0
      %v5780 = vsel %vm2347, %v5775, 0
      %5782 = vmatpush.bf16.msra.mxu0 0
      %5783 = vmatpush.bf16.msra.mxu0 0
      %5784 = vmatpush.bf16.msra.mxu0 0
      %5785 = vmatpush.bf16.msra.mxu0 0
      %5786 = vmatpush.bf16.msra.mxu0 %v5764
      %5787 = vmatpush.bf16.msra.mxu0 %v5762
      %5788 = vmatpush.bf16.msra.mxu0 %v5760
      %5789 = vmatpush.bf16.msra.mxu0 %v5758
      %5790 = vmatmul.bf16.gmra.mxu0 %v5777
      %v5791 = vpop.f32.mrf.mxu0
      %v5792 = vadd.f32 0.0, %v5791
      %v5793 = vpop.f32.mrf.mxu0
      %v5794 = vadd.f32 0.0, %v5793
      %5795 = vmatmul.bf16.gmra.mxu0 %v5780
      %v5796 = vpop.f32.mrf.mxu0
      %v5797 = vadd.f32 0.0, %v5796
      %v5798 = vpop.f32.mrf.mxu0
      %v5799 = vadd.f32 0.0, %v5798
      %5800 = vdwg.mxu0
      %5801 = vmatpush.bf16.msra.mxu0 0
      %5802 = vmatpush.bf16.msra.mxu0 0
      %5803 = vmatpush.bf16.msra.mxu0 0
      %5804 = vmatpush.bf16.msra.mxu0 0
      %5805 = vmatpush.bf16.msra.mxu0 %v5765
      %5806 = vmatpush.bf16.msra.mxu0 %v5763
      %5807 = vmatpush.bf16.msra.mxu0 %v5761
      %5808 = vmatpush.bf16.msra.mxu0 %v5759
      %5809 = vmatmul.bf16.gmra.mxu0 %v5777
      %v5810 = vpop.f32.mrf.mxu0
      %v5811 = vadd.f32 0.0, %v5810
      %v5812 = vpop.f32.mrf.mxu0
      %v5813 = vadd.f32 0.0, %v5812
      %5814 = vmatmul.bf16.gmra.mxu0 %v5780
      %v5815 = vpop.f32.mrf.mxu0
      %v5816 = vadd.f32 0.0, %v5815
      %v5817 = vpop.f32.mrf.mxu0
      %v5818 = vadd.f32 0.0, %v5817
      %5819 = vdwg.mxu0
      %v5820 = vadd.f32 %v5638, %v5792
      %v5821 = vadd.f32 %v5639, %v5811
      %v5822 = vadd.f32 %v5640, %v5794
      %v5823 = vadd.f32 %v5641, %v5813
      %v5824 = vadd.f32 %v5642, %v5797
      %v5825 = vadd.f32 %v5643, %v5816
      %v5826 = vadd.f32 %v5644, %v5799
      %v5827 = vadd.f32 %v5645, %v5818
      %s5828 = scalar_lea.vmem %s12, 512
      %v5829 = vld [vmem:[%s5828] sm:$0xff]
      %v5830 = vld [vmem:[%s5828 + $0x8] sm:$0xff]
      %v5831 = vld [vmem:[%s5828 + $0x10] sm:$0xff]
      %v5832 = vld [vmem:[%s5828 + $0x18] sm:$0xff]
      %v5833 = vld [vmem:[%s5828 + $0x20] sm:$0xff]
      %v5834 = vld [vmem:[%s5828 + $0x28] sm:$0xff]
      %v5835 = vld [vmem:[%s5828 + $0x30] sm:$0xff]
      %v5836 = vld [vmem:[%s5828 + $0x38] sm:$0xff]
      %v5845 = vunpack.c.l.b16 %v5829
      %v5846 = vunpack.c.h.b16 %v5829
      %v5847 = vunpack.c.l.b16 %v5830
      %v5848 = vunpack.c.h.b16 %v5830
      %v5849 = vunpack.c.l.b16 %v5831
      %v5850 = vunpack.c.h.b16 %v5831
      %v5851 = vunpack.c.l.b16 %v5832
      %v5852 = vunpack.c.h.b16 %v5832
      %v5853 = vunpack.c.l.b16 %v5833
      %v5854 = vunpack.c.h.b16 %v5833
      %v5855 = vunpack.c.l.b16 %v5834
      %v5856 = vunpack.c.h.b16 %v5834
      %v5857 = vunpack.c.l.b16 %v5835
      %v5858 = vunpack.c.h.b16 %v5835
      %v5859 = vunpack.c.l.b16 %v5836
      %v5860 = vunpack.c.h.b16 %v5836
      %v5861 = vpack.c.b16 %v5847, %v5845
      %v5862 = vpack.c.b16 %v5848, %v5846
      %v5863 = vpack.c.b16 %v5851, %v5849
      %v5864 = vpack.c.b16 %v5852, %v5850
      %v5865 = vpack.c.b16 %v5855, %v5853
      %v5866 = vpack.c.b16 %v5856, %v5854
      %v5867 = vpack.c.b16 %v5859, %v5857
      %v5868 = vpack.c.b16 %v5860, %v5858
      %5877 = vmatpush.bf16.msra.mxu0 0
      %5878 = vmatpush.bf16.msra.mxu0 0
      %5879 = vmatpush.bf16.msra.mxu0 0
      %5880 = vmatpush.bf16.msra.mxu0 0
      %5881 = vmatpush.bf16.msra.mxu0 %v5867
      %5882 = vmatpush.bf16.msra.mxu0 %v5865
      %5883 = vmatpush.bf16.msra.mxu0 %v5863
      %5884 = vmatpush.bf16.msra.mxu0 %v5861
      %5885 = vmatmul.bf16.gmra.mxu0 %v4427
      %v5886 = vpop.f32.mrf.mxu0
      %v5887 = vadd.f32 0.0, %v5886
      %v5888 = vpop.f32.mrf.mxu0
      %v5889 = vadd.f32 0.0, %v5888
      %5890 = vmatmul.bf16.gmra.mxu0 %v4430
      %v5891 = vpop.f32.mrf.mxu0
      %v5892 = vadd.f32 0.0, %v5891
      %v5893 = vpop.f32.mrf.mxu0
      %v5894 = vadd.f32 0.0, %v5893
      %5895 = vmatmul.bf16.gmra.mxu0 %v4433
      %v5896 = vpop.f32.mrf.mxu0
      %v5897 = vadd.f32 0.0, %v5896
      %v5898 = vpop.f32.mrf.mxu0
      %v5899 = vadd.f32 0.0, %v5898
      %5900 = vmatmul.bf16.gmra.mxu0 %v4436
      %v5901 = vpop.f32.mrf.mxu0
      %v5902 = vadd.f32 0.0, %v5901
      %v5903 = vpop.f32.mrf.mxu0
      %v5904 = vadd.f32 0.0, %v5903
      %5905 = vdwg.mxu0
      %5906 = vmatpush.bf16.msra.mxu0 0
      %5907 = vmatpush.bf16.msra.mxu0 0
      %5908 = vmatpush.bf16.msra.mxu0 0
      %5909 = vmatpush.bf16.msra.mxu0 0
      %5910 = vmatpush.bf16.msra.mxu0 %v5868
      %5911 = vmatpush.bf16.msra.mxu0 %v5866
      %5912 = vmatpush.bf16.msra.mxu0 %v5864
      %5913 = vmatpush.bf16.msra.mxu0 %v5862
      %5914 = vmatmul.bf16.gmra.mxu0 %v4427
      %v5915 = vpop.f32.mrf.mxu0
      %v5916 = vadd.f32 0.0, %v5915
      %v5917 = vpop.f32.mrf.mxu0
      %v5918 = vadd.f32 0.0, %v5917
      %5919 = vmatmul.bf16.gmra.mxu0 %v4430
      %v5920 = vpop.f32.mrf.mxu0
      %v5921 = vadd.f32 0.0, %v5920
      %v5922 = vpop.f32.mrf.mxu0
      %v5923 = vadd.f32 0.0, %v5922
      %5924 = vmatmul.bf16.gmra.mxu0 %v4433
      %v5925 = vpop.f32.mrf.mxu0
      %v5926 = vadd.f32 0.0, %v5925
      %v5927 = vpop.f32.mrf.mxu0
      %v5928 = vadd.f32 0.0, %v5927
      %5929 = vmatmul.bf16.gmra.mxu0 %v4436
      %v5930 = vpop.f32.mrf.mxu0
      %v5931 = vadd.f32 0.0, %v5930
      %v5932 = vpop.f32.mrf.mxu0
      %v5933 = vadd.f32 0.0, %v5932
      %5934 = vdwg.mxu0
      %s5935 = scalar_lea.vmem %s10, 128
      %v5936 = vld [vmem:[%s5935] sm:$0xf]
      %v5937 = vld [vmem:[%s5935 + $0x4] sm:$0xf]
      %v5938 = vld [vmem:[%s5935 + $0x8] sm:$0xf]
      %v5939 = vld [vmem:[%s5935 + $0xc] sm:$0xf]
      %v5940 = vpack.c.bf16 %v5889, %v5887
      %v5941 = vpack.c.bf16 %v5918, %v5916
      %v5942 = vpack.c.bf16 %v5894, %v5892
      %v5943 = vpack.c.bf16 %v5923, %v5921
      %v5944 = vpack.c.bf16 %v5899, %v5897
      %v5945 = vpack.c.bf16 %v5928, %v5926
      %v5946 = vpack.c.bf16 %v5904, %v5902
      %v5947 = vpack.c.bf16 %v5933, %v5931
      %v5952 = vunpack.c.l.b16 %v5936
      %v5953 = vunpack.c.l.b16 %v5937
      %v5954 = vunpack.c.l.b16 %v5938
      %v5955 = vunpack.c.l.b16 %v5939
      %v5956 = vpack.c.b16 %v5953, %v5952
      %v5957 = vpack.c.b16 %v5955, %v5954
      %v5959 = vsel %vm2347, %v5956, 0
      %v5962 = vsel %vm2347, %v5957, 0
      %5964 = vmatpush.bf16.msra.mxu0 0
      %5965 = vmatpush.bf16.msra.mxu0 0
      %5966 = vmatpush.bf16.msra.mxu0 0
      %5967 = vmatpush.bf16.msra.mxu0 0
      %5968 = vmatpush.bf16.msra.mxu0 %v5946
      %5969 = vmatpush.bf16.msra.mxu0 %v5944
      %5970 = vmatpush.bf16.msra.mxu0 %v5942
      %5971 = vmatpush.bf16.msra.mxu0 %v5940
      %5972 = vmatmul.bf16.gmra.mxu0 %v5959
      %v5973 = vpop.f32.mrf.mxu0
      %v5974 = vadd.f32 0.0, %v5973
      %v5975 = vpop.f32.mrf.mxu0
      %v5976 = vadd.f32 0.0, %v5975
      %5977 = vmatmul.bf16.gmra.mxu0 %v5962
      %v5978 = vpop.f32.mrf.mxu0
      %v5979 = vadd.f32 0.0, %v5978
      %v5980 = vpop.f32.mrf.mxu0
      %v5981 = vadd.f32 0.0, %v5980
      %5982 = vdwg.mxu0
      %5983 = vmatpush.bf16.msra.mxu0 0
      %5984 = vmatpush.bf16.msra.mxu0 0
      %5985 = vmatpush.bf16.msra.mxu0 0
      %5986 = vmatpush.bf16.msra.mxu0 0
      %5987 = vmatpush.bf16.msra.mxu0 %v5947
      %5988 = vmatpush.bf16.msra.mxu0 %v5945
      %5989 = vmatpush.bf16.msra.mxu0 %v5943
      %5990 = vmatpush.bf16.msra.mxu0 %v5941
      %5991 = vmatmul.bf16.gmra.mxu0 %v5959
      %v5992 = vpop.f32.mrf.mxu0
      %v5993 = vadd.f32 0.0, %v5992
      %v5994 = vpop.f32.mrf.mxu0
      %v5995 = vadd.f32 0.0, %v5994
      %5996 = vmatmul.bf16.gmra.mxu0 %v5962
      %v5997 = vpop.f32.mrf.mxu0
      %v5998 = vadd.f32 0.0, %v5997
      %v5999 = vpop.f32.mrf.mxu0
      %v6000 = vadd.f32 0.0, %v5999
      %6001 = vdwg.mxu0
      %v6002 = vadd.f32 %v5820, %v5974
      %v6003 = vadd.f32 %v5821, %v5993
      %v6004 = vadd.f32 %v5822, %v5976
      %v6005 = vadd.f32 %v5823, %v5995
      %v6006 = vadd.f32 %v5824, %v5979
      %v6007 = vadd.f32 %v5825, %v5998
      %v6008 = vadd.f32 %v5826, %v5981
      %v6009 = vadd.f32 %v5827, %v6000
      %v6010 = vld [vmem:[%s11] sm:$0xff]
      %v6011 = vld [vmem:[%s11 + $0x8] sm:$0xff]
      %v6012 = vld [vmem:[%s11 + $0x10] sm:$0xff]
      %v6013 = vld [vmem:[%s11 + $0x18] sm:$0xff]
      %6015 = vset.pattern.permute.xlu0 0
      %6016 = vperm.xlu0 %6015, %v6010
      %v6017 = vpop.permute.xlu0 %6016
      %6020 = vset.pattern.permute.xlu0 0
      %6021 = vperm.xlu0 %6020, %v6011
      %v6022 = vpop.permute.xlu0 %6021
      %6025 = vset.pattern.permute.xlu0 0
      %6026 = vperm.xlu0 %6025, %v6012
      %v6027 = vpop.permute.xlu0 %6026
      %6030 = vset.pattern.permute.xlu0 0
      %6031 = vperm.xlu0 %6030, %v6013
      %v6032 = vpop.permute.xlu0 %6031
      %v6034 = vadd.f32 %v6002, %v6017
      %v6035 = vadd.f32 %v6003, %v6017
      %v6036 = vadd.f32 %v6004, %v6022
      %v6037 = vadd.f32 %v6005, %v6022
      %v6038 = vadd.f32 %v6006, %v6027
      %v6039 = vadd.f32 %v6007, %v6027
      %v6040 = vadd.f32 %v6008, %v6032
      %v6041 = vadd.f32 %v6009, %v6032
      %6043 = vst [vmem:[#allocation1] ss:$2 sm:$0xff] %v442
      %v6044 = vld.sshfl [vmem:[#allocation1] sm:$0xff pattern:$0x75316420]
      %v6045 = vld.sshfl [vmem:[#allocation1 + $0x8] sm:$0xff pattern:$0x75316420]
      %6048 = vst [vmem:[%s440] sm:$0xff] %v6034
      %6049 = vst [vmem:[%s440 + $0x8] sm:$0xff] %v6035
      %6050 = vst [vmem:[%s440 + $0x10] sm:$0xff] %v6036
      %6051 = vst [vmem:[%s440 + $0x18] sm:$0xff] %v6037
      %6052 = vst [vmem:[%s440 + $0x20] sm:$0xff] %v6038
      %6053 = vst [vmem:[%s440 + $0x28] sm:$0xff] %v6039
      %6054 = vst [vmem:[%s440 + $0x30] sm:$0xff] %v6040
      %6055 = vst [vmem:[%s440 + $0x38] sm:$0xff] %v6041
      %6056 = vst [vmem:[%s440 + $0x40] sm:$0xf] %v6044
      %6057 = vst [vmem:[%s440 + $0x48] sm:$0xf] %v6045
      %p6058 = scmp.lt.s32.totalorder %s24, 1
      %s6059 = scalar_select %p6058, %s24, 1
      %s6060 = smul.addr %s6059, 10
      %s6061 = smul.addr %s6060, 8
      %s6062 = scalar_lea.vmem %s13, %s6061
      // Predicated region
      $region73: #{unet_block_z_middle_forward.1} parent=71 // pred_check
        %p6063 = pneg %p320
      $region74: #{unet_block_z_middle_forward.1} parent=71 // pred_check_branch
        %6065 = sbr.rel (%p6063) target = $region76
      $region75: #{unet_block_z_middle_forward.1} parent=71 // pred_region
        _
      $region76: #{unet_block_z_middle_forward.1} parent=71 // pred_fallthru
        _
    $region72: #{unet_block_z_middle_forward.1} parent=5 // pred_fallthru
      _
    %p6066 = scmp.le.s32.totalorder 2, %s19
    // Predicated region
    $region77: #{unet_block_z_middle_forward.1} parent=5 // pred_check
      %p6067 = pneg %p6066
    $region78: #{unet_block_z_middle_forward.1} parent=5 // pred_check_branch
      %6069 = sbr.rel (%p6067) target = $region80
    $region79: #{unet_block_z_middle_forward.1} parent=5 // pred_region
      %s6070 = ssub.s32 %s19, 2
      // Predicated region
      $region81: #{unet_block_z_middle_forward.1} parent=79 // pred_check
        %p6071 = pneg %p326
      $region82: #{unet_block_z_middle_forward.1} parent=79 // pred_check_branch
        %6073 = sbr.rel (%p6071) target = $region84
      $region83: #{unet_block_z_middle_forward.1} parent=79 // pred_region
        %p6074 = scmp.lt.s32.totalorder %s25, 1
        %s6075 = scalar_select %p6074, %s25, 1
        %s6076 = smul.addr %s6075, 10
        %s6077 = smul.addr %s6076, 8
        %s6078 = scalar_lea.vmem %s13, %s6077
      $region84: #{unet_block_z_middle_forward.1} parent=79 // pred_fallthru
        _
    $region80: #{unet_block_z_middle_forward.1} parent=5 // pred_fallthru
      _
  $region6: #{unet_block_z_middle_forward.1} parent=0 // loop_footer
    %s23 = sadd.s32 1, %s19
  $region7: #{unet_block_z_middle_forward.1} parent=0 // loop_footer_branch
    %18 = sbr.rel target = $region3
  $region8: #{unet_block_z_middle_forward.1} parent=0 // loop_exit
    _

</llo_original>
